<compile_context>
chip_gen: v7x
topology: tpu7x:2x2x1
jax: 0.10.0
libtpu: 0.0.40
codegen_flags: <defaults>
</compile_context>

<pallas_src>
import functools
import math

import jax
import jax.numpy as jnp
from jax import lax
from jax.experimental import pallas as pl
from jax.experimental.pallas import tpu as pltpu

EPS = 1e-5  # LayerNorm eps (module default)


def _gelu_exact(x):
    # nn.GELU() default is the exact (erf) formulation.
    return 0.5 * x * (1.0 + lax.erf(x * (1.0 / math.sqrt(2.0))))


def _round_up(a, m):
    return ((a + m - 1) // m) * m


def interaction_kernel(x_ref, w_in_ref, b_in_ref, w0_ref, b0_ref,
                       aw_ref, ab_ref, wout_ref, bout_ref,
                       w1_ref, b1_ref, w2_ref, b2_ref, o_ref,
                       x_buf, qkv_buf, attn_buf,
                       *, n_layers, embed_dim, n_players, block_b):
    E = embed_dim
    n = n_players
    T = block_b

    def mm(w, act):
        # bf16 MXU operands, f32 accumulation.
        return jnp.dot(w.astype(jnp.bfloat16), act.astype(jnp.bfloat16),
                       preferred_element_type=jnp.float32)

    # Players side-by-side on lanes: one wide slab -> a single MXU push for the
    # fused rnn_q|rnn_k|rnn_v projection.  Written into a persistent VMEM
    # scratch slab instead of jnp.concatenate.
    for p in range(n):
        x_buf[:, p * T:(p + 1) * T] = x_ref[p]
    qkv0 = mm(w_in_ref[...], x_buf[...]) + b_in_ref[...]          # (3E, n*T) f32

    # LayerNorm over the feature (sublane) axis.  gamma/beta were folded into
    # the layer-0 in_proj host-side, so only (y-mu)*rsqrt(var+eps) remains.
    # Single-pass moments: var = E[y^2] - mu^2.
    inv_e = 1.0 / E
    for blk in range(3):
        y = qkv0[blk * E:(blk + 1) * E]
        mu = jnp.sum(y, axis=0, keepdims=True) * inv_e
        mu2 = jnp.sum(y * y, axis=0, keepdims=True) * inv_e
        var = mu2 - mu * mu
        qkv_buf[blk * E:(blk + 1) * E, :] = (y - mu) * lax.rsqrt(var + EPS)

    xcur = None
    # TODO(synk): switch to lax.fori_loop over the stacked per-layer weights if
    # n_layers grows well beyond ~8 (full unroll is fine at n_layers=4).
    for i in range(n_layers):
        if i == 0:
            # Layer 0: one block-diagonal (3E,3E) matmul against the stacked
            # normalized q|k|v slab (single MXU push with K=3E).
            qkv = mm(w0_ref[...], qkv_buf[...]) + b0_ref[...]
        else:
            qkv = mm(aw_ref[i], xcur) + ab_ref[i]                 # fused q|k|v
        q = qkv[0:E]            # 1/sqrt(E) already folded into the q weights
        k = qkv[E:2 * E]
        v = qkv[2 * E:3 * E]

        # Tiny n x n attention per frame: VPU products + XLU sublane reductions,
        # results written straight into a VMEM scratch slab (no concatenate).
        qs = [q[:, p * T:(p + 1) * T] for p in range(n)]           # (E, T)
        ks = [k[:, p * T:(p + 1) * T] for p in range(n)]
        vs = [v[:, p * T:(p + 1) * T] for p in range(n)]
        for pq in range(n):
            s = [jnp.sum(qs[pq] * ks[pk], axis=0, keepdims=True)   # (1, T)
                 for pk in range(n)]
            m = s[0]
            for pk in range(1, n):
                m = jnp.maximum(m, s[pk])
            e = [jnp.exp(sv - m) for sv in s]
            denom = e[0]
            for pk in range(1, n):
                denom = denom + e[pk]
            # exact reciprocal: negligible cost (EUP has slack), tighter parity
            inv = pl.reciprocal(denom, approx=False)
            acc = (e[0] * inv) * vs[0]
            for pk in range(1, n):
                acc = acc + (e[pk] * inv) * vs[pk]
            attn_buf[:, pq * T:(pq + 1) * T] = acc

        a = mm(wout_ref[i], attn_buf[...]) + bout_ref[i]           # out_proj
        h = _gelu_exact(mm(w1_ref[i], a) + b1_ref[i])              # feed-forward
        h = mm(w2_ref[i], h) + b2_ref[i]
        xcur = a + h                                               # x = attn + ff(attn)

    for p in range(n):
        o_ref[p, :, :] = xcur[:, p * T:(p + 1) * T].astype(o_ref.dtype)


def _full_spec(shape):
    nd = len(shape)
    # TODO(synk): mark these invariant weight operands single-buffered
    # (pipeline_mode=pl.Buffered(1)) once that path is exercised; VMEM is far
    # from tight at these sizes so double-buffering them is harmless.
    return pl.BlockSpec(shape, lambda i, _nd=nd: (0,) * _nd)


def _prep_weights(params, *, n_layers, embed_dim):
    """Host-side weight prep: fused q|k|v stacks, LN-affine fold into the
    layer-0 in_proj, 1/sqrt(E) scale folded into every q projection, and a
    block-diagonal layer-0 in_proj.  All matmul weights are bf16, biases f32."""
    E, L = embed_dim, n_layers
    scale = 1.0 / math.sqrt(E)           # n_heads = 1 -> head_dim == embed_dim

    w_in = params['w_in'].reshape(3 * E, -1)                       # q|k|v rows
    b_in = params['b_in'].reshape(3 * E, 1)

    gamma = params['ln_w']                                         # (3, E)
    beta = params['ln_b']                                          # (3, E)
    w0 = params['attn_in_w'][0]                                    # (3, E, E)
    b0 = params['attn_in_b'][0]                                    # (3, E)
    # Fold LN affine:  W' = W * diag(gamma)  (scale input columns),
    #                  b' = b + W @ beta.
    w0f = w0 * gamma[:, None, :]
    b0f = b0 + jnp.einsum('cij,cj->ci', w0, beta)
    # Fold the attention scale into the layer-0 q projection.
    w0f = w0f.at[0].multiply(scale)
    b0f = b0f.at[0].multiply(scale)
    # Block-diagonal (3E, 3E) layer-0 in_proj (single MXU push in-kernel).
    w0_bd = jnp.zeros((3 * E, 3 * E), jnp.float32)
    for c in range(3):
        w0_bd = w0_bd.at[c * E:(c + 1) * E, c * E:(c + 1) * E].set(w0f[c])
    b0_col = b0f.reshape(3 * E, 1)

    # Layers >= 1: fused (3E, E) in_proj with q rows pre-scaled.
    aw = params['attn_in_w'].reshape(L, 3 * E, E)
    ab = params['attn_in_b'].reshape(L, 3 * E)
    qscale = jnp.concatenate(
        [jnp.full((E,), scale, jnp.float32), jnp.ones((2 * E,), jnp.float32)])
    aw = aw * qscale[None, :, None]
    ab = ab * qscale[None, :]

    return [
        w_in.astype(jnp.bfloat16), b_in.astype(jnp.float32),
        w0_bd.astype(jnp.bfloat16), b0_col.astype(jnp.float32),
        aw.astype(jnp.bfloat16), ab.reshape(L, 3 * E, 1).astype(jnp.float32),
        params['attn_out_w'].astype(jnp.bfloat16),
        params['attn_out_b'].reshape(L, E, 1).astype(jnp.float32),
        params['ff1_w'].astype(jnp.bfloat16),
        params['ff1_b'].reshape(L, E, 1).astype(jnp.float32),
        params['ff2_w'].astype(jnp.bfloat16),
        params['ff2_b'].reshape(L, E, 1).astype(jnp.float32),
    ]


def interaction_forward_planar(x_ndB, params, *, n_layers, embed_dim,
                               block_b=2048):
    """Preferred entry point: x_ndB is (n_players, input_dim, B) with the
    flattened batch on the trailing (lane-dense) axis.  Returns
    (n_players, embed_dim, B) bfloat16.  Using this layout end-to-end avoids
    the HBM transpose passes of the (b, l, n, d) interface."""
    n, din, B = x_ndB.shape
    E = embed_dim

    bb = max(128, _round_up(min(block_b, B), 128))
    Bp = _round_up(B, bb)
    if Bp // bb < 2 and B > 128:
        # Keep >= 2 grid steps so "parallel" megacore sharding feeds both
        # TensorCores (v7x); harmless elsewhere.
        bb = _round_up((B + 1) // 2, 128)
        Bp = _round_up(B, bb)
    grid = (Bp // bb,)

    xt = x_ndB.astype(jnp.bfloat16)
    if Bp != B:
        xt = jnp.pad(xt, ((0, 0), (0, 0), (0, Bp - B)))

    plist = _prep_weights(params, n_layers=n_layers, embed_dim=E)

    in_specs = [pl.BlockSpec((n, din, bb), lambda i: (0, 0, i))]
    in_specs += [_full_spec(p.shape) for p in plist]
    out_spec = pl.BlockSpec((n, E, bb), lambda i: (0, 0, i))

    # Live slabs are a few MiB even at block_b=2048; keep the cap modest so it
    # is safe on v7x (64 MiB physical per TC) as well as v5e/v6e (128 MiB).
    vmem_limit = (48 if bb > 2048 else 32) * 1024 * 1024

    out = pl.pallas_call(
        functools.partial(interaction_kernel, n_layers=n_layers,
                          embed_dim=E, n_players=n, block_b=bb),
        out_shape=jax.ShapeDtypeStruct((n, E, Bp), jnp.bfloat16),
        grid_spec=pltpu.PrefetchScalarGridSpec(
            num_scalar_prefetch=0,
            grid=grid,
            in_specs=in_specs,
            out_specs=out_spec,
            scratch_shapes=[
                pltpu.VMEM((din, n * bb), jnp.bfloat16),   # x slab
                pltpu.VMEM((3 * E, n * bb), jnp.float32),  # normalized q|k|v
                pltpu.VMEM((E, n * bb), jnp.float32),      # attention output
            ]),
        compiler_params=pltpu.CompilerParams(
            dimension_semantics=("parallel",),
            vmem_limit_bytes=vmem_limit),
    )(xt, *plist)

    return out[:, :, :B] if Bp != B else out


def interaction_forward(x, params, *, n_layers, embed_dim, block_b=2048,
                        out_dtype=jnp.float32):
    """Torch-layout interface: x (b, l, n, input_dim) -> (b, l, n, embed_dim).

    NOTE: this wrapper pays two HBM layout passes (input/output transposes)
    outside the kernel; callers that can adopt the (n, feat, B) layout should
    use interaction_forward_planar directly.  The input is cast to bf16 before
    the transpose and the kernel emits bf16, so both passes move half the
    bytes of the original f32 version."""
    b, l, n, din = x.shape
    B = b * l
    x_ndB = jnp.transpose(x.reshape(B, n, din).astype(jnp.bfloat16), (1, 2, 0))
    out = interaction_forward_planar(x_ndB, params, n_layers=n_layers,
                                     embed_dim=embed_dim, block_b=block_b)
    # transpose + dtype cast fuse into a single XLA pass.
    return jnp.transpose(out, (2, 0, 1)).reshape(b, l, n, embed_dim).astype(out_dtype)


def init_params(key, input_dim, embed_dim, n_layers):
    """Weights in PyTorch Linear layout (out_features, in_features)."""
    ks = jax.random.split(key, 12)
    E, L = embed_dim, n_layers
    p = {
        # rnn_q / rnn_k / rnn_v stacked along axis 0 (0=q, 1=k, 2=v)
        'w_in': 0.1 * jax.random.normal(ks[0], (3, E, input_dim), jnp.float32),
        'b_in': 0.05 * jax.random.normal(ks[1], (3, E), jnp.float32),
        # ln_q / ln_k / ln_v
        'ln_w': 1.0 + 0.1 * jax.random.normal(ks[2], (3, E), jnp.float32),
        'ln_b': 0.05 * jax.random.normal(ks[3], (3, E), jnp.float32),
        # MultiheadAttention in_proj (q/k/v chunks) and out_proj per layer
        'attn_in_w': 0.1 * jax.random.normal(ks[4], (L, 3, E, E), jnp.float32),
        'attn_in_b': 0.05 * jax.random.normal(ks[5], (L, 3, E), jnp.float32),
        'attn_out_w': 0.1 * jax.random.normal(ks[6], (L, E, E), jnp.float32),
        'attn_out_b': 0.05 * jax.random.normal(ks[7], (L, E), jnp.float32),
        # feed-forward Linear -> GELU -> Linear per layer
        'ff1_w': 0.1 * jax.random.normal(ks[8], (L, E, E), jnp.float32),
        'ff1_b': 0.05 * jax.random.normal(ks[9], (L, E), jnp.float32),
        'ff2_w': 0.1 * jax.random.normal(ks[10], (L, E, E), jnp.float32),
        'ff2_b': 0.05 * jax.random.normal(ks[11], (L, E), jnp.float32),
    }
    # NOTE: the torch module also defines ln_f but never uses it in forward().
    return p


def reference_forward(x, params, *, n_layers, embed_dim,
                      match_kernel_precision=True):
    """Pure-JAX reference in the natural (b, l, n, d) layout (mirrors the torch
    module).  With match_kernel_precision=True the matmul operands are cast to
    bf16 (f32 accumulation) like the kernel's MXU path."""
    b, l, n, din = x.shape
    E = embed_dim
    cast = (lambda a: a.astype(jnp.bfloat16)) if match_kernel_precision \
        else (lambda a: a)

    def lin(v, w, bias):             # w: (out, in) — torch Linear layout
        return jnp.einsum('...d,od->...o', cast(v), cast(w),
                          preferred_element_type=jnp.float32) + bias

    def ln(v, g, beta):
        mu = jnp.mean(v, axis=-1, keepdims=True)
        var = jnp.mean((v - mu) ** 2, axis=-1, keepdims=True)
        return (v - mu) * lax.rsqrt(var + EPS) * g + beta

    xf = x.reshape(b * l, n, din).astype(jnp.float32)
    xq = ln(lin(xf, params['w_in'][0], params['b_in'][0]),
            params['ln_w'][0], params['ln_b'][0])
    xk = ln(lin(xf, params['w_in'][1], params['b_in'][1]),
            params['ln_w'][1], params['ln_b'][1])
    xv = ln(lin(xf, params['w_in'][2], params['b_in'][2]),
            params['ln_w'][2], params['ln_b'][2])

    scale = 1.0 / math.sqrt(E)
    out = xq
    for i in range(n_layers):
        q = lin(xq, params['attn_in_w'][i, 0], params['attn_in_b'][i, 0]) * scale
        k = lin(xk, params['attn_in_w'][i, 1], params['attn_in_b'][i, 1])
        v = lin(xv, params['attn_in_w'][i, 2], params['attn_in_b'][i, 2])
        s = jnp.einsum('bqe,bke->bqk', q, k,
                       preferred_element_type=jnp.float32,
                       precision=lax.Precision.HIGHEST)
        s = s - jnp.max(s, axis=-1, keepdims=True)
        p = jnp.exp(s)
        p = p / jnp.sum(p, axis=-1, keepdims=True)
        a = jnp.einsum('bqk,bke->bqe', p, v,
                       preferred_element_type=jnp.float32,
                       precision=lax.Precision.HIGHEST)
        a = lin(a, params['attn_out_w'][i], params['attn_out_b'][i])
        h = lin(a, params['ff1_w'][i], params['ff1_b'][i])
        h = _gelu_exact(h)
        h = lin(h, params['ff2_w'][i], params['ff2_b'][i])
        out = a + h
        xq = xk = xv = out
    return out.reshape(b, l, n, E)


if __name__ == "__main__":
    # x is (batch, frames, players, features) per the module's forward.
    b, l, n, input_dim = 2, 8, 4, 6
    embed_dim, n_layers = 16, 4

    key = jax.random.PRNGKey(0)
    kx, kp = jax.random.split(key)
    x = jax.random.normal(kx, (b, l, n, input_dim), jnp.float32)
    params = init_params(kp, input_dim, embed_dim, n_layers)

    out = interaction_forward(x, params, n_layers=n_layers,
                              embed_dim=embed_dim)
    out = jax.block_until_ready(out)

    ref = jax.block_until_ready(
        reference_forward(x, params, n_layers=n_layers, embed_dim=embed_dim))

    assert out.shape == (b, l, n, embed_dim), out.shape
    # Tolerance reflects bf16 MXU operands, the host-side LN/scale weight folds
    # (bf16 re-rounding) and the bf16 output store.
    err = float(jnp.max(jnp.abs(out - ref)))
    assert jnp.allclose(out, ref, atol=2e-2, rtol=2e-2), err
    print("KERNEL_OK")
</pallas_src>

<mosaic_0001>
module attributes {stable_mosaic.version = 11 : i64} {
  func.func @interaction_kernel(%arg0: i32, %arg1: memref<4x6x128xbf16, #tpu.memory_space<vmem>>, %arg2: memref<48x6xbf16, #tpu.memory_space<vmem>>, %arg3: memref<48x1xf32, #tpu.memory_space<vmem>>, %arg4: memref<48x48xbf16, #tpu.memory_space<vmem>>, %arg5: memref<48x1xf32, #tpu.memory_space<vmem>>, %arg6: memref<4x48x16xbf16, #tpu.memory_space<vmem>>, %arg7: memref<4x48x1xf32, #tpu.memory_space<vmem>>, %arg8: memref<4x16x16xbf16, #tpu.memory_space<vmem>>, %arg9: memref<4x16x1xf32, #tpu.memory_space<vmem>>, %arg10: memref<4x16x16xbf16, #tpu.memory_space<vmem>>, %arg11: memref<4x16x1xf32, #tpu.memory_space<vmem>>, %arg12: memref<4x16x16xbf16, #tpu.memory_space<vmem>>, %arg13: memref<4x16x1xf32, #tpu.memory_space<vmem>>, %arg14: memref<4x16x128xbf16, #tpu.memory_space<vmem>>, %arg15: memref<6x512xbf16, #tpu.memory_space<vmem>>, %arg16: memref<48x512xf32, #tpu.memory_space<vmem>>, %arg17: memref<16x512xf32, #tpu.memory_space<vmem>>) attributes {dimension_semantics = [#tpu.dimension_semantics<parallel>], iteration_bounds = array<i64: 1>, scalar_prefetch = 0 : i64, scratch_operands = 3 : i64, tpu.core_type = #tpu.core_type<tc>, window_params = [{transform_indices = @transform_0, window_bounds = array<i64: 4, 6, 128>}, {pipeline_mode = #tpu.pipeline_mode<synchronous>, transform_indices = @transform_1, window_bounds = array<i64: 48, 6>}, {pipeline_mode = #tpu.pipeline_mode<synchronous>, transform_indices = @transform_2, window_bounds = array<i64: 48, 1>}, {pipeline_mode = #tpu.pipeline_mode<synchronous>, transform_indices = @transform_3, window_bounds = array<i64: 48, 48>}, {pipeline_mode = #tpu.pipeline_mode<synchronous>, transform_indices = @transform_4, window_bounds = array<i64: 48, 1>}, {pipeline_mode = #tpu.pipeline_mode<synchronous>, transform_indices = @transform_5, window_bounds = array<i64: 4, 48, 16>}, {pipeline_mode = #tpu.pipeline_mode<synchronous>, transform_indices = @transform_6, window_bounds = array<i64: 4, 48, 1>}, {pipeline_mode = #tpu.pipeline_mode<synchronous>, transform_indices = @transform_7, window_bounds = array<i64: 4, 16, 16>}, {pipeline_mode = #tpu.pipeline_mode<synchronous>, transform_indices = @transform_8, window_bounds = array<i64: 4, 16, 1>}, {pipeline_mode = #tpu.pipeline_mode<synchronous>, transform_indices = @transform_9, window_bounds = array<i64: 4, 16, 16>}, {pipeline_mode = #tpu.pipeline_mode<synchronous>, transform_indices = @transform_10, window_bounds = array<i64: 4, 16, 1>}, {pipeline_mode = #tpu.pipeline_mode<synchronous>, transform_indices = @transform_11, window_bounds = array<i64: 4, 16, 16>}, {pipeline_mode = #tpu.pipeline_mode<synchronous>, transform_indices = @transform_12, window_bounds = array<i64: 4, 16, 1>}, {transform_indices = @transform_13, window_bounds = array<i64: 4, 16, 128>}]} {
    %c0 = arith.constant 0 : index
    %c0_0 = arith.constant 0 : index
    %c0_1 = arith.constant 0 : index
    %0 = vector.load %arg1[%c0, %c0_0, %c0_1] : memref<4x6x128xbf16, #tpu.memory_space<vmem>>, vector<1x6x128xbf16>
    %1 = vector.shape_cast %0 : vector<1x6x128xbf16> to vector<6x128xbf16>
    %c0_2 = arith.constant 0 : index
    %c0_3 = arith.constant 0 : index
    %2 = vector.load %arg15[%c0_2, %c0_3] : memref<6x512xbf16, #tpu.memory_space<vmem>>, vector<6x128xbf16>
    tpu.vector_store %arg15[%c0_2, %c0_3], %1 {strides = array<i32>} : memref<6x512xbf16, #tpu.memory_space<vmem>>, vector<6x128xbf16>,
    %c1 = arith.constant 1 : index
    %c0_4 = arith.constant 0 : index
    %c0_5 = arith.constant 0 : index
    %3 = vector.load %arg1[%c1, %c0_4, %c0_5] : memref<4x6x128xbf16, #tpu.memory_space<vmem>>, vector<1x6x128xbf16>
    %4 = vector.shape_cast %3 : vector<1x6x128xbf16> to vector<6x128xbf16>
    %c0_6 = arith.constant 0 : index
    %c128 = arith.constant 128 : index
    %5 = vector.load %arg15[%c0_6, %c128] : memref<6x512xbf16, #tpu.memory_space<vmem>>, vector<6x128xbf16>
    tpu.vector_store %arg15[%c0_6, %c128], %4 {strides = array<i32>} : memref<6x512xbf16, #tpu.memory_space<vmem>>, vector<6x128xbf16>,
    %c2 = arith.constant 2 : index
    %c0_7 = arith.constant 0 : index
    %c0_8 = arith.constant 0 : index
    %6 = vector.load %arg1[%c2, %c0_7, %c0_8] : memref<4x6x128xbf16, #tpu.memory_space<vmem>>, vector<1x6x128xbf16>
    %7 = vector.shape_cast %6 : vector<1x6x128xbf16> to vector<6x128xbf16>
    %c0_9 = arith.constant 0 : index
    %c256 = arith.constant 256 : index
    %8 = vector.load %arg15[%c0_9, %c256] : memref<6x512xbf16, #tpu.memory_space<vmem>>, vector<6x128xbf16>
    tpu.vector_store %arg15[%c0_9, %c256], %7 {strides = array<i32>} : memref<6x512xbf16, #tpu.memory_space<vmem>>, vector<6x128xbf16>,
    %c3 = arith.constant 3 : index
    %c0_10 = arith.constant 0 : index
    %c0_11 = arith.constant 0 : index
    %9 = vector.load %arg1[%c3, %c0_10, %c0_11] : memref<4x6x128xbf16, #tpu.memory_space<vmem>>, vector<1x6x128xbf16>
    %10 = vector.shape_cast %9 : vector<1x6x128xbf16> to vector<6x128xbf16>
    %c0_12 = arith.constant 0 : index
    %c384 = arith.constant 384 : index
    %11 = vector.load %arg15[%c0_12, %c384] : memref<6x512xbf16, #tpu.memory_space<vmem>>, vector<6x128xbf16>
    tpu.vector_store %arg15[%c0_12, %c384], %10 {strides = array<i32>} : memref<6x512xbf16, #tpu.memory_space<vmem>>, vector<6x128xbf16>,
    %c0_13 = arith.constant 0 : index
    %c0_14 = arith.constant 0 : index
    %12 = vector.load %arg2[%c0_13, %c0_14] : memref<48x6xbf16, #tpu.memory_space<vmem>>, vector<48x6xbf16>
    %c0_15 = arith.constant 0 : index
    %c0_16 = arith.constant 0 : index
    %13 = vector.load %arg15[%c0_15, %c0_16] : memref<6x512xbf16, #tpu.memory_space<vmem>>, vector<6x512xbf16>
    %cst = arith.constant dense<0.000000e+00> : vector<48x512xf32>
    %14 = tpu.matmul %12, %13, %cst {dimension_numbers = #tpu.dot_dimension_numbers<[1], [0], [0], [1], [0, 0, 1, 1], [], []>} : vector<48x6xbf16>, vector<6x512xbf16>, vector<48x512xf32> -> vector<48x512xf32>
    %c0_17 = arith.constant 0 : index
    %c0_18 = arith.constant 0 : index
    %15 = vector.load %arg3[%c0_17, %c0_18] : memref<48x1xf32, #tpu.memory_space<vmem>>, vector<48x1xf32>
    %16 = vector.broadcast %15 : vector<48x1xf32> to vector<48x512xf32>
    %17 = arith.addf %14, %16 : vector<48x512xf32>
    %18 = vector.extract_strided_slice %17 {offsets = [0, 0], sizes = [16, 512], strides = [1, 1]} : vector<48x512xf32> to vector<16x512xf32>
    %cst_19 = arith.constant dense<0.000000e+00> : vector<512xf32>
    %19 = vector.multi_reduction <add>, %18, %cst_19 [0] : vector<16x512xf32> to vector<512xf32>
    %20 = vector.shape_cast %19 : vector<512xf32> to vector<1x512xf32>
    %cst_20 = arith.constant 6.250000e-02 : f32
    %21 = vector.broadcast %cst_20 : f32 to vector<1x512xf32>
    %22 = arith.mulf %20, %21 : vector<1x512xf32>
    %23 = arith.mulf %18, %18 : vector<16x512xf32>
    %cst_21 = arith.constant dense<0.000000e+00> : vector<512xf32>
    %24 = vector.multi_reduction <add>, %23, %cst_21 [0] : vector<16x512xf32> to vector<512xf32>
    %25 = vector.shape_cast %24 : vector<512xf32> to vector<1x512xf32>
    %cst_22 = arith.constant 6.250000e-02 : f32
    %26 = vector.broadcast %cst_22 : f32 to vector<1x512xf32>
    %27 = arith.mulf %25, %26 : vector<1x512xf32>
    %28 = arith.mulf %22, %22 : vector<1x512xf32>
    %29 = arith.subf %27, %28 : vector<1x512xf32>
    %30 = vector.broadcast %22 : vector<1x512xf32> to vector<16x512xf32>
    %31 = arith.subf %18, %30 : vector<16x512xf32>
    %cst_23 = arith.constant 9.99999974E-6 : f32
    %32 = vector.broadcast %cst_23 : f32 to vector<1x512xf32>
    %33 = arith.addf %29, %32 : vector<1x512xf32>
    %34 = math.rsqrt %33 : vector<1x512xf32>
    %35 = vector.broadcast %34 : vector<1x512xf32> to vector<16x512xf32>
    %36 = arith.mulf %31, %35 : vector<16x512xf32>
    %c0_24 = arith.constant 0 : index
    %c0_25 = arith.constant 0 : index
    %37 = vector.load %arg16[%c0_24, %c0_25] : memref<48x512xf32, #tpu.memory_space<vmem>>, vector<16x512xf32>
    tpu.vector_store %arg16[%c0_24, %c0_25], %36 {strides = array<i32>} : memref<48x512xf32, #tpu.memory_space<vmem>>, vector<16x512xf32>,
    %38 = vector.extract_strided_slice %17 {offsets = [16, 0], sizes = [16, 512], strides = [1, 1]} : vector<48x512xf32> to vector<16x512xf32>
    %cst_26 = arith.constant dense<0.000000e+00> : vector<512xf32>
    %39 = vector.multi_reduction <add>, %38, %cst_26 [0] : vector<16x512xf32> to vector<512xf32>
    %40 = vector.shape_cast %39 : vector<512xf32> to vector<1x512xf32>
    %cst_27 = arith.constant 6.250000e-02 : f32
    %41 = vector.broadcast %cst_27 : f32 to vector<1x512xf32>
    %42 = arith.mulf %40, %41 : vector<1x512xf32>
    %43 = arith.mulf %38, %38 : vector<16x512xf32>
    %cst_28 = arith.constant dense<0.000000e+00> : vector<512xf32>
    %44 = vector.multi_reduction <add>, %43, %cst_28 [0] : vector<16x512xf32> to vector<512xf32>
    %45 = vector.shape_cast %44 : vector<512xf32> to vector<1x512xf32>
    %cst_29 = arith.constant 6.250000e-02 : f32
    %46 = vector.broadcast %cst_29 : f32 to vector<1x512xf32>
    %47 = arith.mulf %45, %46 : vector<1x512xf32>
    %48 = arith.mulf %42, %42 : vector<1x512xf32>
    %49 = arith.subf %47, %48 : vector<1x512xf32>
    %50 = vector.broadcast %42 : vector<1x512xf32> to vector<16x512xf32>
    %51 = arith.subf %38, %50 : vector<16x512xf32>
    %cst_30 = arith.constant 9.99999974E-6 : f32
    %52 = vector.broadcast %cst_30 : f32 to vector<1x512xf32>
    %53 = arith.addf %49, %52 : vector<1x512xf32>
    %54 = math.rsqrt %53 : vector<1x512xf32>
    %55 = vector.broadcast %54 : vector<1x512xf32> to vector<16x512xf32>
    %56 = arith.mulf %51, %55 : vector<16x512xf32>
    %c16 = arith.constant 16 : index
    %c0_31 = arith.constant 0 : index
    %57 = vector.load %arg16[%c16, %c0_31] : memref<48x512xf32, #tpu.memory_space<vmem>>, vector<16x512xf32>
    tpu.vector_store %arg16[%c16, %c0_31], %56 {strides = array<i32>} : memref<48x512xf32, #tpu.memory_space<vmem>>, vector<16x512xf32>,
    %58 = vector.extract_strided_slice %17 {offsets = [32, 0], sizes = [16, 512], strides = [1, 1]} : vector<48x512xf32> to vector<16x512xf32>
    %cst_32 = arith.constant dense<0.000000e+00> : vector<512xf32>
    %59 = vector.multi_reduction <add>, %58, %cst_32 [0] : vector<16x512xf32> to vector<512xf32>
    %60 = vector.shape_cast %59 : vector<512xf32> to vector<1x512xf32>
    %cst_33 = arith.constant 6.250000e-02 : f32
    %61 = vector.broadcast %cst_33 : f32 to vector<1x512xf32>
    %62 = arith.mulf %60, %61 : vector<1x512xf32>
    %63 = arith.mulf %58, %58 : vector<16x512xf32>
    %cst_34 = arith.constant dense<0.000000e+00> : vector<512xf32>
    %64 = vector.multi_reduction <add>, %63, %cst_34 [0] : vector<16x512xf32> to vector<512xf32>
    %65 = vector.shape_cast %64 : vector<512xf32> to vector<1x512xf32>
    %cst_35 = arith.constant 6.250000e-02 : f32
    %66 = vector.broadcast %cst_35 : f32 to vector<1x512xf32>
    %67 = arith.mulf %65, %66 : vector<1x512xf32>
    %68 = arith.mulf %62, %62 : vector<1x512xf32>
    %69 = arith.subf %67, %68 : vector<1x512xf32>
    %70 = vector.broadcast %62 : vector<1x512xf32> to vector<16x512xf32>
    %71 = arith.subf %58, %70 : vector<16x512xf32>
    %cst_36 = arith.constant 9.99999974E-6 : f32
    %72 = vector.broadcast %cst_36 : f32 to vector<1x512xf32>
    %73 = arith.addf %69, %72 : vector<1x512xf32>
    %74 = math.rsqrt %73 : vector<1x512xf32>
    %75 = vector.broadcast %74 : vector<1x512xf32> to vector<16x512xf32>
    %76 = arith.mulf %71, %75 : vector<16x512xf32>
    %c32 = arith.constant 32 : index
    %c0_37 = arith.constant 0 : index
    %77 = vector.load %arg16[%c32, %c0_37] : memref<48x512xf32, #tpu.memory_space<vmem>>, vector<16x512xf32>
    tpu.vector_store %arg16[%c32, %c0_37], %76 {strides = array<i32>} : memref<48x512xf32, #tpu.memory_space<vmem>>, vector<16x512xf32>,
    %c0_38 = arith.constant 0 : index
    %c0_39 = arith.constant 0 : index
    %78 = vector.load %arg4[%c0_38, %c0_39] : memref<48x48xbf16, #tpu.memory_space<vmem>>, vector<48x48xbf16>
    %c0_40 = arith.constant 0 : index
    %c0_41 = arith.constant 0 : index
    %79 = vector.load %arg16[%c0_40, %c0_41] : memref<48x512xf32, #tpu.memory_space<vmem>>, vector<48x512xf32>
    %80 = arith.truncf %79 : vector<48x512xf32> to vector<48x512xbf16>
    %cst_42 = arith.constant dense<0.000000e+00> : vector<48x512xf32>
    %81 = tpu.matmul %78, %80, %cst_42 {dimension_numbers = #tpu.dot_dimension_numbers<[1], [0], [0], [1], [0, 0, 1, 1], [], []>} : vector<48x48xbf16>, vector<48x512xbf16>, vector<48x512xf32> -> vector<48x512xf32>
    %c0_43 = arith.constant 0 : index
    %c0_44 = arith.constant 0 : index
    %82 = vector.load %arg5[%c0_43, %c0_44] : memref<48x1xf32, #tpu.memory_space<vmem>>, vector<48x1xf32>
    %83 = vector.broadcast %82 : vector<48x1xf32> to vector<48x512xf32>
    %84 = arith.addf %81, %83 : vector<48x512xf32>
    %85 = vector.extract_strided_slice %84 {offsets = [0, 0], sizes = [16, 512], strides = [1, 1]} : vector<48x512xf32> to vector<16x512xf32>
    %86 = vector.extract_strided_slice %84 {offsets = [16, 0], sizes = [16, 512], strides = [1, 1]} : vector<48x512xf32> to vector<16x512xf32>
    %87 = vector.extract_strided_slice %84 {offsets = [32, 0], sizes = [16, 512], strides = [1, 1]} : vector<48x512xf32> to vector<16x512xf32>
    %88 = vector.extract_strided_slice %85 {offsets = [0, 0], sizes = [16, 128], strides = [1, 1]} : vector<16x512xf32> to vector<16x128xf32>
    %89 = vector.extract_strided_slice %85 {offsets = [0, 128], sizes = [16, 128], strides = [1, 1]} : vector<16x512xf32> to vector<16x128xf32>
    %90 = vector.extract_strided_slice %85 {offsets = [0, 256], sizes = [16, 128], strides = [1, 1]} : vector<16x512xf32> to vector<16x128xf32>
    %91 = vector.extract_strided_slice %85 {offsets = [0, 384], sizes = [16, 128], strides = [1, 1]} : vector<16x512xf32> to vector<16x128xf32>
    %92 = vector.extract_strided_slice %86 {offsets = [0, 0], sizes = [16, 128], strides = [1, 1]} : vector<16x512xf32> to vector<16x128xf32>
    %93 = vector.extract_strided_slice %86 {offsets = [0, 128], sizes = [16, 128], strides = [1, 1]} : vector<16x512xf32> to vector<16x128xf32>
    %94 = vector.extract_strided_slice %86 {offsets = [0, 256], sizes = [16, 128], strides = [1, 1]} : vector<16x512xf32> to vector<16x128xf32>
    %95 = vector.extract_strided_slice %86 {offsets = [0, 384], sizes = [16, 128], strides = [1, 1]} : vector<16x512xf32> to vector<16x128xf32>
    %96 = vector.extract_strided_slice %87 {offsets = [0, 0], sizes = [16, 128], strides = [1, 1]} : vector<16x512xf32> to vector<16x128xf32>
    %97 = vector.extract_strided_slice %87 {offsets = [0, 128], sizes = [16, 128], strides = [1, 1]} : vector<16x512xf32> to vector<16x128xf32>
    %98 = vector.extract_strided_slice %87 {offsets = [0, 256], sizes = [16, 128], strides = [1, 1]} : vector<16x512xf32> to vector<16x128xf32>
    %99 = vector.extract_strided_slice %87 {offsets = [0, 384], sizes = [16, 128], strides = [1, 1]} : vector<16x512xf32> to vector<16x128xf32>
    %100 = arith.mulf %88, %92 : vector<16x128xf32>
    %cst_45 = arith.constant dense<0.000000e+00> : vector<128xf32>
    %101 = vector.multi_reduction <add>, %100, %cst_45 [0] : vector<16x128xf32> to vector<128xf32>
    %102 = vector.shape_cast %101 : vector<128xf32> to vector<1x128xf32>
    %103 = arith.mulf %88, %93 : vector<16x128xf32>
    %cst_46 = arith.constant dense<0.000000e+00> : vector<128xf32>
    %104 = vector.multi_reduction <add>, %103, %cst_46 [0] : vector<16x128xf32> to vector<128xf32>
    %105 = vector.shape_cast %104 : vector<128xf32> to vector<1x128xf32>
    %106 = arith.mulf %88, %94 : vector<16x128xf32>
    %cst_47 = arith.constant dense<0.000000e+00> : vector<128xf32>
    %107 = vector.multi_reduction <add>, %106, %cst_47 [0] : vector<16x128xf32> to vector<128xf32>
    %108 = vector.shape_cast %107 : vector<128xf32> to vector<1x128xf32>
    %109 = arith.mulf %88, %95 : vector<16x128xf32>
    %cst_48 = arith.constant dense<0.000000e+00> : vector<128xf32>
    %110 = vector.multi_reduction <add>, %109, %cst_48 [0] : vector<16x128xf32> to vector<128xf32>
    %111 = vector.shape_cast %110 : vector<128xf32> to vector<1x128xf32>
    %112 = arith.maximumf %102, %105 : vector<1x128xf32>
    %113 = arith.maximumf %112, %108 : vector<1x128xf32>
    %114 = arith.maximumf %113, %111 : vector<1x128xf32>
    %115 = arith.subf %102, %114 : vector<1x128xf32>
    %116 = math.exp %115 : vector<1x128xf32>
    %117 = arith.subf %105, %114 : vector<1x128xf32>
    %118 = math.exp %117 : vector<1x128xf32>
    %119 = arith.subf %108, %114 : vector<1x128xf32>
    %120 = math.exp %119 : vector<1x128xf32>
    %121 = arith.subf %111, %114 : vector<1x128xf32>
    %122 = math.exp %121 : vector<1x128xf32>
    %123 = arith.addf %116, %118 : vector<1x128xf32>
    %124 = arith.addf %123, %120 : vector<1x128xf32>
    %125 = arith.addf %124, %122 : vector<1x128xf32>
    %126 = tpu.reciprocal %125 : vector<1x128xf32> -> vector<1x128xf32>
    %127 = arith.mulf %116, %126 : vector<1x128xf32>
    %128 = vector.broadcast %127 : vector<1x128xf32> to vector<16x128xf32>
    %129 = arith.mulf %128, %96 : vector<16x128xf32>
    %130 = arith.mulf %118, %126 : vector<1x128xf32>
    %131 = vector.broadcast %130 : vector<1x128xf32> to vector<16x128xf32>
    %132 = arith.mulf %131, %97 : vector<16x128xf32>
    %133 = arith.addf %129, %132 : vector<16x128xf32>
    %134 = arith.mulf %120, %126 : vector<1x128xf32>
    %135 = vector.broadcast %134 : vector<1x128xf32> to vector<16x128xf32>
    %136 = arith.mulf %135, %98 : vector<16x128xf32>
    %137 = arith.addf %133, %136 : vector<16x128xf32>
    %138 = arith.mulf %122, %126 : vector<1x128xf32>
    %139 = vector.broadcast %138 : vector<1x128xf32> to vector<16x128xf32>
    %140 = arith.mulf %139, %99 : vector<16x128xf32>
    %141 = arith.addf %137, %140 : vector<16x128xf32>
    %c0_49 = arith.constant 0 : index
    %c0_50 = arith.constant 0 : index
    %142 = vector.load %arg17[%c0_49, %c0_50] : memref<16x512xf32, #tpu.memory_space<vmem>>, vector<16x128xf32>
    tpu.vector_store %arg17[%c0_49, %c0_50], %141 {strides = array<i32>} : memref<16x512xf32, #tpu.memory_space<vmem>>, vector<16x128xf32>,
    %143 = arith.mulf %89, %92 : vector<16x128xf32>
    %cst_51 = arith.constant dense<0.000000e+00> : vector<128xf32>
    %144 = vector.multi_reduction <add>, %143, %cst_51 [0] : vector<16x128xf32> to vector<128xf32>
    %145 = vector.shape_cast %144 : vector<128xf32> to vector<1x128xf32>
    %146 = arith.mulf %89, %93 : vector<16x128xf32>
    %cst_52 = arith.constant dense<0.000000e+00> : vector<128xf32>
    %147 = vector.multi_reduction <add>, %146, %cst_52 [0] : vector<16x128xf32> to vector<128xf32>
    %148 = vector.shape_cast %147 : vector<128xf32> to vector<1x128xf32>
    %149 = arith.mulf %89, %94 : vector<16x128xf32>
    %cst_53 = arith.constant dense<0.000000e+00> : vector<128xf32>
    %150 = vector.multi_reduction <add>, %149, %cst_53 [0] : vector<16x128xf32> to vector<128xf32>
    %151 = vector.shape_cast %150 : vector<128xf32> to vector<1x128xf32>
    %152 = arith.mulf %89, %95 : vector<16x128xf32>
    %cst_54 = arith.constant dense<0.000000e+00> : vector<128xf32>
    %153 = vector.multi_reduction <add>, %152, %cst_54 [0] : vector<16x128xf32> to vector<128xf32>
    %154 = vector.shape_cast %153 : vector<128xf32> to vector<1x128xf32>
    %155 = arith.maximumf %145, %148 : vector<1x128xf32>
    %156 = arith.maximumf %155, %151 : vector<1x128xf32>
    %157 = arith.maximumf %156, %154 : vector<1x128xf32>
    %158 = arith.subf %145, %157 : vector<1x128xf32>
    %159 = math.exp %158 : vector<1x128xf32>
    %160 = arith.subf %148, %157 : vector<1x128xf32>
    %161 = math.exp %160 : vector<1x128xf32>
    %162 = arith.subf %151, %157 : vector<1x128xf32>
    %163 = math.exp %162 : vector<1x128xf32>
    %164 = arith.subf %154, %157 : vector<1x128xf32>
    %165 = math.exp %164 : vector<1x128xf32>
    %166 = arith.addf %159, %161 : vector<1x128xf32>
    %167 = arith.addf %166, %163 : vector<1x128xf32>
    %168 = arith.addf %167, %165 : vector<1x128xf32>
    %169 = tpu.reciprocal %168 : vector<1x128xf32> -> vector<1x128xf32>
    %170 = arith.mulf %159, %169 : vector<1x128xf32>
    %171 = vector.broadcast %170 : vector<1x128xf32> to vector<16x128xf32>
    %172 = arith.mulf %171, %96 : vector<16x128xf32>
    %173 = arith.mulf %161, %169 : vector<1x128xf32>
    %174 = vector.broadcast %173 : vector<1x128xf32> to vector<16x128xf32>
    %175 = arith.mulf %174, %97 : vector<16x128xf32>
    %176 = arith.addf %172, %175 : vector<16x128xf32>
    %177 = arith.mulf %163, %169 : vector<1x128xf32>
    %178 = vector.broadcast %177 : vector<1x128xf32> to vector<16x128xf32>
    %179 = arith.mulf %178, %98 : vector<16x128xf32>
    %180 = arith.addf %176, %179 : vector<16x128xf32>
    %181 = arith.mulf %165, %169 : vector<1x128xf32>
    %182 = vector.broadcast %181 : vector<1x128xf32> to vector<16x128xf32>
    %183 = arith.mulf %182, %99 : vector<16x128xf32>
    %184 = arith.addf %180, %183 : vector<16x128xf32>
    %c0_55 = arith.constant 0 : index
    %c128_56 = arith.constant 128 : index
    %185 = vector.load %arg17[%c0_55, %c128_56] : memref<16x512xf32, #tpu.memory_space<vmem>>, vector<16x128xf32>
    tpu.vector_store %arg17[%c0_55, %c128_56], %184 {strides = array<i32>} : memref<16x512xf32, #tpu.memory_space<vmem>>, vector<16x128xf32>,
    %186 = arith.mulf %90, %92 : vector<16x128xf32>
    %cst_57 = arith.constant dense<0.000000e+00> : vector<128xf32>
    %187 = vector.multi_reduction <add>, %186, %cst_57 [0] : vector<16x128xf32> to vector<128xf32>
    %188 = vector.shape_cast %187 : vector<128xf32> to vector<1x128xf32>
    %189 = arith.mulf %90, %93 : vector<16x128xf32>
    %cst_58 = arith.constant dense<0.000000e+00> : vector<128xf32>
    %190 = vector.multi_reduction <add>, %189, %cst_58 [0] : vector<16x128xf32> to vector<128xf32>
    %191 = vector.shape_cast %190 : vector<128xf32> to vector<1x128xf32>
    %192 = arith.mulf %90, %94 : vector<16x128xf32>
    %cst_59 = arith.constant dense<0.000000e+00> : vector<128xf32>
    %193 = vector.multi_reduction <add>, %192, %cst_59 [0] : vector<16x128xf32> to vector<128xf32>
    %194 = vector.shape_cast %193 : vector<128xf32> to vector<1x128xf32>
    %195 = arith.mulf %90, %95 : vector<16x128xf32>
    %cst_60 = arith.constant dense<0.000000e+00> : vector<128xf32>
    %196 = vector.multi_reduction <add>, %195, %cst_60 [0] : vector<16x128xf32> to vector<128xf32>
    %197 = vector.shape_cast %196 : vector<128xf32> to vector<1x128xf32>
    %198 = arith.maximumf %188, %191 : vector<1x128xf32>
    %199 = arith.maximumf %198, %194 : vector<1x128xf32>
    %200 = arith.maximumf %199, %197 : vector<1x128xf32>
    %201 = arith.subf %188, %200 : vector<1x128xf32>
    %202 = math.exp %201 : vector<1x128xf32>
    %203 = arith.subf %191, %200 : vector<1x128xf32>
    %204 = math.exp %203 : vector<1x128xf32>
    %205 = arith.subf %194, %200 : vector<1x128xf32>
    %206 = math.exp %205 : vector<1x128xf32>
    %207 = arith.subf %197, %200 : vector<1x128xf32>
    %208 = math.exp %207 : vector<1x128xf32>
    %209 = arith.addf %202, %204 : vector<1x128xf32>
    %210 = arith.addf %209, %206 : vector<1x128xf32>
    %211 = arith.addf %210, %208 : vector<1x128xf32>
    %212 = tpu.reciprocal %211 : vector<1x128xf32> -> vector<1x128xf32>
    %213 = arith.mulf %202, %212 : vector<1x128xf32>
    %214 = vector.broadcast %213 : vector<1x128xf32> to vector<16x128xf32>
    %215 = arith.mulf %214, %96 : vector<16x128xf32>
    %216 = arith.mulf %204, %212 : vector<1x128xf32>
    %217 = vector.broadcast %216 : vector<1x128xf32> to vector<16x128xf32>
    %218 = arith.mulf %217, %97 : vector<16x128xf32>
    %219 = arith.addf %215, %218 : vector<16x128xf32>
    %220 = arith.mulf %206, %212 : vector<1x128xf32>
    %221 = vector.broadcast %220 : vector<1x128xf32> to vector<16x128xf32>
    %222 = arith.mulf %221, %98 : vector<16x128xf32>
    %223 = arith.addf %219, %222 : vector<16x128xf32>
    %224 = arith.mulf %208, %212 : vector<1x128xf32>
    %225 = vector.broadcast %224 : vector<1x128xf32> to vector<16x128xf32>
    %226 = arith.mulf %225, %99 : vector<16x128xf32>
    %227 = arith.addf %223, %226 : vector<16x128xf32>
    %c0_61 = arith.constant 0 : index
    %c256_62 = arith.constant 256 : index
    %228 = vector.load %arg17[%c0_61, %c256_62] : memref<16x512xf32, #tpu.memory_space<vmem>>, vector<16x128xf32>
    tpu.vector_store %arg17[%c0_61, %c256_62], %227 {strides = array<i32>} : memref<16x512xf32, #tpu.memory_space<vmem>>, vector<16x128xf32>,
    %229 = arith.mulf %91, %92 : vector<16x128xf32>
    %cst_63 = arith.constant dense<0.000000e+00> : vector<128xf32>
    %230 = vector.multi_reduction <add>, %229, %cst_63 [0] : vector<16x128xf32> to vector<128xf32>
    %231 = vector.shape_cast %230 : vector<128xf32> to vector<1x128xf32>
    %232 = arith.mulf %91, %93 : vector<16x128xf32>
    %cst_64 = arith.constant dense<0.000000e+00> : vector<128xf32>
    %233 = vector.multi_reduction <add>, %232, %cst_64 [0] : vector<16x128xf32> to vector<128xf32>
    %234 = vector.shape_cast %233 : vector<128xf32> to vector<1x128xf32>
    %235 = arith.mulf %91, %94 : vector<16x128xf32>
    %cst_65 = arith.constant dense<0.000000e+00> : vector<128xf32>
    %236 = vector.multi_reduction <add>, %235, %cst_65 [0] : vector<16x128xf32> to vector<128xf32>
    %237 = vector.shape_cast %236 : vector<128xf32> to vector<1x128xf32>
    %238 = arith.mulf %91, %95 : vector<16x128xf32>
    %cst_66 = arith.constant dense<0.000000e+00> : vector<128xf32>
    %239 = vector.multi_reduction <add>, %238, %cst_66 [0] : vector<16x128xf32> to vector<128xf32>
    %240 = vector.shape_cast %239 : vector<128xf32> to vector<1x128xf32>
    %241 = arith.maximumf %231, %234 : vector<1x128xf32>
    %242 = arith.maximumf %241, %237 : vector<1x128xf32>
    %243 = arith.maximumf %242, %240 : vector<1x128xf32>
    %244 = arith.subf %231, %243 : vector<1x128xf32>
    %245 = math.exp %244 : vector<1x128xf32>
    %246 = arith.subf %234, %243 : vector<1x128xf32>
    %247 = math.exp %246 : vector<1x128xf32>
    %248 = arith.subf %237, %243 : vector<1x128xf32>
    %249 = math.exp %248 : vector<1x128xf32>
    %250 = arith.subf %240, %243 : vector<1x128xf32>
    %251 = math.exp %250 : vector<1x128xf32>
    %252 = arith.addf %245, %247 : vector<1x128xf32>
    %253 = arith.addf %252, %249 : vector<1x128xf32>
    %254 = arith.addf %253, %251 : vector<1x128xf32>
    %255 = tpu.reciprocal %254 : vector<1x128xf32> -> vector<1x128xf32>
    %256 = arith.mulf %245, %255 : vector<1x128xf32>
    %257 = vector.broadcast %256 : vector<1x128xf32> to vector<16x128xf32>
    %258 = arith.mulf %257, %96 : vector<16x128xf32>
    %259 = arith.mulf %247, %255 : vector<1x128xf32>
    %260 = vector.broadcast %259 : vector<1x128xf32> to vector<16x128xf32>
    %261 = arith.mulf %260, %97 : vector<16x128xf32>
    %262 = arith.addf %258, %261 : vector<16x128xf32>
    %263 = arith.mulf %249, %255 : vector<1x128xf32>
    %264 = vector.broadcast %263 : vector<1x128xf32> to vector<16x128xf32>
    %265 = arith.mulf %264, %98 : vector<16x128xf32>
    %266 = arith.addf %262, %265 : vector<16x128xf32>
    %267 = arith.mulf %251, %255 : vector<1x128xf32>
    %268 = vector.broadcast %267 : vector<1x128xf32> to vector<16x128xf32>
    %269 = arith.mulf %268, %99 : vector<16x128xf32>
    %270 = arith.addf %266, %269 : vector<16x128xf32>
    %c0_67 = arith.constant 0 : index
    %c384_68 = arith.constant 384 : index
    %271 = vector.load %arg17[%c0_67, %c384_68] : memref<16x512xf32, #tpu.memory_space<vmem>>, vector<16x128xf32>
    tpu.vector_store %arg17[%c0_67, %c384_68], %270 {strides = array<i32>} : memref<16x512xf32, #tpu.memory_space<vmem>>, vector<16x128xf32>,
    %c0_69 = arith.constant 0 : index
    %c0_70 = arith.constant 0 : index
    %c0_71 = arith.constant 0 : index
    %272 = vector.load %arg8[%c0_69, %c0_70, %c0_71] : memref<4x16x16xbf16, #tpu.memory_space<vmem>>, vector<1x16x16xbf16>
    %273 = vector.shape_cast %272 : vector<1x16x16xbf16> to vector<16x16xbf16>
    %c0_72 = arith.constant 0 : index
    %c0_73 = arith.constant 0 : index
    %274 = vector.load %arg17[%c0_72, %c0_73] : memref<16x512xf32, #tpu.memory_space<vmem>>, vector<16x512xf32>
    %275 = arith.truncf %274 : vector<16x512xf32> to vector<16x512xbf16>
    %cst_74 = arith.constant dense<0.000000e+00> : vector<16x512xf32>
    %276 = tpu.matmul %273, %275, %cst_74 {dimension_numbers = #tpu.dot_dimension_numbers<[1], [0], [0], [1], [0, 0, 1, 1], [], []>} : vector<16x16xbf16>, vector<16x512xbf16>, vector<16x512xf32> -> vector<16x512xf32>
    %c0_75 = arith.constant 0 : index
    %c0_76 = arith.constant 0 : index
    %c0_77 = arith.constant 0 : index
    %277 = vector.load %arg9[%c0_75, %c0_76, %c0_77] : memref<4x16x1xf32, #tpu.memory_space<vmem>>, vector<1x16x1xf32>
    %278 = vector.shape_cast %277 : vector<1x16x1xf32> to vector<16x1xf32>
    %279 = vector.broadcast %278 : vector<16x1xf32> to vector<16x512xf32>
    %280 = arith.addf %276, %279 : vector<16x512xf32>
    %c0_78 = arith.constant 0 : index
    %c0_79 = arith.constant 0 : index
    %c0_80 = arith.constant 0 : index
    %281 = vector.load %arg10[%c0_78, %c0_79, %c0_80] : memref<4x16x16xbf16, #tpu.memory_space<vmem>>, vector<1x16x16xbf16>
    %282 = vector.shape_cast %281 : vector<1x16x16xbf16> to vector<16x16xbf16>
    %283 = arith.truncf %280 : vector<16x512xf32> to vector<16x512xbf16>
    %cst_81 = arith.constant dense<0.000000e+00> : vector<16x512xf32>
    %284 = tpu.matmul %282, %283, %cst_81 {dimension_numbers = #tpu.dot_dimension_numbers<[1], [0], [0], [1], [0, 0, 1, 1], [], []>} : vector<16x16xbf16>, vector<16x512xbf16>, vector<16x512xf32> -> vector<16x512xf32>
    %c0_82 = arith.constant 0 : index
    %c0_83 = arith.constant 0 : index
    %c0_84 = arith.constant 0 : index
    %285 = vector.load %arg11[%c0_82, %c0_83, %c0_84] : memref<4x16x1xf32, #tpu.memory_space<vmem>>, vector<1x16x1xf32>
    %286 = vector.shape_cast %285 : vector<1x16x1xf32> to vector<16x1xf32>
    %287 = vector.broadcast %286 : vector<16x1xf32> to vector<16x512xf32>
    %288 = arith.addf %284, %287 : vector<16x512xf32>
    %cst_85 = arith.constant 5.000000e-01 : f32
    %289 = vector.broadcast %cst_85 : f32 to vector<16x512xf32>
    %290 = arith.mulf %289, %288 : vector<16x512xf32>
    %cst_86 = arith.constant 0.707106769 : f32
    %291 = vector.broadcast %cst_86 : f32 to vector<16x512xf32>
    %292 = arith.mulf %288, %291 : vector<16x512xf32>
    %293 = math.erf %292 : vector<16x512xf32>
    %cst_87 = arith.constant 1.000000e+00 : f32
    %294 = vector.broadcast %cst_87 : f32 to vector<16x512xf32>
    %295 = arith.addf %294, %293 : vector<16x512xf32>
    %296 = arith.mulf %290, %295 : vector<16x512xf32>
    %c0_88 = arith.constant 0 : index
    %c0_89 = arith.constant 0 : index
    %c0_90 = arith.constant 0 : index
    %297 = vector.load %arg12[%c0_88, %c0_89, %c0_90] : memref<4x16x16xbf16, #tpu.memory_space<vmem>>, vector<1x16x16xbf16>
    %298 = vector.shape_cast %297 : vector<1x16x16xbf16> to vector<16x16xbf16>
    %299 = arith.truncf %296 : vector<16x512xf32> to vector<16x512xbf16>
    %cst_91 = arith.constant dense<0.000000e+00> : vector<16x512xf32>
    %300 = tpu.matmul %298, %299, %cst_91 {dimension_numbers = #tpu.dot_dimension_numbers<[1], [0], [0], [1], [0, 0, 1, 1], [], []>} : vector<16x16xbf16>, vector<16x512xbf16>, vector<16x512xf32> -> vector<16x512xf32>
    %c0_92 = arith.constant 0 : index
    %c0_93 = arith.constant 0 : index
    %c0_94 = arith.constant 0 : index
    %301 = vector.load %arg13[%c0_92, %c0_93, %c0_94] : memref<4x16x1xf32, #tpu.memory_space<vmem>>, vector<1x16x1xf32>
    %302 = vector.shape_cast %301 : vector<1x16x1xf32> to vector<16x1xf32>
    %303 = vector.broadcast %302 : vector<16x1xf32> to vector<16x512xf32>
    %304 = arith.addf %300, %303 : vector<16x512xf32>
    %305 = arith.addf %280, %304 : vector<16x512xf32>
    %c1_95 = arith.constant 1 : index
    %c0_96 = arith.constant 0 : index
    %c0_97 = arith.constant 0 : index
    %306 = vector.load %arg6[%c1_95, %c0_96, %c0_97] : memref<4x48x16xbf16, #tpu.memory_space<vmem>>, vector<1x48x16xbf16>
    %307 = vector.shape_cast %306 : vector<1x48x16xbf16> to vector<48x16xbf16>
    %308 = arith.truncf %305 : vector<16x512xf32> to vector<16x512xbf16>
    %cst_98 = arith.constant dense<0.000000e+00> : vector<48x512xf32>
    %309 = tpu.matmul %307, %308, %cst_98 {dimension_numbers = #tpu.dot_dimension_numbers<[1], [0], [0], [1], [0, 0, 1, 1], [], []>} : vector<48x16xbf16>, vector<16x512xbf16>, vector<48x512xf32> -> vector<48x512xf32>
    %c1_99 = arith.constant 1 : index
    %c0_100 = arith.constant 0 : index
    %c0_101 = arith.constant 0 : index
    %310 = vector.load %arg7[%c1_99, %c0_100, %c0_101] : memref<4x48x1xf32, #tpu.memory_space<vmem>>, vector<1x48x1xf32>
    %311 = vector.shape_cast %310 : vector<1x48x1xf32> to vector<48x1xf32>
    %312 = vector.broadcast %311 : vector<48x1xf32> to vector<48x512xf32>
    %313 = arith.addf %309, %312 : vector<48x512xf32>
    %314 = vector.extract_strided_slice %313 {offsets = [0, 0], sizes = [16, 512], strides = [1, 1]} : vector<48x512xf32> to vector<16x512xf32>
    %315 = vector.extract_strided_slice %313 {offsets = [16, 0], sizes = [16, 512], strides = [1, 1]} : vector<48x512xf32> to vector<16x512xf32>
    %316 = vector.extract_strided_slice %313 {offsets = [32, 0], sizes = [16, 512], strides = [1, 1]} : vector<48x512xf32> to vector<16x512xf32>
    %317 = vector.extract_strided_slice %314 {offsets = [0, 0], sizes = [16, 128], strides = [1, 1]} : vector<16x512xf32> to vector<16x128xf32>
    %318 = vector.extract_strided_slice %314 {offsets = [0, 128], sizes = [16, 128], strides = [1, 1]} : vector<16x512xf32> to vector<16x128xf32>
    %319 = vector.extract_strided_slice %314 {offsets = [0, 256], sizes = [16, 128], strides = [1, 1]} : vector<16x512xf32> to vector<16x128xf32>
    %320 = vector.extract_strided_slice %314 {offsets = [0, 384], sizes = [16, 128], strides = [1, 1]} : vector<16x512xf32> to vector<16x128xf32>
    %321 = vector.extract_strided_slice %315 {offsets = [0, 0], sizes = [16, 128], strides = [1, 1]} : vector<16x512xf32> to vector<16x128xf32>
    %322 = vector.extract_strided_slice %315 {offsets = [0, 128], sizes = [16, 128], strides = [1, 1]} : vector<16x512xf32> to vector<16x128xf32>
    %323 = vector.extract_strided_slice %315 {offsets = [0, 256], sizes = [16, 128], strides = [1, 1]} : vector<16x512xf32> to vector<16x128xf32>
    %324 = vector.extract_strided_slice %315 {offsets = [0, 384], sizes = [16, 128], strides = [1, 1]} : vector<16x512xf32> to vector<16x128xf32>
    %325 = vector.extract_strided_slice %316 {offsets = [0, 0], sizes = [16, 128], strides = [1, 1]} : vector<16x512xf32> to vector<16x128xf32>
    %326 = vector.extract_strided_slice %316 {offsets = [0, 128], sizes = [16, 128], strides = [1, 1]} : vector<16x512xf32> to vector<16x128xf32>
    %327 = vector.extract_strided_slice %316 {offsets = [0, 256], sizes = [16, 128], strides = [1, 1]} : vector<16x512xf32> to vector<16x128xf32>
    %328 = vector.extract_strided_slice %316 {offsets = [0, 384], sizes = [16, 128], strides = [1, 1]} : vector<16x512xf32> to vector<16x128xf32>
    %329 = arith.mulf %317, %321 : vector<16x128xf32>
    %cst_102 = arith.constant dense<0.000000e+00> : vector<128xf32>
    %330 = vector.multi_reduction <add>, %329, %cst_102 [0] : vector<16x128xf32> to vector<128xf32>
    %331 = vector.shape_cast %330 : vector<128xf32> to vector<1x128xf32>
    %332 = arith.mulf %317, %322 : vector<16x128xf32>
    %cst_103 = arith.constant dense<0.000000e+00> : vector<128xf32>
    %333 = vector.multi_reduction <add>, %332, %cst_103 [0] : vector<16x128xf32> to vector<128xf32>
    %334 = vector.shape_cast %333 : vector<128xf32> to vector<1x128xf32>
    %335 = arith.mulf %317, %323 : vector<16x128xf32>
    %cst_104 = arith.constant dense<0.000000e+00> : vector<128xf32>
    %336 = vector.multi_reduction <add>, %335, %cst_104 [0] : vector<16x128xf32> to vector<128xf32>
    %337 = vector.shape_cast %336 : vector<128xf32> to vector<1x128xf32>
    %338 = arith.mulf %317, %324 : vector<16x128xf32>
    %cst_105 = arith.constant dense<0.000000e+00> : vector<128xf32>
    %339 = vector.multi_reduction <add>, %338, %cst_105 [0] : vector<16x128xf32> to vector<128xf32>
    %340 = vector.shape_cast %339 : vector<128xf32> to vector<1x128xf32>
    %341 = arith.maximumf %331, %334 : vector<1x128xf32>
    %342 = arith.maximumf %341, %337 : vector<1x128xf32>
    %343 = arith.maximumf %342, %340 : vector<1x128xf32>
    %344 = arith.subf %331, %343 : vector<1x128xf32>
    %345 = math.exp %344 : vector<1x128xf32>
    %346 = arith.subf %334, %343 : vector<1x128xf32>
    %347 = math.exp %346 : vector<1x128xf32>
    %348 = arith.subf %337, %343 : vector<1x128xf32>
    %349 = math.exp %348 : vector<1x128xf32>
    %350 = arith.subf %340, %343 : vector<1x128xf32>
    %351 = math.exp %350 : vector<1x128xf32>
    %352 = arith.addf %345, %347 : vector<1x128xf32>
    %353 = arith.addf %352, %349 : vector<1x128xf32>
    %354 = arith.addf %353, %351 : vector<1x128xf32>
    %355 = tpu.reciprocal %354 : vector<1x128xf32> -> vector<1x128xf32>
    %356 = arith.mulf %345, %355 : vector<1x128xf32>
    %357 = vector.broadcast %356 : vector<1x128xf32> to vector<16x128xf32>
    %358 = arith.mulf %357, %325 : vector<16x128xf32>
    %359 = arith.mulf %347, %355 : vector<1x128xf32>
    %360 = vector.broadcast %359 : vector<1x128xf32> to vector<16x128xf32>
    %361 = arith.mulf %360, %326 : vector<16x128xf32>
    %362 = arith.addf %358, %361 : vector<16x128xf32>
    %363 = arith.mulf %349, %355 : vector<1x128xf32>
    %364 = vector.broadcast %363 : vector<1x128xf32> to vector<16x128xf32>
    %365 = arith.mulf %364, %327 : vector<16x128xf32>
    %366 = arith.addf %362, %365 : vector<16x128xf32>
    %367 = arith.mulf %351, %355 : vector<1x128xf32>
    %368 = vector.broadcast %367 : vector<1x128xf32> to vector<16x128xf32>
    %369 = arith.mulf %368, %328 : vector<16x128xf32>
    %370 = arith.addf %366, %369 : vector<16x128xf32>
    %c0_106 = arith.constant 0 : index
    %c0_107 = arith.constant 0 : index
    %371 = vector.load %arg17[%c0_106, %c0_107] : memref<16x512xf32, #tpu.memory_space<vmem>>, vector<16x128xf32>
    tpu.vector_store %arg17[%c0_106, %c0_107], %370 {strides = array<i32>} : memref<16x512xf32, #tpu.memory_space<vmem>>, vector<16x128xf32>,
    %372 = arith.mulf %318, %321 : vector<16x128xf32>
    %cst_108 = arith.constant dense<0.000000e+00> : vector<128xf32>
    %373 = vector.multi_reduction <add>, %372, %cst_108 [0] : vector<16x128xf32> to vector<128xf32>
    %374 = vector.shape_cast %373 : vector<128xf32> to vector<1x128xf32>
    %375 = arith.mulf %318, %322 : vector<16x128xf32>
    %cst_109 = arith.constant dense<0.000000e+00> : vector<128xf32>
    %376 = vector.multi_reduction <add>, %375, %cst_109 [0] : vector<16x128xf32> to vector<128xf32>
    %377 = vector.shape_cast %376 : vector<128xf32> to vector<1x128xf32>
    %378 = arith.mulf %318, %323 : vector<16x128xf32>
    %cst_110 = arith.constant dense<0.000000e+00> : vector<128xf32>
    %379 = vector.multi_reduction <add>, %378, %cst_110 [0] : vector<16x128xf32> to vector<128xf32>
    %380 = vector.shape_cast %379 : vector<128xf32> to vector<1x128xf32>
    %381 = arith.mulf %318, %324 : vector<16x128xf32>
    %cst_111 = arith.constant dense<0.000000e+00> : vector<128xf32>
    %382 = vector.multi_reduction <add>, %381, %cst_111 [0] : vector<16x128xf32> to vector<128xf32>
    %383 = vector.shape_cast %382 : vector<128xf32> to vector<1x128xf32>
    %384 = arith.maximumf %374, %377 : vector<1x128xf32>
    %385 = arith.maximumf %384, %380 : vector<1x128xf32>
    %386 = arith.maximumf %385, %383 : vector<1x128xf32>
    %387 = arith.subf %374, %386 : vector<1x128xf32>
    %388 = math.exp %387 : vector<1x128xf32>
    %389 = arith.subf %377, %386 : vector<1x128xf32>
    %390 = math.exp %389 : vector<1x128xf32>
    %391 = arith.subf %380, %386 : vector<1x128xf32>
    %392 = math.exp %391 : vector<1x128xf32>
    %393 = arith.subf %383, %386 : vector<1x128xf32>
    %394 = math.exp %393 : vector<1x128xf32>
    %395 = arith.addf %388, %390 : vector<1x128xf32>
    %396 = arith.addf %395, %392 : vector<1x128xf32>
    %397 = arith.addf %396, %394 : vector<1x128xf32>
    %398 = tpu.reciprocal %397 : vector<1x128xf32> -> vector<1x128xf32>
    %399 = arith.mulf %388, %398 : vector<1x128xf32>
    %400 = vector.broadcast %399 : vector<1x128xf32> to vector<16x128xf32>
    %401 = arith.mulf %400, %325 : vector<16x128xf32>
    %402 = arith.mulf %390, %398 : vector<1x128xf32>
    %403 = vector.broadcast %402 : vector<1x128xf32> to vector<16x128xf32>
    %404 = arith.mulf %403, %326 : vector<16x128xf32>
    %405 = arith.addf %401, %404 : vector<16x128xf32>
    %406 = arith.mulf %392, %398 : vector<1x128xf32>
    %407 = vector.broadcast %406 : vector<1x128xf32> to vector<16x128xf32>
    %408 = arith.mulf %407, %327 : vector<16x128xf32>
    %409 = arith.addf %405, %408 : vector<16x128xf32>
    %410 = arith.mulf %394, %398 : vector<1x128xf32>
    %411 = vector.broadcast %410 : vector<1x128xf32> to vector<16x128xf32>
    %412 = arith.mulf %411, %328 : vector<16x128xf32>
    %413 = arith.addf %409, %412 : vector<16x128xf32>
    %c0_112 = arith.constant 0 : index
    %c128_113 = arith.constant 128 : index
    %414 = vector.load %arg17[%c0_112, %c128_113] : memref<16x512xf32, #tpu.memory_space<vmem>>, vector<16x128xf32>
    tpu.vector_store %arg17[%c0_112, %c128_113], %413 {strides = array<i32>} : memref<16x512xf32, #tpu.memory_space<vmem>>, vector<16x128xf32>,
    %415 = arith.mulf %319, %321 : vector<16x128xf32>
    %cst_114 = arith.constant dense<0.000000e+00> : vector<128xf32>
    %416 = vector.multi_reduction <add>, %415, %cst_114 [0] : vector<16x128xf32> to vector<128xf32>
    %417 = vector.shape_cast %416 : vector<128xf32> to vector<1x128xf32>
    %418 = arith.mulf %319, %322 : vector<16x128xf32>
    %cst_115 = arith.constant dense<0.000000e+00> : vector<128xf32>
    %419 = vector.multi_reduction <add>, %418, %cst_115 [0] : vector<16x128xf32> to vector<128xf32>
    %420 = vector.shape_cast %419 : vector<128xf32> to vector<1x128xf32>
    %421 = arith.mulf %319, %323 : vector<16x128xf32>
    %cst_116 = arith.constant dense<0.000000e+00> : vector<128xf32>
    %422 = vector.multi_reduction <add>, %421, %cst_116 [0] : vector<16x128xf32> to vector<128xf32>
    %423 = vector.shape_cast %422 : vector<128xf32> to vector<1x128xf32>
    %424 = arith.mulf %319, %324 : vector<16x128xf32>
    %cst_117 = arith.constant dense<0.000000e+00> : vector<128xf32>
    %425 = vector.multi_reduction <add>, %424, %cst_117 [0] : vector<16x128xf32> to vector<128xf32>
    %426 = vector.shape_cast %425 : vector<128xf32> to vector<1x128xf32>
    %427 = arith.maximumf %417, %420 : vector<1x128xf32>
    %428 = arith.maximumf %427, %423 : vector<1x128xf32>
    %429 = arith.maximumf %428, %426 : vector<1x128xf32>
    %430 = arith.subf %417, %429 : vector<1x128xf32>
    %431 = math.exp %430 : vector<1x128xf32>
    %432 = arith.subf %420, %429 : vector<1x128xf32>
    %433 = math.exp %432 : vector<1x128xf32>
    %434 = arith.subf %423, %429 : vector<1x128xf32>
    %435 = math.exp %434 : vector<1x128xf32>
    %436 = arith.subf %426, %429 : vector<1x128xf32>
    %437 = math.exp %436 : vector<1x128xf32>
    %438 = arith.addf %431, %433 : vector<1x128xf32>
    %439 = arith.addf %438, %435 : vector<1x128xf32>
    %440 = arith.addf %439, %437 : vector<1x128xf32>
    %441 = tpu.reciprocal %440 : vector<1x128xf32> -> vector<1x128xf32>
    %442 = arith.mulf %431, %441 : vector<1x128xf32>
    %443 = vector.broadcast %442 : vector<1x128xf32> to vector<16x128xf32>
    %444 = arith.mulf %443, %325 : vector<16x128xf32>
    %445 = arith.mulf %433, %441 : vector<1x128xf32>
    %446 = vector.broadcast %445 : vector<1x128xf32> to vector<16x128xf32>
    %447 = arith.mulf %446, %326 : vector<16x128xf32>
    %448 = arith.addf %444, %447 : vector<16x128xf32>
    %449 = arith.mulf %435, %441 : vector<1x128xf32>
    %450 = vector.broadcast %449 : vector<1x128xf32> to vector<16x128xf32>
    %451 = arith.mulf %450, %327 : vector<16x128xf32>
    %452 = arith.addf %448, %451 : vector<16x128xf32>
    %453 = arith.mulf %437, %441 : vector<1x128xf32>
    %454 = vector.broadcast %453 : vector<1x128xf32> to vector<16x128xf32>
    %455 = arith.mulf %454, %328 : vector<16x128xf32>
    %456 = arith.addf %452, %455 : vector<16x128xf32>
    %c0_118 = arith.constant 0 : index
    %c256_119 = arith.constant 256 : index
    %457 = vector.load %arg17[%c0_118, %c256_119] : memref<16x512xf32, #tpu.memory_space<vmem>>, vector<16x128xf32>
    tpu.vector_store %arg17[%c0_118, %c256_119], %456 {strides = array<i32>} : memref<16x512xf32, #tpu.memory_space<vmem>>, vector<16x128xf32>,
    %458 = arith.mulf %320, %321 : vector<16x128xf32>
    %cst_120 = arith.constant dense<0.000000e+00> : vector<128xf32>
    %459 = vector.multi_reduction <add>, %458, %cst_120 [0] : vector<16x128xf32> to vector<128xf32>
    %460 = vector.shape_cast %459 : vector<128xf32> to vector<1x128xf32>
    %461 = arith.mulf %320, %322 : vector<16x128xf32>
    %cst_121 = arith.constant dense<0.000000e+00> : vector<128xf32>
    %462 = vector.multi_reduction <add>, %461, %cst_121 [0] : vector<16x128xf32> to vector<128xf32>
    %463 = vector.shape_cast %462 : vector<128xf32> to vector<1x128xf32>
    %464 = arith.mulf %320, %323 : vector<16x128xf32>
    %cst_122 = arith.constant dense<0.000000e+00> : vector<128xf32>
    %465 = vector.multi_reduction <add>, %464, %cst_122 [0] : vector<16x128xf32> to vector<128xf32>
    %466 = vector.shape_cast %465 : vector<128xf32> to vector<1x128xf32>
    %467 = arith.mulf %320, %324 : vector<16x128xf32>
    %cst_123 = arith.constant dense<0.000000e+00> : vector<128xf32>
    %468 = vector.multi_reduction <add>, %467, %cst_123 [0] : vector<16x128xf32> to vector<128xf32>
    %469 = vector.shape_cast %468 : vector<128xf32> to vector<1x128xf32>
    %470 = arith.maximumf %460, %463 : vector<1x128xf32>
    %471 = arith.maximumf %470, %466 : vector<1x128xf32>
    %472 = arith.maximumf %471, %469 : vector<1x128xf32>
    %473 = arith.subf %460, %472 : vector<1x128xf32>
    %474 = math.exp %473 : vector<1x128xf32>
    %475 = arith.subf %463, %472 : vector<1x128xf32>
    %476 = math.exp %475 : vector<1x128xf32>
    %477 = arith.subf %466, %472 : vector<1x128xf32>
    %478 = math.exp %477 : vector<1x128xf32>
    %479 = arith.subf %469, %472 : vector<1x128xf32>
    %480 = math.exp %479 : vector<1x128xf32>
    %481 = arith.addf %474, %476 : vector<1x128xf32>
    %482 = arith.addf %481, %478 : vector<1x128xf32>
    %483 = arith.addf %482, %480 : vector<1x128xf32>
    %484 = tpu.reciprocal %483 : vector<1x128xf32> -> vector<1x128xf32>
    %485 = arith.mulf %474, %484 : vector<1x128xf32>
    %486 = vector.broadcast %485 : vector<1x128xf32> to vector<16x128xf32>
    %487 = arith.mulf %486, %325 : vector<16x128xf32>
    %488 = arith.mulf %476, %484 : vector<1x128xf32>
    %489 = vector.broadcast %488 : vector<1x128xf32> to vector<16x128xf32>
    %490 = arith.mulf %489, %326 : vector<16x128xf32>
    %491 = arith.addf %487, %490 : vector<16x128xf32>
    %492 = arith.mulf %478, %484 : vector<1x128xf32>
    %493 = vector.broadcast %492 : vector<1x128xf32> to vector<16x128xf32>
    %494 = arith.mulf %493, %327 : vector<16x128xf32>
    %495 = arith.addf %491, %494 : vector<16x128xf32>
    %496 = arith.mulf %480, %484 : vector<1x128xf32>
    %497 = vector.broadcast %496 : vector<1x128xf32> to vector<16x128xf32>
    %498 = arith.mulf %497, %328 : vector<16x128xf32>
    %499 = arith.addf %495, %498 : vector<16x128xf32>
    %c0_124 = arith.constant 0 : index
    %c384_125 = arith.constant 384 : index
    %500 = vector.load %arg17[%c0_124, %c384_125] : memref<16x512xf32, #tpu.memory_space<vmem>>, vector<16x128xf32>
    tpu.vector_store %arg17[%c0_124, %c384_125], %499 {strides = array<i32>} : memref<16x512xf32, #tpu.memory_space<vmem>>, vector<16x128xf32>,
    %c1_126 = arith.constant 1 : index
    %c0_127 = arith.constant 0 : index
    %c0_128 = arith.constant 0 : index
    %501 = vector.load %arg8[%c1_126, %c0_127, %c0_128] : memref<4x16x16xbf16, #tpu.memory_space<vmem>>, vector<1x16x16xbf16>
    %502 = vector.shape_cast %501 : vector<1x16x16xbf16> to vector<16x16xbf16>
    %c0_129 = arith.constant 0 : index
    %c0_130 = arith.constant 0 : index
    %503 = vector.load %arg17[%c0_129, %c0_130] : memref<16x512xf32, #tpu.memory_space<vmem>>, vector<16x512xf32>
    %504 = arith.truncf %503 : vector<16x512xf32> to vector<16x512xbf16>
    %cst_131 = arith.constant dense<0.000000e+00> : vector<16x512xf32>
    %505 = tpu.matmul %502, %504, %cst_131 {dimension_numbers = #tpu.dot_dimension_numbers<[1], [0], [0], [1], [0, 0, 1, 1], [], []>} : vector<16x16xbf16>, vector<16x512xbf16>, vector<16x512xf32> -> vector<16x512xf32>
    %c1_132 = arith.constant 1 : index
    %c0_133 = arith.constant 0 : index
    %c0_134 = arith.constant 0 : index
    %506 = vector.load %arg9[%c1_132, %c0_133, %c0_134] : memref<4x16x1xf32, #tpu.memory_space<vmem>>, vector<1x16x1xf32>
    %507 = vector.shape_cast %506 : vector<1x16x1xf32> to vector<16x1xf32>
    %508 = vector.broadcast %507 : vector<16x1xf32> to vector<16x512xf32>
    %509 = arith.addf %505, %508 : vector<16x512xf32>
    %c1_135 = arith.constant 1 : index
    %c0_136 = arith.constant 0 : index
    %c0_137 = arith.constant 0 : index
    %510 = vector.load %arg10[%c1_135, %c0_136, %c0_137] : memref<4x16x16xbf16, #tpu.memory_space<vmem>>, vector<1x16x16xbf16>
    %511 = vector.shape_cast %510 : vector<1x16x16xbf16> to vector<16x16xbf16>
    %512 = arith.truncf %509 : vector<16x512xf32> to vector<16x512xbf16>
    %cst_138 = arith.constant dense<0.000000e+00> : vector<16x512xf32>
    %513 = tpu.matmul %511, %512, %cst_138 {dimension_numbers = #tpu.dot_dimension_numbers<[1], [0], [0], [1], [0, 0, 1, 1], [], []>} : vector<16x16xbf16>, vector<16x512xbf16>, vector<16x512xf32> -> vector<16x512xf32>
    %c1_139 = arith.constant 1 : index
    %c0_140 = arith.constant 0 : index
    %c0_141 = arith.constant 0 : index
    %514 = vector.load %arg11[%c1_139, %c0_140, %c0_141] : memref<4x16x1xf32, #tpu.memory_space<vmem>>, vector<1x16x1xf32>
    %515 = vector.shape_cast %514 : vector<1x16x1xf32> to vector<16x1xf32>
    %516 = vector.broadcast %515 : vector<16x1xf32> to vector<16x512xf32>
    %517 = arith.addf %513, %516 : vector<16x512xf32>
    %cst_142 = arith.constant 5.000000e-01 : f32
    %518 = vector.broadcast %cst_142 : f32 to vector<16x512xf32>
    %519 = arith.mulf %518, %517 : vector<16x512xf32>
    %cst_143 = arith.constant 0.707106769 : f32
    %520 = vector.broadcast %cst_143 : f32 to vector<16x512xf32>
    %521 = arith.mulf %517, %520 : vector<16x512xf32>
    %522 = math.erf %521 : vector<16x512xf32>
    %cst_144 = arith.constant 1.000000e+00 : f32
    %523 = vector.broadcast %cst_144 : f32 to vector<16x512xf32>
    %524 = arith.addf %523, %522 : vector<16x512xf32>
    %525 = arith.mulf %519, %524 : vector<16x512xf32>
    %c1_145 = arith.constant 1 : index
    %c0_146 = arith.constant 0 : index
    %c0_147 = arith.constant 0 : index
    %526 = vector.load %arg12[%c1_145, %c0_146, %c0_147] : memref<4x16x16xbf16, #tpu.memory_space<vmem>>, vector<1x16x16xbf16>
    %527 = vector.shape_cast %526 : vector<1x16x16xbf16> to vector<16x16xbf16>
    %528 = arith.truncf %525 : vector<16x512xf32> to vector<16x512xbf16>
    %cst_148 = arith.constant dense<0.000000e+00> : vector<16x512xf32>
    %529 = tpu.matmul %527, %528, %cst_148 {dimension_numbers = #tpu.dot_dimension_numbers<[1], [0], [0], [1], [0, 0, 1, 1], [], []>} : vector<16x16xbf16>, vector<16x512xbf16>, vector<16x512xf32> -> vector<16x512xf32>
    %c1_149 = arith.constant 1 : index
    %c0_150 = arith.constant 0 : index
    %c0_151 = arith.constant 0 : index
    %530 = vector.load %arg13[%c1_149, %c0_150, %c0_151] : memref<4x16x1xf32, #tpu.memory_space<vmem>>, vector<1x16x1xf32>
    %531 = vector.shape_cast %530 : vector<1x16x1xf32> to vector<16x1xf32>
    %532 = vector.broadcast %531 : vector<16x1xf32> to vector<16x512xf32>
    %533 = arith.addf %529, %532 : vector<16x512xf32>
    %534 = arith.addf %509, %533 : vector<16x512xf32>
    %c2_152 = arith.constant 2 : index
    %c0_153 = arith.constant 0 : index
    %c0_154 = arith.constant 0 : index
    %535 = vector.load %arg6[%c2_152, %c0_153, %c0_154] : memref<4x48x16xbf16, #tpu.memory_space<vmem>>, vector<1x48x16xbf16>
    %536 = vector.shape_cast %535 : vector<1x48x16xbf16> to vector<48x16xbf16>
    %537 = arith.truncf %534 : vector<16x512xf32> to vector<16x512xbf16>
    %cst_155 = arith.constant dense<0.000000e+00> : vector<48x512xf32>
    %538 = tpu.matmul %536, %537, %cst_155 {dimension_numbers = #tpu.dot_dimension_numbers<[1], [0], [0], [1], [0, 0, 1, 1], [], []>} : vector<48x16xbf16>, vector<16x512xbf16>, vector<48x512xf32> -> vector<48x512xf32>
    %c2_156 = arith.constant 2 : index
    %c0_157 = arith.constant 0 : index
    %c0_158 = arith.constant 0 : index
    %539 = vector.load %arg7[%c2_156, %c0_157, %c0_158] : memref<4x48x1xf32, #tpu.memory_space<vmem>>, vector<1x48x1xf32>
    %540 = vector.shape_cast %539 : vector<1x48x1xf32> to vector<48x1xf32>
    %541 = vector.broadcast %540 : vector<48x1xf32> to vector<48x512xf32>
    %542 = arith.addf %538, %541 : vector<48x512xf32>
    %543 = vector.extract_strided_slice %542 {offsets = [0, 0], sizes = [16, 512], strides = [1, 1]} : vector<48x512xf32> to vector<16x512xf32>
    %544 = vector.extract_strided_slice %542 {offsets = [16, 0], sizes = [16, 512], strides = [1, 1]} : vector<48x512xf32> to vector<16x512xf32>
    %545 = vector.extract_strided_slice %542 {offsets = [32, 0], sizes = [16, 512], strides = [1, 1]} : vector<48x512xf32> to vector<16x512xf32>
    %546 = vector.extract_strided_slice %543 {offsets = [0, 0], sizes = [16, 128], strides = [1, 1]} : vector<16x512xf32> to vector<16x128xf32>
    %547 = vector.extract_strided_slice %543 {offsets = [0, 128], sizes = [16, 128], strides = [1, 1]} : vector<16x512xf32> to vector<16x128xf32>
    %548 = vector.extract_strided_slice %543 {offsets = [0, 256], sizes = [16, 128], strides = [1, 1]} : vector<16x512xf32> to vector<16x128xf32>
    %549 = vector.extract_strided_slice %543 {offsets = [0, 384], sizes = [16, 128], strides = [1, 1]} : vector<16x512xf32> to vector<16x128xf32>
    %550 = vector.extract_strided_slice %544 {offsets = [0, 0], sizes = [16, 128], strides = [1, 1]} : vector<16x512xf32> to vector<16x128xf32>
    %551 = vector.extract_strided_slice %544 {offsets = [0, 128], sizes = [16, 128], strides = [1, 1]} : vector<16x512xf32> to vector<16x128xf32>
    %552 = vector.extract_strided_slice %544 {offsets = [0, 256], sizes = [16, 128], strides = [1, 1]} : vector<16x512xf32> to vector<16x128xf32>
    %553 = vector.extract_strided_slice %544 {offsets = [0, 384], sizes = [16, 128], strides = [1, 1]} : vector<16x512xf32> to vector<16x128xf32>
    %554 = vector.extract_strided_slice %545 {offsets = [0, 0], sizes = [16, 128], strides = [1, 1]} : vector<16x512xf32> to vector<16x128xf32>
    %555 = vector.extract_strided_slice %545 {offsets = [0, 128], sizes = [16, 128], strides = [1, 1]} : vector<16x512xf32> to vector<16x128xf32>
    %556 = vector.extract_strided_slice %545 {offsets = [0, 256], sizes = [16, 128], strides = [1, 1]} : vector<16x512xf32> to vector<16x128xf32>
    %557 = vector.extract_strided_slice %545 {offsets = [0, 384], sizes = [16, 128], strides = [1, 1]} : vector<16x512xf32> to vector<16x128xf32>
    %558 = arith.mulf %546, %550 : vector<16x128xf32>
    %cst_159 = arith.constant dense<0.000000e+00> : vector<128xf32>
    %559 = vector.multi_reduction <add>, %558, %cst_159 [0] : vector<16x128xf32> to vector<128xf32>
    %560 = vector.shape_cast %559 : vector<128xf32> to vector<1x128xf32>
    %561 = arith.mulf %546, %551 : vector<16x128xf32>
    %cst_160 = arith.constant dense<0.000000e+00> : vector<128xf32>
    %562 = vector.multi_reduction <add>, %561, %cst_160 [0] : vector<16x128xf32> to vector<128xf32>
    %563 = vector.shape_cast %562 : vector<128xf32> to vector<1x128xf32>
    %564 = arith.mulf %546, %552 : vector<16x128xf32>
    %cst_161 = arith.constant dense<0.000000e+00> : vector<128xf32>
    %565 = vector.multi_reduction <add>, %564, %cst_161 [0] : vector<16x128xf32> to vector<128xf32>
    %566 = vector.shape_cast %565 : vector<128xf32> to vector<1x128xf32>
    %567 = arith.mulf %546, %553 : vector<16x128xf32>
    %cst_162 = arith.constant dense<0.000000e+00> : vector<128xf32>
    %568 = vector.multi_reduction <add>, %567, %cst_162 [0] : vector<16x128xf32> to vector<128xf32>
    %569 = vector.shape_cast %568 : vector<128xf32> to vector<1x128xf32>
    %570 = arith.maximumf %560, %563 : vector<1x128xf32>
    %571 = arith.maximumf %570, %566 : vector<1x128xf32>
    %572 = arith.maximumf %571, %569 : vector<1x128xf32>
    %573 = arith.subf %560, %572 : vector<1x128xf32>
    %574 = math.exp %573 : vector<1x128xf32>
    %575 = arith.subf %563, %572 : vector<1x128xf32>
    %576 = math.exp %575 : vector<1x128xf32>
    %577 = arith.subf %566, %572 : vector<1x128xf32>
    %578 = math.exp %577 : vector<1x128xf32>
    %579 = arith.subf %569, %572 : vector<1x128xf32>
    %580 = math.exp %579 : vector<1x128xf32>
    %581 = arith.addf %574, %576 : vector<1x128xf32>
    %582 = arith.addf %581, %578 : vector<1x128xf32>
    %583 = arith.addf %582, %580 : vector<1x128xf32>
    %584 = tpu.reciprocal %583 : vector<1x128xf32> -> vector<1x128xf32>
    %585 = arith.mulf %574, %584 : vector<1x128xf32>
    %586 = vector.broadcast %585 : vector<1x128xf32> to vector<16x128xf32>
    %587 = arith.mulf %586, %554 : vector<16x128xf32>
    %588 = arith.mulf %576, %584 : vector<1x128xf32>
    %589 = vector.broadcast %588 : vector<1x128xf32> to vector<16x128xf32>
    %590 = arith.mulf %589, %555 : vector<16x128xf32>
    %591 = arith.addf %587, %590 : vector<16x128xf32>
    %592 = arith.mulf %578, %584 : vector<1x128xf32>
    %593 = vector.broadcast %592 : vector<1x128xf32> to vector<16x128xf32>
    %594 = arith.mulf %593, %556 : vector<16x128xf32>
    %595 = arith.addf %591, %594 : vector<16x128xf32>
    %596 = arith.mulf %580, %584 : vector<1x128xf32>
    %597 = vector.broadcast %596 : vector<1x128xf32> to vector<16x128xf32>
    %598 = arith.mulf %597, %557 : vector<16x128xf32>
    %599 = arith.addf %595, %598 : vector<16x128xf32>
    %c0_163 = arith.constant 0 : index
    %c0_164 = arith.constant 0 : index
    %600 = vector.load %arg17[%c0_163, %c0_164] : memref<16x512xf32, #tpu.memory_space<vmem>>, vector<16x128xf32>
    tpu.vector_store %arg17[%c0_163, %c0_164], %599 {strides = array<i32>} : memref<16x512xf32, #tpu.memory_space<vmem>>, vector<16x128xf32>,
    %601 = arith.mulf %547, %550 : vector<16x128xf32>
    %cst_165 = arith.constant dense<0.000000e+00> : vector<128xf32>
    %602 = vector.multi_reduction <add>, %601, %cst_165 [0] : vector<16x128xf32> to vector<128xf32>
    %603 = vector.shape_cast %602 : vector<128xf32> to vector<1x128xf32>
    %604 = arith.mulf %547, %551 : vector<16x128xf32>
    %cst_166 = arith.constant dense<0.000000e+00> : vector<128xf32>
    %605 = vector.multi_reduction <add>, %604, %cst_166 [0] : vector<16x128xf32> to vector<128xf32>
    %606 = vector.shape_cast %605 : vector<128xf32> to vector<1x128xf32>
    %607 = arith.mulf %547, %552 : vector<16x128xf32>
    %cst_167 = arith.constant dense<0.000000e+00> : vector<128xf32>
    %608 = vector.multi_reduction <add>, %607, %cst_167 [0] : vector<16x128xf32> to vector<128xf32>
    %609 = vector.shape_cast %608 : vector<128xf32> to vector<1x128xf32>
    %610 = arith.mulf %547, %553 : vector<16x128xf32>
    %cst_168 = arith.constant dense<0.000000e+00> : vector<128xf32>
    %611 = vector.multi_reduction <add>, %610, %cst_168 [0] : vector<16x128xf32> to vector<128xf32>
    %612 = vector.shape_cast %611 : vector<128xf32> to vector<1x128xf32>
    %613 = arith.maximumf %603, %606 : vector<1x128xf32>
    %614 = arith.maximumf %613, %609 : vector<1x128xf32>
    %615 = arith.maximumf %614, %612 : vector<1x128xf32>
    %616 = arith.subf %603, %615 : vector<1x128xf32>
    %617 = math.exp %616 : vector<1x128xf32>
    %618 = arith.subf %606, %615 : vector<1x128xf32>
    %619 = math.exp %618 : vector<1x128xf32>
    %620 = arith.subf %609, %615 : vector<1x128xf32>
    %621 = math.exp %620 : vector<1x128xf32>
    %622 = arith.subf %612, %615 : vector<1x128xf32>
    %623 = math.exp %622 : vector<1x128xf32>
    %624 = arith.addf %617, %619 : vector<1x128xf32>
    %625 = arith.addf %624, %621 : vector<1x128xf32>
    %626 = arith.addf %625, %623 : vector<1x128xf32>
    %627 = tpu.reciprocal %626 : vector<1x128xf32> -> vector<1x128xf32>
    %628 = arith.mulf %617, %627 : vector<1x128xf32>
    %629 = vector.broadcast %628 : vector<1x128xf32> to vector<16x128xf32>
    %630 = arith.mulf %629, %554 : vector<16x128xf32>
    %631 = arith.mulf %619, %627 : vector<1x128xf32>
    %632 = vector.broadcast %631 : vector<1x128xf32> to vector<16x128xf32>
    %633 = arith.mulf %632, %555 : vector<16x128xf32>
    %634 = arith.addf %630, %633 : vector<16x128xf32>
    %635 = arith.mulf %621, %627 : vector<1x128xf32>
    %636 = vector.broadcast %635 : vector<1x128xf32> to vector<16x128xf32>
    %637 = arith.mulf %636, %556 : vector<16x128xf32>
    %638 = arith.addf %634, %637 : vector<16x128xf32>
    %639 = arith.mulf %623, %627 : vector<1x128xf32>
    %640 = vector.broadcast %639 : vector<1x128xf32> to vector<16x128xf32>
    %641 = arith.mulf %640, %557 : vector<16x128xf32>
    %642 = arith.addf %638, %641 : vector<16x128xf32>
    %c0_169 = arith.constant 0 : index
    %c128_170 = arith.constant 128 : index
    %643 = vector.load %arg17[%c0_169, %c128_170] : memref<16x512xf32, #tpu.memory_space<vmem>>, vector<16x128xf32>
    tpu.vector_store %arg17[%c0_169, %c128_170], %642 {strides = array<i32>} : memref<16x512xf32, #tpu.memory_space<vmem>>, vector<16x128xf32>,
    %644 = arith.mulf %548, %550 : vector<16x128xf32>
    %cst_171 = arith.constant dense<0.000000e+00> : vector<128xf32>
    %645 = vector.multi_reduction <add>, %644, %cst_171 [0] : vector<16x128xf32> to vector<128xf32>
    %646 = vector.shape_cast %645 : vector<128xf32> to vector<1x128xf32>
    %647 = arith.mulf %548, %551 : vector<16x128xf32>
    %cst_172 = arith.constant dense<0.000000e+00> : vector<128xf32>
    %648 = vector.multi_reduction <add>, %647, %cst_172 [0] : vector<16x128xf32> to vector<128xf32>
    %649 = vector.shape_cast %648 : vector<128xf32> to vector<1x128xf32>
    %650 = arith.mulf %548, %552 : vector<16x128xf32>
    %cst_173 = arith.constant dense<0.000000e+00> : vector<128xf32>
    %651 = vector.multi_reduction <add>, %650, %cst_173 [0] : vector<16x128xf32> to vector<128xf32>
    %652 = vector.shape_cast %651 : vector<128xf32> to vector<1x128xf32>
    %653 = arith.mulf %548, %553 : vector<16x128xf32>
    %cst_174 = arith.constant dense<0.000000e+00> : vector<128xf32>
    %654 = vector.multi_reduction <add>, %653, %cst_174 [0] : vector<16x128xf32> to vector<128xf32>
    %655 = vector.shape_cast %654 : vector<128xf32> to vector<1x128xf32>
    %656 = arith.maximumf %646, %649 : vector<1x128xf32>
    %657 = arith.maximumf %656, %652 : vector<1x128xf32>
    %658 = arith.maximumf %657, %655 : vector<1x128xf32>
    %659 = arith.subf %646, %658 : vector<1x128xf32>
    %660 = math.exp %659 : vector<1x128xf32>
    %661 = arith.subf %649, %658 : vector<1x128xf32>
    %662 = math.exp %661 : vector<1x128xf32>
    %663 = arith.subf %652, %658 : vector<1x128xf32>
    %664 = math.exp %663 : vector<1x128xf32>
    %665 = arith.subf %655, %658 : vector<1x128xf32>
    %666 = math.exp %665 : vector<1x128xf32>
    %667 = arith.addf %660, %662 : vector<1x128xf32>
    %668 = arith.addf %667, %664 : vector<1x128xf32>
    %669 = arith.addf %668, %666 : vector<1x128xf32>
    %670 = tpu.reciprocal %669 : vector<1x128xf32> -> vector<1x128xf32>
    %671 = arith.mulf %660, %670 : vector<1x128xf32>
    %672 = vector.broadcast %671 : vector<1x128xf32> to vector<16x128xf32>
    %673 = arith.mulf %672, %554 : vector<16x128xf32>
    %674 = arith.mulf %662, %670 : vector<1x128xf32>
    %675 = vector.broadcast %674 : vector<1x128xf32> to vector<16x128xf32>
    %676 = arith.mulf %675, %555 : vector<16x128xf32>
    %677 = arith.addf %673, %676 : vector<16x128xf32>
    %678 = arith.mulf %664, %670 : vector<1x128xf32>
    %679 = vector.broadcast %678 : vector<1x128xf32> to vector<16x128xf32>
    %680 = arith.mulf %679, %556 : vector<16x128xf32>
    %681 = arith.addf %677, %680 : vector<16x128xf32>
    %682 = arith.mulf %666, %670 : vector<1x128xf32>
    %683 = vector.broadcast %682 : vector<1x128xf32> to vector<16x128xf32>
    %684 = arith.mulf %683, %557 : vector<16x128xf32>
    %685 = arith.addf %681, %684 : vector<16x128xf32>
    %c0_175 = arith.constant 0 : index
    %c256_176 = arith.constant 256 : index
    %686 = vector.load %arg17[%c0_175, %c256_176] : memref<16x512xf32, #tpu.memory_space<vmem>>, vector<16x128xf32>
    tpu.vector_store %arg17[%c0_175, %c256_176], %685 {strides = array<i32>} : memref<16x512xf32, #tpu.memory_space<vmem>>, vector<16x128xf32>,
    %687 = arith.mulf %549, %550 : vector<16x128xf32>
    %cst_177 = arith.constant dense<0.000000e+00> : vector<128xf32>
    %688 = vector.multi_reduction <add>, %687, %cst_177 [0] : vector<16x128xf32> to vector<128xf32>
    %689 = vector.shape_cast %688 : vector<128xf32> to vector<1x128xf32>
    %690 = arith.mulf %549, %551 : vector<16x128xf32>
    %cst_178 = arith.constant dense<0.000000e+00> : vector<128xf32>
    %691 = vector.multi_reduction <add>, %690, %cst_178 [0] : vector<16x128xf32> to vector<128xf32>
    %692 = vector.shape_cast %691 : vector<128xf32> to vector<1x128xf32>
    %693 = arith.mulf %549, %552 : vector<16x128xf32>
    %cst_179 = arith.constant dense<0.000000e+00> : vector<128xf32>
    %694 = vector.multi_reduction <add>, %693, %cst_179 [0] : vector<16x128xf32> to vector<128xf32>
    %695 = vector.shape_cast %694 : vector<128xf32> to vector<1x128xf32>
    %696 = arith.mulf %549, %553 : vector<16x128xf32>
    %cst_180 = arith.constant dense<0.000000e+00> : vector<128xf32>
    %697 = vector.multi_reduction <add>, %696, %cst_180 [0] : vector<16x128xf32> to vector<128xf32>
    %698 = vector.shape_cast %697 : vector<128xf32> to vector<1x128xf32>
    %699 = arith.maximumf %689, %692 : vector<1x128xf32>
    %700 = arith.maximumf %699, %695 : vector<1x128xf32>
    %701 = arith.maximumf %700, %698 : vector<1x128xf32>
    %702 = arith.subf %689, %701 : vector<1x128xf32>
    %703 = math.exp %702 : vector<1x128xf32>
    %704 = arith.subf %692, %701 : vector<1x128xf32>
    %705 = math.exp %704 : vector<1x128xf32>
    %706 = arith.subf %695, %701 : vector<1x128xf32>
    %707 = math.exp %706 : vector<1x128xf32>
    %708 = arith.subf %698, %701 : vector<1x128xf32>
    %709 = math.exp %708 : vector<1x128xf32>
    %710 = arith.addf %703, %705 : vector<1x128xf32>
    %711 = arith.addf %710, %707 : vector<1x128xf32>
    %712 = arith.addf %711, %709 : vector<1x128xf32>
    %713 = tpu.reciprocal %712 : vector<1x128xf32> -> vector<1x128xf32>
    %714 = arith.mulf %703, %713 : vector<1x128xf32>
    %715 = vector.broadcast %714 : vector<1x128xf32> to vector<16x128xf32>
    %716 = arith.mulf %715, %554 : vector<16x128xf32>
    %717 = arith.mulf %705, %713 : vector<1x128xf32>
    %718 = vector.broadcast %717 : vector<1x128xf32> to vector<16x128xf32>
    %719 = arith.mulf %718, %555 : vector<16x128xf32>
    %720 = arith.addf %716, %719 : vector<16x128xf32>
    %721 = arith.mulf %707, %713 : vector<1x128xf32>
    %722 = vector.broadcast %721 : vector<1x128xf32> to vector<16x128xf32>
    %723 = arith.mulf %722, %556 : vector<16x128xf32>
    %724 = arith.addf %720, %723 : vector<16x128xf32>
    %725 = arith.mulf %709, %713 : vector<1x128xf32>
    %726 = vector.broadcast %725 : vector<1x128xf32> to vector<16x128xf32>
    %727 = arith.mulf %726, %557 : vector<16x128xf32>
    %728 = arith.addf %724, %727 : vector<16x128xf32>
    %c0_181 = arith.constant 0 : index
    %c384_182 = arith.constant 384 : index
    %729 = vector.load %arg17[%c0_181, %c384_182] : memref<16x512xf32, #tpu.memory_space<vmem>>, vector<16x128xf32>
    tpu.vector_store %arg17[%c0_181, %c384_182], %728 {strides = array<i32>} : memref<16x512xf32, #tpu.memory_space<vmem>>, vector<16x128xf32>,
    %c2_183 = arith.constant 2 : index
    %c0_184 = arith.constant 0 : index
    %c0_185 = arith.constant 0 : index
    %730 = vector.load %arg8[%c2_183, %c0_184, %c0_185] : memref<4x16x16xbf16, #tpu.memory_space<vmem>>, vector<1x16x16xbf16>
    %731 = vector.shape_cast %730 : vector<1x16x16xbf16> to vector<16x16xbf16>
    %c0_186 = arith.constant 0 : index
    %c0_187 = arith.constant 0 : index
    %732 = vector.load %arg17[%c0_186, %c0_187] : memref<16x512xf32, #tpu.memory_space<vmem>>, vector<16x512xf32>
    %733 = arith.truncf %732 : vector<16x512xf32> to vector<16x512xbf16>
    %cst_188 = arith.constant dense<0.000000e+00> : vector<16x512xf32>
    %734 = tpu.matmul %731, %733, %cst_188 {dimension_numbers = #tpu.dot_dimension_numbers<[1], [0], [0], [1], [0, 0, 1, 1], [], []>} : vector<16x16xbf16>, vector<16x512xbf16>, vector<16x512xf32> -> vector<16x512xf32>
    %c2_189 = arith.constant 2 : index
    %c0_190 = arith.constant 0 : index
    %c0_191 = arith.constant 0 : index
    %735 = vector.load %arg9[%c2_189, %c0_190, %c0_191] : memref<4x16x1xf32, #tpu.memory_space<vmem>>, vector<1x16x1xf32>
    %736 = vector.shape_cast %735 : vector<1x16x1xf32> to vector<16x1xf32>
    %737 = vector.broadcast %736 : vector<16x1xf32> to vector<16x512xf32>
    %738 = arith.addf %734, %737 : vector<16x512xf32>
    %c2_192 = arith.constant 2 : index
    %c0_193 = arith.constant 0 : index
    %c0_194 = arith.constant 0 : index
    %739 = vector.load %arg10[%c2_192, %c0_193, %c0_194] : memref<4x16x16xbf16, #tpu.memory_space<vmem>>, vector<1x16x16xbf16>
    %740 = vector.shape_cast %739 : vector<1x16x16xbf16> to vector<16x16xbf16>
    %741 = arith.truncf %738 : vector<16x512xf32> to vector<16x512xbf16>
    %cst_195 = arith.constant dense<0.000000e+00> : vector<16x512xf32>
    %742 = tpu.matmul %740, %741, %cst_195 {dimension_numbers = #tpu.dot_dimension_numbers<[1], [0], [0], [1], [0, 0, 1, 1], [], []>} : vector<16x16xbf16>, vector<16x512xbf16>, vector<16x512xf32> -> vector<16x512xf32>
    %c2_196 = arith.constant 2 : index
    %c0_197 = arith.constant 0 : index
    %c0_198 = arith.constant 0 : index
    %743 = vector.load %arg11[%c2_196, %c0_197, %c0_198] : memref<4x16x1xf32, #tpu.memory_space<vmem>>, vector<1x16x1xf32>
    %744 = vector.shape_cast %743 : vector<1x16x1xf32> to vector<16x1xf32>
    %745 = vector.broadcast %744 : vector<16x1xf32> to vector<16x512xf32>
    %746 = arith.addf %742, %745 : vector<16x512xf32>
    %cst_199 = arith.constant 5.000000e-01 : f32
    %747 = vector.broadcast %cst_199 : f32 to vector<16x512xf32>
    %748 = arith.mulf %747, %746 : vector<16x512xf32>
    %cst_200 = arith.constant 0.707106769 : f32
    %749 = vector.broadcast %cst_200 : f32 to vector<16x512xf32>
    %750 = arith.mulf %746, %749 : vector<16x512xf32>
    %751 = math.erf %750 : vector<16x512xf32>
    %cst_201 = arith.constant 1.000000e+00 : f32
    %752 = vector.broadcast %cst_201 : f32 to vector<16x512xf32>
    %753 = arith.addf %752, %751 : vector<16x512xf32>
    %754 = arith.mulf %748, %753 : vector<16x512xf32>
    %c2_202 = arith.constant 2 : index
    %c0_203 = arith.constant 0 : index
    %c0_204 = arith.constant 0 : index
    %755 = vector.load %arg12[%c2_202, %c0_203, %c0_204] : memref<4x16x16xbf16, #tpu.memory_space<vmem>>, vector<1x16x16xbf16>
    %756 = vector.shape_cast %755 : vector<1x16x16xbf16> to vector<16x16xbf16>
    %757 = arith.truncf %754 : vector<16x512xf32> to vector<16x512xbf16>
    %cst_205 = arith.constant dense<0.000000e+00> : vector<16x512xf32>
    %758 = tpu.matmul %756, %757, %cst_205 {dimension_numbers = #tpu.dot_dimension_numbers<[1], [0], [0], [1], [0, 0, 1, 1], [], []>} : vector<16x16xbf16>, vector<16x512xbf16>, vector<16x512xf32> -> vector<16x512xf32>
    %c2_206 = arith.constant 2 : index
    %c0_207 = arith.constant 0 : index
    %c0_208 = arith.constant 0 : index
    %759 = vector.load %arg13[%c2_206, %c0_207, %c0_208] : memref<4x16x1xf32, #tpu.memory_space<vmem>>, vector<1x16x1xf32>
    %760 = vector.shape_cast %759 : vector<1x16x1xf32> to vector<16x1xf32>
    %761 = vector.broadcast %760 : vector<16x1xf32> to vector<16x512xf32>
    %762 = arith.addf %758, %761 : vector<16x512xf32>
    %763 = arith.addf %738, %762 : vector<16x512xf32>
    %c3_209 = arith.constant 3 : index
    %c0_210 = arith.constant 0 : index
    %c0_211 = arith.constant 0 : index
    %764 = vector.load %arg6[%c3_209, %c0_210, %c0_211] : memref<4x48x16xbf16, #tpu.memory_space<vmem>>, vector<1x48x16xbf16>
    %765 = vector.shape_cast %764 : vector<1x48x16xbf16> to vector<48x16xbf16>
    %766 = arith.truncf %763 : vector<16x512xf32> to vector<16x512xbf16>
    %cst_212 = arith.constant dense<0.000000e+00> : vector<48x512xf32>
    %767 = tpu.matmul %765, %766, %cst_212 {dimension_numbers = #tpu.dot_dimension_numbers<[1], [0], [0], [1], [0, 0, 1, 1], [], []>} : vector<48x16xbf16>, vector<16x512xbf16>, vector<48x512xf32> -> vector<48x512xf32>
    %c3_213 = arith.constant 3 : index
    %c0_214 = arith.constant 0 : index
    %c0_215 = arith.constant 0 : index
    %768 = vector.load %arg7[%c3_213, %c0_214, %c0_215] : memref<4x48x1xf32, #tpu.memory_space<vmem>>, vector<1x48x1xf32>
    %769 = vector.shape_cast %768 : vector<1x48x1xf32> to vector<48x1xf32>
    %770 = vector.broadcast %769 : vector<48x1xf32> to vector<48x512xf32>
    %771 = arith.addf %767, %770 : vector<48x512xf32>
    %772 = vector.extract_strided_slice %771 {offsets = [0, 0], sizes = [16, 512], strides = [1, 1]} : vector<48x512xf32> to vector<16x512xf32>
    %773 = vector.extract_strided_slice %771 {offsets = [16, 0], sizes = [16, 512], strides = [1, 1]} : vector<48x512xf32> to vector<16x512xf32>
    %774 = vector.extract_strided_slice %771 {offsets = [32, 0], sizes = [16, 512], strides = [1, 1]} : vector<48x512xf32> to vector<16x512xf32>
    %775 = vector.extract_strided_slice %772 {offsets = [0, 0], sizes = [16, 128], strides = [1, 1]} : vector<16x512xf32> to vector<16x128xf32>
    %776 = vector.extract_strided_slice %772 {offsets = [0, 128], sizes = [16, 128], strides = [1, 1]} : vector<16x512xf32> to vector<16x128xf32>
    %777 = vector.extract_strided_slice %772 {offsets = [0, 256], sizes = [16, 128], strides = [1, 1]} : vector<16x512xf32> to vector<16x128xf32>
    %778 = vector.extract_strided_slice %772 {offsets = [0, 384], sizes = [16, 128], strides = [1, 1]} : vector<16x512xf32> to vector<16x128xf32>
    %779 = vector.extract_strided_slice %773 {offsets = [0, 0], sizes = [16, 128], strides = [1, 1]} : vector<16x512xf32> to vector<16x128xf32>
    %780 = vector.extract_strided_slice %773 {offsets = [0, 128], sizes = [16, 128], strides = [1, 1]} : vector<16x512xf32> to vector<16x128xf32>
    %781 = vector.extract_strided_slice %773 {offsets = [0, 256], sizes = [16, 128], strides = [1, 1]} : vector<16x512xf32> to vector<16x128xf32>
    %782 = vector.extract_strided_slice %773 {offsets = [0, 384], sizes = [16, 128], strides = [1, 1]} : vector<16x512xf32> to vector<16x128xf32>
    %783 = vector.extract_strided_slice %774 {offsets = [0, 0], sizes = [16, 128], strides = [1, 1]} : vector<16x512xf32> to vector<16x128xf32>
    %784 = vector.extract_strided_slice %774 {offsets = [0, 128], sizes = [16, 128], strides = [1, 1]} : vector<16x512xf32> to vector<16x128xf32>
    %785 = vector.extract_strided_slice %774 {offsets = [0, 256], sizes = [16, 128], strides = [1, 1]} : vector<16x512xf32> to vector<16x128xf32>
    %786 = vector.extract_strided_slice %774 {offsets = [0, 384], sizes = [16, 128], strides = [1, 1]} : vector<16x512xf32> to vector<16x128xf32>
    %787 = arith.mulf %775, %779 : vector<16x128xf32>
    %cst_216 = arith.constant dense<0.000000e+00> : vector<128xf32>
    %788 = vector.multi_reduction <add>, %787, %cst_216 [0] : vector<16x128xf32> to vector<128xf32>
    %789 = vector.shape_cast %788 : vector<128xf32> to vector<1x128xf32>
    %790 = arith.mulf %775, %780 : vector<16x128xf32>
    %cst_217 = arith.constant dense<0.000000e+00> : vector<128xf32>
    %791 = vector.multi_reduction <add>, %790, %cst_217 [0] : vector<16x128xf32> to vector<128xf32>
    %792 = vector.shape_cast %791 : vector<128xf32> to vector<1x128xf32>
    %793 = arith.mulf %775, %781 : vector<16x128xf32>
    %cst_218 = arith.constant dense<0.000000e+00> : vector<128xf32>
    %794 = vector.multi_reduction <add>, %793, %cst_218 [0] : vector<16x128xf32> to vector<128xf32>
    %795 = vector.shape_cast %794 : vector<128xf32> to vector<1x128xf32>
    %796 = arith.mulf %775, %782 : vector<16x128xf32>
    %cst_219 = arith.constant dense<0.000000e+00> : vector<128xf32>
    %797 = vector.multi_reduction <add>, %796, %cst_219 [0] : vector<16x128xf32> to vector<128xf32>
    %798 = vector.shape_cast %797 : vector<128xf32> to vector<1x128xf32>
    %799 = arith.maximumf %789, %792 : vector<1x128xf32>
    %800 = arith.maximumf %799, %795 : vector<1x128xf32>
    %801 = arith.maximumf %800, %798 : vector<1x128xf32>
    %802 = arith.subf %789, %801 : vector<1x128xf32>
    %803 = math.exp %802 : vector<1x128xf32>
    %804 = arith.subf %792, %801 : vector<1x128xf32>
    %805 = math.exp %804 : vector<1x128xf32>
    %806 = arith.subf %795, %801 : vector<1x128xf32>
    %807 = math.exp %806 : vector<1x128xf32>
    %808 = arith.subf %798, %801 : vector<1x128xf32>
    %809 = math.exp %808 : vector<1x128xf32>
    %810 = arith.addf %803, %805 : vector<1x128xf32>
    %811 = arith.addf %810, %807 : vector<1x128xf32>
    %812 = arith.addf %811, %809 : vector<1x128xf32>
    %813 = tpu.reciprocal %812 : vector<1x128xf32> -> vector<1x128xf32>
    %814 = arith.mulf %803, %813 : vector<1x128xf32>
    %815 = vector.broadcast %814 : vector<1x128xf32> to vector<16x128xf32>
    %816 = arith.mulf %815, %783 : vector<16x128xf32>
    %817 = arith.mulf %805, %813 : vector<1x128xf32>
    %818 = vector.broadcast %817 : vector<1x128xf32> to vector<16x128xf32>
    %819 = arith.mulf %818, %784 : vector<16x128xf32>
    %820 = arith.addf %816, %819 : vector<16x128xf32>
    %821 = arith.mulf %807, %813 : vector<1x128xf32>
    %822 = vector.broadcast %821 : vector<1x128xf32> to vector<16x128xf32>
    %823 = arith.mulf %822, %785 : vector<16x128xf32>
    %824 = arith.addf %820, %823 : vector<16x128xf32>
    %825 = arith.mulf %809, %813 : vector<1x128xf32>
    %826 = vector.broadcast %825 : vector<1x128xf32> to vector<16x128xf32>
    %827 = arith.mulf %826, %786 : vector<16x128xf32>
    %828 = arith.addf %824, %827 : vector<16x128xf32>
    %c0_220 = arith.constant 0 : index
    %c0_221 = arith.constant 0 : index
    %829 = vector.load %arg17[%c0_220, %c0_221] : memref<16x512xf32, #tpu.memory_space<vmem>>, vector<16x128xf32>
    tpu.vector_store %arg17[%c0_220, %c0_221], %828 {strides = array<i32>} : memref<16x512xf32, #tpu.memory_space<vmem>>, vector<16x128xf32>,
    %830 = arith.mulf %776, %779 : vector<16x128xf32>
    %cst_222 = arith.constant dense<0.000000e+00> : vector<128xf32>
    %831 = vector.multi_reduction <add>, %830, %cst_222 [0] : vector<16x128xf32> to vector<128xf32>
    %832 = vector.shape_cast %831 : vector<128xf32> to vector<1x128xf32>
    %833 = arith.mulf %776, %780 : vector<16x128xf32>
    %cst_223 = arith.constant dense<0.000000e+00> : vector<128xf32>
    %834 = vector.multi_reduction <add>, %833, %cst_223 [0] : vector<16x128xf32> to vector<128xf32>
    %835 = vector.shape_cast %834 : vector<128xf32> to vector<1x128xf32>
    %836 = arith.mulf %776, %781 : vector<16x128xf32>
    %cst_224 = arith.constant dense<0.000000e+00> : vector<128xf32>
    %837 = vector.multi_reduction <add>, %836, %cst_224 [0] : vector<16x128xf32> to vector<128xf32>
    %838 = vector.shape_cast %837 : vector<128xf32> to vector<1x128xf32>
    %839 = arith.mulf %776, %782 : vector<16x128xf32>
    %cst_225 = arith.constant dense<0.000000e+00> : vector<128xf32>
    %840 = vector.multi_reduction <add>, %839, %cst_225 [0] : vector<16x128xf32> to vector<128xf32>
    %841 = vector.shape_cast %840 : vector<128xf32> to vector<1x128xf32>
    %842 = arith.maximumf %832, %835 : vector<1x128xf32>
    %843 = arith.maximumf %842, %838 : vector<1x128xf32>
    %844 = arith.maximumf %843, %841 : vector<1x128xf32>
    %845 = arith.subf %832, %844 : vector<1x128xf32>
    %846 = math.exp %845 : vector<1x128xf32>
    %847 = arith.subf %835, %844 : vector<1x128xf32>
    %848 = math.exp %847 : vector<1x128xf32>
    %849 = arith.subf %838, %844 : vector<1x128xf32>
    %850 = math.exp %849 : vector<1x128xf32>
    %851 = arith.subf %841, %844 : vector<1x128xf32>
    %852 = math.exp %851 : vector<1x128xf32>
    %853 = arith.addf %846, %848 : vector<1x128xf32>
    %854 = arith.addf %853, %850 : vector<1x128xf32>
    %855 = arith.addf %854, %852 : vector<1x128xf32>
    %856 = tpu.reciprocal %855 : vector<1x128xf32> -> vector<1x128xf32>
    %857 = arith.mulf %846, %856 : vector<1x128xf32>
    %858 = vector.broadcast %857 : vector<1x128xf32> to vector<16x128xf32>
    %859 = arith.mulf %858, %783 : vector<16x128xf32>
    %860 = arith.mulf %848, %856 : vector<1x128xf32>
    %861 = vector.broadcast %860 : vector<1x128xf32> to vector<16x128xf32>
    %862 = arith.mulf %861, %784 : vector<16x128xf32>
    %863 = arith.addf %859, %862 : vector<16x128xf32>
    %864 = arith.mulf %850, %856 : vector<1x128xf32>
    %865 = vector.broadcast %864 : vector<1x128xf32> to vector<16x128xf32>
    %866 = arith.mulf %865, %785 : vector<16x128xf32>
    %867 = arith.addf %863, %866 : vector<16x128xf32>
    %868 = arith.mulf %852, %856 : vector<1x128xf32>
    %869 = vector.broadcast %868 : vector<1x128xf32> to vector<16x128xf32>
    %870 = arith.mulf %869, %786 : vector<16x128xf32>
    %871 = arith.addf %867, %870 : vector<16x128xf32>
    %c0_226 = arith.constant 0 : index
    %c128_227 = arith.constant 128 : index
    %872 = vector.load %arg17[%c0_226, %c128_227] : memref<16x512xf32, #tpu.memory_space<vmem>>, vector<16x128xf32>
    tpu.vector_store %arg17[%c0_226, %c128_227], %871 {strides = array<i32>} : memref<16x512xf32, #tpu.memory_space<vmem>>, vector<16x128xf32>,
    %873 = arith.mulf %777, %779 : vector<16x128xf32>
    %cst_228 = arith.constant dense<0.000000e+00> : vector<128xf32>
    %874 = vector.multi_reduction <add>, %873, %cst_228 [0] : vector<16x128xf32> to vector<128xf32>
    %875 = vector.shape_cast %874 : vector<128xf32> to vector<1x128xf32>
    %876 = arith.mulf %777, %780 : vector<16x128xf32>
    %cst_229 = arith.constant dense<0.000000e+00> : vector<128xf32>
    %877 = vector.multi_reduction <add>, %876, %cst_229 [0] : vector<16x128xf32> to vector<128xf32>
    %878 = vector.shape_cast %877 : vector<128xf32> to vector<1x128xf32>
    %879 = arith.mulf %777, %781 : vector<16x128xf32>
    %cst_230 = arith.constant dense<0.000000e+00> : vector<128xf32>
    %880 = vector.multi_reduction <add>, %879, %cst_230 [0] : vector<16x128xf32> to vector<128xf32>
    %881 = vector.shape_cast %880 : vector<128xf32> to vector<1x128xf32>
    %882 = arith.mulf %777, %782 : vector<16x128xf32>
    %cst_231 = arith.constant dense<0.000000e+00> : vector<128xf32>
    %883 = vector.multi_reduction <add>, %882, %cst_231 [0] : vector<16x128xf32> to vector<128xf32>
    %884 = vector.shape_cast %883 : vector<128xf32> to vector<1x128xf32>
    %885 = arith.maximumf %875, %878 : vector<1x128xf32>
    %886 = arith.maximumf %885, %881 : vector<1x128xf32>
    %887 = arith.maximumf %886, %884 : vector<1x128xf32>
    %888 = arith.subf %875, %887 : vector<1x128xf32>
    %889 = math.exp %888 : vector<1x128xf32>
    %890 = arith.subf %878, %887 : vector<1x128xf32>
    %891 = math.exp %890 : vector<1x128xf32>
    %892 = arith.subf %881, %887 : vector<1x128xf32>
    %893 = math.exp %892 : vector<1x128xf32>
    %894 = arith.subf %884, %887 : vector<1x128xf32>
    %895 = math.exp %894 : vector<1x128xf32>
    %896 = arith.addf %889, %891 : vector<1x128xf32>
    %897 = arith.addf %896, %893 : vector<1x128xf32>
    %898 = arith.addf %897, %895 : vector<1x128xf32>
    %899 = tpu.reciprocal %898 : vector<1x128xf32> -> vector<1x128xf32>
    %900 = arith.mulf %889, %899 : vector<1x128xf32>
    %901 = vector.broadcast %900 : vector<1x128xf32> to vector<16x128xf32>
    %902 = arith.mulf %901, %783 : vector<16x128xf32>
    %903 = arith.mulf %891, %899 : vector<1x128xf32>
    %904 = vector.broadcast %903 : vector<1x128xf32> to vector<16x128xf32>
    %905 = arith.mulf %904, %784 : vector<16x128xf32>
    %906 = arith.addf %902, %905 : vector<16x128xf32>
    %907 = arith.mulf %893, %899 : vector<1x128xf32>
    %908 = vector.broadcast %907 : vector<1x128xf32> to vector<16x128xf32>
    %909 = arith.mulf %908, %785 : vector<16x128xf32>
    %910 = arith.addf %906, %909 : vector<16x128xf32>
    %911 = arith.mulf %895, %899 : vector<1x128xf32>
    %912 = vector.broadcast %911 : vector<1x128xf32> to vector<16x128xf32>
    %913 = arith.mulf %912, %786 : vector<16x128xf32>
    %914 = arith.addf %910, %913 : vector<16x128xf32>
    %c0_232 = arith.constant 0 : index
    %c256_233 = arith.constant 256 : index
    %915 = vector.load %arg17[%c0_232, %c256_233] : memref<16x512xf32, #tpu.memory_space<vmem>>, vector<16x128xf32>
    tpu.vector_store %arg17[%c0_232, %c256_233], %914 {strides = array<i32>} : memref<16x512xf32, #tpu.memory_space<vmem>>, vector<16x128xf32>,
    %916 = arith.mulf %778, %779 : vector<16x128xf32>
    %cst_234 = arith.constant dense<0.000000e+00> : vector<128xf32>
    %917 = vector.multi_reduction <add>, %916, %cst_234 [0] : vector<16x128xf32> to vector<128xf32>
    %918 = vector.shape_cast %917 : vector<128xf32> to vector<1x128xf32>
    %919 = arith.mulf %778, %780 : vector<16x128xf32>
    %cst_235 = arith.constant dense<0.000000e+00> : vector<128xf32>
    %920 = vector.multi_reduction <add>, %919, %cst_235 [0] : vector<16x128xf32> to vector<128xf32>
    %921 = vector.shape_cast %920 : vector<128xf32> to vector<1x128xf32>
    %922 = arith.mulf %778, %781 : vector<16x128xf32>
    %cst_236 = arith.constant dense<0.000000e+00> : vector<128xf32>
    %923 = vector.multi_reduction <add>, %922, %cst_236 [0] : vector<16x128xf32> to vector<128xf32>
    %924 = vector.shape_cast %923 : vector<128xf32> to vector<1x128xf32>
    %925 = arith.mulf %778, %782 : vector<16x128xf32>
    %cst_237 = arith.constant dense<0.000000e+00> : vector<128xf32>
    %926 = vector.multi_reduction <add>, %925, %cst_237 [0] : vector<16x128xf32> to vector<128xf32>
    %927 = vector.shape_cast %926 : vector<128xf32> to vector<1x128xf32>
    %928 = arith.maximumf %918, %921 : vector<1x128xf32>
    %929 = arith.maximumf %928, %924 : vector<1x128xf32>
    %930 = arith.maximumf %929, %927 : vector<1x128xf32>
    %931 = arith.subf %918, %930 : vector<1x128xf32>
    %932 = math.exp %931 : vector<1x128xf32>
    %933 = arith.subf %921, %930 : vector<1x128xf32>
    %934 = math.exp %933 : vector<1x128xf32>
    %935 = arith.subf %924, %930 : vector<1x128xf32>
    %936 = math.exp %935 : vector<1x128xf32>
    %937 = arith.subf %927, %930 : vector<1x128xf32>
    %938 = math.exp %937 : vector<1x128xf32>
    %939 = arith.addf %932, %934 : vector<1x128xf32>
    %940 = arith.addf %939, %936 : vector<1x128xf32>
    %941 = arith.addf %940, %938 : vector<1x128xf32>
    %942 = tpu.reciprocal %941 : vector<1x128xf32> -> vector<1x128xf32>
    %943 = arith.mulf %932, %942 : vector<1x128xf32>
    %944 = vector.broadcast %943 : vector<1x128xf32> to vector<16x128xf32>
    %945 = arith.mulf %944, %783 : vector<16x128xf32>
    %946 = arith.mulf %934, %942 : vector<1x128xf32>
    %947 = vector.broadcast %946 : vector<1x128xf32> to vector<16x128xf32>
    %948 = arith.mulf %947, %784 : vector<16x128xf32>
    %949 = arith.addf %945, %948 : vector<16x128xf32>
    %950 = arith.mulf %936, %942 : vector<1x128xf32>
    %951 = vector.broadcast %950 : vector<1x128xf32> to vector<16x128xf32>
    %952 = arith.mulf %951, %785 : vector<16x128xf32>
    %953 = arith.addf %949, %952 : vector<16x128xf32>
    %954 = arith.mulf %938, %942 : vector<1x128xf32>
    %955 = vector.broadcast %954 : vector<1x128xf32> to vector<16x128xf32>
    %956 = arith.mulf %955, %786 : vector<16x128xf32>
    %957 = arith.addf %953, %956 : vector<16x128xf32>
    %c0_238 = arith.constant 0 : index
    %c384_239 = arith.constant 384 : index
    %958 = vector.load %arg17[%c0_238, %c384_239] : memref<16x512xf32, #tpu.memory_space<vmem>>, vector<16x128xf32>
    tpu.vector_store %arg17[%c0_238, %c384_239], %957 {strides = array<i32>} : memref<16x512xf32, #tpu.memory_space<vmem>>, vector<16x128xf32>,
    %c3_240 = arith.constant 3 : index
    %c0_241 = arith.constant 0 : index
    %c0_242 = arith.constant 0 : index
    %959 = vector.load %arg8[%c3_240, %c0_241, %c0_242] : memref<4x16x16xbf16, #tpu.memory_space<vmem>>, vector<1x16x16xbf16>
    %960 = vector.shape_cast %959 : vector<1x16x16xbf16> to vector<16x16xbf16>
    %c0_243 = arith.constant 0 : index
    %c0_244 = arith.constant 0 : index
    %961 = vector.load %arg17[%c0_243, %c0_244] : memref<16x512xf32, #tpu.memory_space<vmem>>, vector<16x512xf32>
    %962 = arith.truncf %961 : vector<16x512xf32> to vector<16x512xbf16>
    %cst_245 = arith.constant dense<0.000000e+00> : vector<16x512xf32>
    %963 = tpu.matmul %960, %962, %cst_245 {dimension_numbers = #tpu.dot_dimension_numbers<[1], [0], [0], [1], [0, 0, 1, 1], [], []>} : vector<16x16xbf16>, vector<16x512xbf16>, vector<16x512xf32> -> vector<16x512xf32>
    %c3_246 = arith.constant 3 : index
    %c0_247 = arith.constant 0 : index
    %c0_248 = arith.constant 0 : index
    %964 = vector.load %arg9[%c3_246, %c0_247, %c0_248] : memref<4x16x1xf32, #tpu.memory_space<vmem>>, vector<1x16x1xf32>
    %965 = vector.shape_cast %964 : vector<1x16x1xf32> to vector<16x1xf32>
    %966 = vector.broadcast %965 : vector<16x1xf32> to vector<16x512xf32>
    %967 = arith.addf %963, %966 : vector<16x512xf32>
    %c3_249 = arith.constant 3 : index
    %c0_250 = arith.constant 0 : index
    %c0_251 = arith.constant 0 : index
    %968 = vector.load %arg10[%c3_249, %c0_250, %c0_251] : memref<4x16x16xbf16, #tpu.memory_space<vmem>>, vector<1x16x16xbf16>
    %969 = vector.shape_cast %968 : vector<1x16x16xbf16> to vector<16x16xbf16>
    %970 = arith.truncf %967 : vector<16x512xf32> to vector<16x512xbf16>
    %cst_252 = arith.constant dense<0.000000e+00> : vector<16x512xf32>
    %971 = tpu.matmul %969, %970, %cst_252 {dimension_numbers = #tpu.dot_dimension_numbers<[1], [0], [0], [1], [0, 0, 1, 1], [], []>} : vector<16x16xbf16>, vector<16x512xbf16>, vector<16x512xf32> -> vector<16x512xf32>
    %c3_253 = arith.constant 3 : index
    %c0_254 = arith.constant 0 : index
    %c0_255 = arith.constant 0 : index
    %972 = vector.load %arg11[%c3_253, %c0_254, %c0_255] : memref<4x16x1xf32, #tpu.memory_space<vmem>>, vector<1x16x1xf32>
    %973 = vector.shape_cast %972 : vector<1x16x1xf32> to vector<16x1xf32>
    %974 = vector.broadcast %973 : vector<16x1xf32> to vector<16x512xf32>
    %975 = arith.addf %971, %974 : vector<16x512xf32>
    %cst_256 = arith.constant 5.000000e-01 : f32
    %976 = vector.broadcast %cst_256 : f32 to vector<16x512xf32>
    %977 = arith.mulf %976, %975 : vector<16x512xf32>
    %cst_257 = arith.constant 0.707106769 : f32
    %978 = vector.broadcast %cst_257 : f32 to vector<16x512xf32>
    %979 = arith.mulf %975, %978 : vector<16x512xf32>
    %980 = math.erf %979 : vector<16x512xf32>
    %cst_258 = arith.constant 1.000000e+00 : f32
    %981 = vector.broadcast %cst_258 : f32 to vector<16x512xf32>
    %982 = arith.addf %981, %980 : vector<16x512xf32>
    %983 = arith.mulf %977, %982 : vector<16x512xf32>
    %c3_259 = arith.constant 3 : index
    %c0_260 = arith.constant 0 : index
    %c0_261 = arith.constant 0 : index
    %984 = vector.load %arg12[%c3_259, %c0_260, %c0_261] : memref<4x16x16xbf16, #tpu.memory_space<vmem>>, vector<1x16x16xbf16>
    %985 = vector.shape_cast %984 : vector<1x16x16xbf16> to vector<16x16xbf16>
    %986 = arith.truncf %983 : vector<16x512xf32> to vector<16x512xbf16>
    %cst_262 = arith.constant dense<0.000000e+00> : vector<16x512xf32>
    %987 = tpu.matmul %985, %986, %cst_262 {dimension_numbers = #tpu.dot_dimension_numbers<[1], [0], [0], [1], [0, 0, 1, 1], [], []>} : vector<16x16xbf16>, vector<16x512xbf16>, vector<16x512xf32> -> vector<16x512xf32>
    %c3_263 = arith.constant 3 : index
    %c0_264 = arith.constant 0 : index
    %c0_265 = arith.constant 0 : index
    %988 = vector.load %arg13[%c3_263, %c0_264, %c0_265] : memref<4x16x1xf32, #tpu.memory_space<vmem>>, vector<1x16x1xf32>
    %989 = vector.shape_cast %988 : vector<1x16x1xf32> to vector<16x1xf32>
    %990 = vector.broadcast %989 : vector<16x1xf32> to vector<16x512xf32>
    %991 = arith.addf %987, %990 : vector<16x512xf32>
    %992 = arith.addf %967, %991 : vector<16x512xf32>
    %993 = vector.extract_strided_slice %992 {offsets = [0, 0], sizes = [16, 128], strides = [1, 1]} : vector<16x512xf32> to vector<16x128xf32>
    %994 = arith.truncf %993 : vector<16x128xf32> to vector<16x128xbf16>
    %c0_266 = arith.constant 0 : index
    %c0_267 = arith.constant 0 : index
    %c0_268 = arith.constant 0 : index
    %995 = vector.load %arg14[%c0_266, %c0_267, %c0_268] : memref<4x16x128xbf16, #tpu.memory_space<vmem>>, vector<1x16x128xbf16>
    %996 = vector.shape_cast %995 : vector<1x16x128xbf16> to vector<16x128xbf16>
    %997 = vector.shape_cast %994 : vector<16x128xbf16> to vector<1x16x128xbf16>
    tpu.vector_store %arg14[%c0_266, %c0_267, %c0_268], %997 {strides = array<i32>} : memref<4x16x128xbf16, #tpu.memory_space<vmem>>, vector<1x16x128xbf16>,
    %998 = vector.extract_strided_slice %992 {offsets = [0, 128], sizes = [16, 128], strides = [1, 1]} : vector<16x512xf32> to vector<16x128xf32>
    %999 = arith.truncf %998 : vector<16x128xf32> to vector<16x128xbf16>
    %c1_269 = arith.constant 1 : index
    %c0_270 = arith.constant 0 : index
    %c0_271 = arith.constant 0 : index
    %1000 = vector.load %arg14[%c1_269, %c0_270, %c0_271] : memref<4x16x128xbf16, #tpu.memory_space<vmem>>, vector<1x16x128xbf16>
    %1001 = vector.shape_cast %1000 : vector<1x16x128xbf16> to vector<16x128xbf16>
    %1002 = vector.shape_cast %999 : vector<16x128xbf16> to vector<1x16x128xbf16>
    tpu.vector_store %arg14[%c1_269, %c0_270, %c0_271], %1002 {strides = array<i32>} : memref<4x16x128xbf16, #tpu.memory_space<vmem>>, vector<1x16x128xbf16>,
    %1003 = vector.extract_strided_slice %992 {offsets = [0, 256], sizes = [16, 128], strides = [1, 1]} : vector<16x512xf32> to vector<16x128xf32>
    %1004 = arith.truncf %1003 : vector<16x128xf32> to vector<16x128xbf16>
    %c2_272 = arith.constant 2 : index
    %c0_273 = arith.constant 0 : index
    %c0_274 = arith.constant 0 : index
    %1005 = vector.load %arg14[%c2_272, %c0_273, %c0_274] : memref<4x16x128xbf16, #tpu.memory_space<vmem>>, vector<1x16x128xbf16>
    %1006 = vector.shape_cast %1005 : vector<1x16x128xbf16> to vector<16x128xbf16>
    %1007 = vector.shape_cast %1004 : vector<16x128xbf16> to vector<1x16x128xbf16>
    tpu.vector_store %arg14[%c2_272, %c0_273, %c0_274], %1007 {strides = array<i32>} : memref<4x16x128xbf16, #tpu.memory_space<vmem>>, vector<1x16x128xbf16>,
    %1008 = vector.extract_strided_slice %992 {offsets = [0, 384], sizes = [16, 128], strides = [1, 1]} : vector<16x512xf32> to vector<16x128xf32>
    %1009 = arith.truncf %1008 : vector<16x128xf32> to vector<16x128xbf16>
    %c3_275 = arith.constant 3 : index
    %c0_276 = arith.constant 0 : index
    %c0_277 = arith.constant 0 : index
    %1010 = vector.load %arg14[%c3_275, %c0_276, %c0_277] : memref<4x16x128xbf16, #tpu.memory_space<vmem>>, vector<1x16x128xbf16>
    %1011 = vector.shape_cast %1010 : vector<1x16x128xbf16> to vector<16x128xbf16>
    %1012 = vector.shape_cast %1009 : vector<16x128xbf16> to vector<1x16x128xbf16>
    tpu.vector_store %arg14[%c3_275, %c0_276, %c0_277], %1012 {strides = array<i32>} : memref<4x16x128xbf16, #tpu.memory_space<vmem>>, vector<1x16x128xbf16>,
    return
  }
  func.func @transform_0(%arg0: i32) -> (i32, i32, i32) {
    %c0_i32 = arith.constant 0 : i32
    %c0_i32_0 = arith.constant 0 : i32
    %c0_i32_1 = arith.constant 0 : i32
    return %c0_i32, %c0_i32_0, %arg0 : i32, i32, i32
  }
  func.func @transform_1(%arg0: i32) -> (i32, i32) {
    %c0_i32 = arith.constant 0 : i32
    %c0_i32_0 = arith.constant 0 : i32
    %c0_i32_1 = arith.constant 0 : i32
    return %c0_i32, %c0_i32_0 : i32, i32
  }
  func.func @transform_2(%arg0: i32) -> (i32, i32) {
    %c0_i32 = arith.constant 0 : i32
    %c0_i32_0 = arith.constant 0 : i32
    %c0_i32_1 = arith.constant 0 : i32
    return %c0_i32, %c0_i32_0 : i32, i32
  }
  func.func @transform_3(%arg0: i32) -> (i32, i32) {
    %c0_i32 = arith.constant 0 : i32
    %c0_i32_0 = arith.constant 0 : i32
    %c0_i32_1 = arith.constant 0 : i32
    return %c0_i32, %c0_i32_0 : i32, i32
  }
  func.func @transform_4(%arg0: i32) -> (i32, i32) {
    %c0_i32 = arith.constant 0 : i32
    %c0_i32_0 = arith.constant 0 : i32
    %c0_i32_1 = arith.constant 0 : i32
    return %c0_i32, %c0_i32_0 : i32, i32
  }
  func.func @transform_5(%arg0: i32) -> (i32, i32, i32) {
    %c0_i32 = arith.constant 0 : i32
    %c0_i32_0 = arith.constant 0 : i32
    %c0_i32_1 = arith.constant 0 : i32
    %c0_i32_2 = arith.constant 0 : i32
    return %c0_i32, %c0_i32_0, %c0_i32_1 : i32, i32, i32
  }
  func.func @transform_6(%arg0: i32) -> (i32, i32, i32) {
    %c0_i32 = arith.constant 0 : i32
    %c0_i32_0 = arith.constant 0 : i32
    %c0_i32_1 = arith.constant 0 : i32
    %c0_i32_2 = arith.constant 0 : i32
    return %c0_i32, %c0_i32_0, %c0_i32_1 : i32, i32, i32
  }
  func.func @transform_7(%arg0: i32) -> (i32, i32, i32) {
    %c0_i32 = arith.constant 0 : i32
    %c0_i32_0 = arith.constant 0 : i32
    %c0_i32_1 = arith.constant 0 : i32
    %c0_i32_2 = arith.constant 0 : i32
    return %c0_i32, %c0_i32_0, %c0_i32_1 : i32, i32, i32
  }
  func.func @transform_8(%arg0: i32) -> (i32, i32, i32) {
    %c0_i32 = arith.constant 0 : i32
    %c0_i32_0 = arith.constant 0 : i32
    %c0_i32_1 = arith.constant 0 : i32
    %c0_i32_2 = arith.constant 0 : i32
    return %c0_i32, %c0_i32_0, %c0_i32_1 : i32, i32, i32
  }
  func.func @transform_9(%arg0: i32) -> (i32, i32, i32) {
    %c0_i32 = arith.constant 0 : i32
    %c0_i32_0 = arith.constant 0 : i32
    %c0_i32_1 = arith.constant 0 : i32
    %c0_i32_2 = arith.constant 0 : i32
    return %c0_i32, %c0_i32_0, %c0_i32_1 : i32, i32, i32
  }
  func.func @transform_10(%arg0: i32) -> (i32, i32, i32) {
    %c0_i32 = arith.constant 0 : i32
    %c0_i32_0 = arith.constant 0 : i32
    %c0_i32_1 = arith.constant 0 : i32
    %c0_i32_2 = arith.constant 0 : i32
    return %c0_i32, %c0_i32_0, %c0_i32_1 : i32, i32, i32
  }
  func.func @transform_11(%arg0: i32) -> (i32, i32, i32) {
    %c0_i32 = arith.constant 0 : i32
    %c0_i32_0 = arith.constant 0 : i32
    %c0_i32_1 = arith.constant 0 : i32
    %c0_i32_2 = arith.constant 0 : i32
    return %c0_i32, %c0_i32_0, %c0_i32_1 : i32, i32, i32
  }
  func.func @transform_12(%arg0: i32) -> (i32, i32, i32) {
    %c0_i32 = arith.constant 0 : i32
    %c0_i32_0 = arith.constant 0 : i32
    %c0_i32_1 = arith.constant 0 : i32
    %c0_i32_2 = arith.constant 0 : i32
    return %c0_i32, %c0_i32_0, %c0_i32_1 : i32, i32, i32
  }
  func.func @transform_13(%arg0: i32) -> (i32, i32, i32) {
    %c0_i32 = arith.constant 0 : i32
    %c0_i32_0 = arith.constant 0 : i32
    %c0_i32_1 = arith.constant 0 : i32
    return %c0_i32, %c0_i32_0, %arg0 : i32, i32, i32
  }
}

</mosaic_0001>

<llo_original>
// kernel: tpu_custom_call.1
$region0: #{tpu_custom_call.1}
  #allocation0 [shape = 'u32[]', space=smem, size = 0x4, offset = 0x4, fixed_abs, tag = 'smem constant byte address 0x4 - core index']
  #allocation1 [shape = 'u32[144,128]{1,0:T(1,128)}', space=vmem, size = 0x12000, scoped, tag = 'internal scratch']
  #allocation2 [shape = 'bf16[6,512]{1,0:T(8,128)(2,1)}', space=vmem, size = 0x2000, scoped, tag = 'scratch operand']
  #allocation3 [shape = 'f32[48,512]{1,0:T(8,128)}', space=vmem, size = 0x18000, scoped, tag = 'scratch operand']
  #allocation4 [shape = 'f32[16,512]{1,0:T(8,128)}', space=vmem, size = 0x8000, scoped, tag = 'scratch operand']
  %s0 = inlined_call_operand.vmem [shape: bf16[4,6,128], index: 0, kind: input, shape index: {}]
  %s1 = inlined_call_operand.vmem [shape: bf16[48,6], index: 1, kind: input, shape index: {}]
  %s2 = inlined_call_operand.vmem [shape: f32[48,1], index: 2, kind: input, shape index: {}]
  %s3 = inlined_call_operand.vmem [shape: bf16[48,48], index: 3, kind: input, shape index: {}]
  %s4 = inlined_call_operand.vmem [shape: f32[48,1], index: 4, kind: input, shape index: {}]
  %s5 = inlined_call_operand.vmem [shape: bf16[4,48,16], index: 5, kind: input, shape index: {}]
  %s6 = inlined_call_operand.vmem [shape: f32[4,48,1], index: 6, kind: input, shape index: {}]
  %s7 = inlined_call_operand.vmem [shape: bf16[4,16,16], index: 7, kind: input, shape index: {}]
  %s8 = inlined_call_operand.vmem [shape: f32[4,16,1], index: 8, kind: input, shape index: {}]
  %s9 = inlined_call_operand.vmem [shape: bf16[4,16,16], index: 9, kind: input, shape index: {}]
  %s10 = inlined_call_operand.vmem [shape: f32[4,16,1], index: 10, kind: input, shape index: {}]
  %s11 = inlined_call_operand.vmem [shape: bf16[4,16,16], index: 11, kind: input, shape index: {}]
  %s12 = inlined_call_operand.vmem [shape: f32[4,16,1], index: 12, kind: input, shape index: {}]
  %s13 = inlined_call_operand.hbm [shape: bf16[4,16,128], index: 13, kind: output, shape index: {}]
  %s14 = sld [smem:[#allocation0]]
  $region62: #{tpu_custom_call.1} parent=0
    _
  %s16 = ssub.s32 1, %s14
  %s17 = scalar_select 0, %s16, %s14
  $region1: #{tpu_custom_call.1} parent=0
    #allocation5 [shape = 'u8[16384]{0}', space=vmem, size = 0x4000, scoped, tag = 'output window, operand 0, single buffered']
    #allocation6 [shape = 's32[1]{0}', space=sflag, size = 0x4, scoped, tag = 'scoped memory for tpu_custom_call.1']
    %18 = vsyncpa [#allocation6], 0
    // Predicated region
    $region2: #{tpu_custom_call.1} parent=1 // pred_check
      _
    $region3: #{tpu_custom_call.1} parent=1 // pred_check_branch
      %20 = sbr.rel (0) target = $region5
    $region4: #{tpu_custom_call.1} parent=1 // pred_region
      _
    $region5: #{tpu_custom_call.1} parent=1 // pred_fallthru
      _
    // Predicated region
    $region6: #{tpu_custom_call.1} parent=1 // pred_check
      _
    $region7: #{tpu_custom_call.1} parent=1 // pred_check_branch
      %22 = sbr.rel (0) target = $region9
    $region8: #{tpu_custom_call.1} parent=1 // pred_region
      _
    $region9: #{tpu_custom_call.1} parent=1 // pred_fallthru
      _
    // Predicated region
    $region10: #{tpu_custom_call.1} parent=1 // pred_check
      _
    $region11: #{tpu_custom_call.1} parent=1 // pred_check_branch
      %24 = sbr.rel (0) target = $region13
    $region12: #{tpu_custom_call.1} parent=1 // pred_region
      _
    $region13: #{tpu_custom_call.1} parent=1 // pred_fallthru
      _
    // Predicated region
    $region14: #{tpu_custom_call.1} parent=1 // pred_check
      _
    $region15: #{tpu_custom_call.1} parent=1 // pred_check_branch
      %26 = sbr.rel (0) target = $region17
    $region16: #{tpu_custom_call.1} parent=1 // pred_region
      _
    $region17: #{tpu_custom_call.1} parent=1 // pred_fallthru
      _
    // Predicated region
    $region18: #{tpu_custom_call.1} parent=1 // pred_check
      _
    $region19: #{tpu_custom_call.1} parent=1 // pred_check_branch
      %28 = sbr.rel (0) target = $region21
    $region20: #{tpu_custom_call.1} parent=1 // pred_region
      _
    $region21: #{tpu_custom_call.1} parent=1 // pred_fallthru
      _
    // Predicated region
    $region22: #{tpu_custom_call.1} parent=1 // pred_check
      _
    $region23: #{tpu_custom_call.1} parent=1 // pred_check_branch
      %30 = sbr.rel (0) target = $region25
    $region24: #{tpu_custom_call.1} parent=1 // pred_region
      _
    $region25: #{tpu_custom_call.1} parent=1 // pred_fallthru
      _
    // Predicated region
    $region26: #{tpu_custom_call.1} parent=1 // pred_check
      _
    $region27: #{tpu_custom_call.1} parent=1 // pred_check_branch
      %32 = sbr.rel (0) target = $region29
    $region28: #{tpu_custom_call.1} parent=1 // pred_region
      _
    $region29: #{tpu_custom_call.1} parent=1 // pred_fallthru
      _
    // Predicated region
    $region30: #{tpu_custom_call.1} parent=1 // pred_check
      _
    $region31: #{tpu_custom_call.1} parent=1 // pred_check_branch
      %34 = sbr.rel (0) target = $region33
    $region32: #{tpu_custom_call.1} parent=1 // pred_region
      _
    $region33: #{tpu_custom_call.1} parent=1 // pred_fallthru
      _
    // Predicated region
    $region34: #{tpu_custom_call.1} parent=1 // pred_check
      _
    $region35: #{tpu_custom_call.1} parent=1 // pred_check_branch
      %36 = sbr.rel (0) target = $region37
    $region36: #{tpu_custom_call.1} parent=1 // pred_region
      _
    $region37: #{tpu_custom_call.1} parent=1 // pred_fallthru
      _
    // Predicated region
    $region38: #{tpu_custom_call.1} parent=1 // pred_check
      _
    $region39: #{tpu_custom_call.1} parent=1 // pred_check_branch
      %38 = sbr.rel (0) target = $region41
    $region40: #{tpu_custom_call.1} parent=1 // pred_region
      _
    $region41: #{tpu_custom_call.1} parent=1 // pred_fallthru
      _
    // Predicated region
    $region42: #{tpu_custom_call.1} parent=1 // pred_check
      _
    $region43: #{tpu_custom_call.1} parent=1 // pred_check_branch
      %40 = sbr.rel (0) target = $region45
    $region44: #{tpu_custom_call.1} parent=1 // pred_region
      _
    $region45: #{tpu_custom_call.1} parent=1 // pred_fallthru
      _
    // Predicated region
    $region46: #{tpu_custom_call.1} parent=1 // pred_check
      _
    $region47: #{tpu_custom_call.1} parent=1 // pred_check_branch
      %42 = sbr.rel (0) target = $region49
    $region48: #{tpu_custom_call.1} parent=1 // pred_region
      _
    $region49: #{tpu_custom_call.1} parent=1 // pred_fallthru
      _
    // Predicated region
    $region50: #{tpu_custom_call.1} parent=1 // pred_check
      _
    $region51: #{tpu_custom_call.1} parent=1 // pred_check_branch
      %44 = sbr.rel (0) target = $region53
    $region52: #{tpu_custom_call.1} parent=1 // pred_region
      _
    $region53: #{tpu_custom_call.1} parent=1 // pred_fallthru
      _
    %v46 = vld [vmem:[%s0] sm:$0x7]
    %47 = vst [vmem:[#allocation2] sm:$0x7] %v46
    %s48 = scalar_lea.vmem %s0, 4
    %v49 = vld [vmem:[%s48] sm:$0x7]
    %50 = vst [vmem:[#allocation2 + $0x4] sm:$0x7] %v49
    %s51 = scalar_lea.vmem %s0, 8
    %v52 = vld [vmem:[%s51] sm:$0x7]
    %53 = vst [vmem:[#allocation2 + $0x8] sm:$0x7] %v52
    %s54 = scalar_lea.vmem %s0, 12
    %v55 = vld [vmem:[%s54] sm:$0x7]
    %56 = vst [vmem:[#allocation2 + $0xc] sm:$0x7] %v55
    %v57 = vld [vmem:[%s1] sm:$0xf]
    %v58 = vld [vmem:[%s1 + $0x4] sm:$0xf]
    %v59 = vld [vmem:[%s1 + $0x8] sm:$0xf]
    %v60 = vld [vmem:[%s1 + $0xc] sm:$0xf]
    %v61 = vld [vmem:[%s1 + $0x10] sm:$0xf]
    %v62 = vld [vmem:[%s1 + $0x14] sm:$0xf]
    %v63 = vld [vmem:[#allocation2] sm:$0x77]
    %v64 = vld [vmem:[#allocation2 + $0x8] sm:$0x77]
    %v65 = vld [vmem:[%s2] sm:$0xff]
    %v66 = vld [vmem:[%s2 + $0x8] sm:$0xff]
    %v67 = vld [vmem:[%s2 + $0x10] sm:$0xff]
    %v68 = vld [vmem:[%s2 + $0x18] sm:$0xff]
    %v69 = vld [vmem:[%s2 + $0x20] sm:$0xff]
    %v70 = vld [vmem:[%s2 + $0x28] sm:$0xff]
    %72 = vset.pattern.permute.xlu0 0
    %73 = vperm.xlu0 %72, %v65
    %v74 = vpop.permute.xlu0 %73
    %77 = vset.pattern.permute.xlu0 0
    %78 = vperm.xlu0 %77, %v66
    %v79 = vpop.permute.xlu0 %78
    %82 = vset.pattern.permute.xlu0 0
    %83 = vperm.xlu0 %82, %v67
    %v84 = vpop.permute.xlu0 %83
    %87 = vset.pattern.permute.xlu0 0
    %88 = vperm.xlu0 %87, %v68
    %v89 = vpop.permute.xlu0 %88
    %92 = vset.pattern.permute.xlu0 0
    %93 = vperm.xlu0 %92, %v69
    %v94 = vpop.permute.xlu0 %93
    %97 = vset.pattern.permute.xlu0 0
    %98 = vperm.xlu0 %97, %v70
    %v99 = vpop.permute.xlu0 %98
    %v107 = vunpack.c.l.b16 %v57
    %v108 = vunpack.c.l.b16 %v58
    %v109 = vunpack.c.l.b16 %v59
    %v110 = vunpack.c.l.b16 %v60
    %v111 = vunpack.c.l.b16 %v61
    %v112 = vunpack.c.l.b16 %v62
    %v113 = vpack.c.b16 %v108, %v107
    %v114 = vpack.c.b16 %v110, %v109
    %v115 = vpack.c.b16 %v112, %v111
    %v118 = vunpack.c.l.b16 %v63
    %v119 = vunpack.c.h.b16 %v63
    %v120 = vunpack.c.l.b16 %v64
    %v121 = vunpack.c.h.b16 %v64
    %v122 = vpack.c.b16 %v118, %v118
    %v123 = vpack.c.b16 %v119, %v119
    %v124 = vpack.c.b16 %v120, %v120
    %v125 = vpack.c.b16 %v121, %v121
    %vm126 = vcmask 48128
    %v128 = vsel %vm126, %v113, 0
    %v131 = vsel %vm126, %v114, 0
    %v134 = vsel %vm126, %v115, 0
    %vm136 = vcmask 1042432
    %v138 = vsel %vm136, %v122, 0
    %v141 = vsel %vm136, %v123, 0
    %v144 = vsel %vm136, %v124, 0
    %v147 = vsel %vm136, %v125, 0
    %149 = vmatprep.subr.bf16.mxu0 %v141
    %150 = vmatpush1.bf16.msra.mxu0 %v138
    %151 = vmatprep.subr.bf16.mxu0 0
    %152 = vmatpush1.bf16.msra.mxu0 0
    %153 = vmatprep.subr.bf16.mxu0 0
    %154 = vmatpush1.bf16.msra.mxu0 0
    %155 = vmatprep.subr.bf16.mxu0 0
    %156 = vmatpush1.bf16.msra.mxu0 0
    %157 = vmatprep.subr.bf16.mxu0 0
    %158 = vmatpush1.bf16.msra.mxu0 0
    %159 = vmatprep.subr.bf16.mxu0 0
    %160 = vmatpush1.bf16.msra.mxu0 0
    %161 = vmatprep.subr.bf16.mxu0 0
    %162 = vmatpush1.bf16.msra.mxu0 0
    %163 = vmatprep.subr.bf16.mxu0 0
    %164 = vmatpush1.bf16.msra.mxu0 0
    %165 = vmatprep.subr.bf16.mxu0 0
    %166 = vmatpush1.bf16.msra.mxu0 0
    %167 = vmatprep.subr.bf16.mxu0 0
    %168 = vmatpush1.bf16.msra.mxu0 0
    %169 = vmatprep.subr.bf16.mxu0 0
    %170 = vmatpush1.bf16.msra.mxu0 0
    %171 = vmatprep.subr.bf16.mxu0 0
    %172 = vmatpush1.bf16.msra.mxu0 0
    %173 = vmatprep.subr.bf16.mxu0 0
    %174 = vmatpush1.bf16.msra.mxu0 0
    %175 = vmatprep.subr.bf16.mxu0 0
    %176 = vmatpush1.bf16.msra.mxu0 0
    %177 = vmatprep.subr.bf16.mxu0 0
    %178 = vmatpush1.bf16.msra.mxu0 0
    %179 = vmatprep.subr.bf16.mxu0 0
    %180 = vmatpush1.bf16.msra.mxu0 0
    %181 = vmatprep.mubr.bf16.mxu0 0
    %182 = vmatmul.mubr.bf16.gmra.mrb[0].mxu0 %v128
    %v183 = vpop.f32.mrb[0].mxu0
    %v184 = vadd.f32 %v74, %v183
    %v185 = vpop.f32.mrb[0].mxu0
    %v186 = vadd.f32 %v74, %v185
    %v187 = vpop.f32.mrb[0].mxu0
    %v188 = vadd.f32 %v79, %v187
    %v189 = vpop.f32.mrb[0].mxu0
    %v190 = vadd.f32 %v79, %v189
    %191 = vmatprep.mubr.bf16.mxu0 0
    %192 = vmatmul.mubr.bf16.gmra.mrb[0].mxu0 %v131
    %v193 = vpop.f32.mrb[0].mxu0
    %v194 = vadd.f32 %v84, %v193
    %v195 = vpop.f32.mrb[0].mxu0
    %v196 = vadd.f32 %v84, %v195
    %v197 = vpop.f32.mrb[0].mxu0
    %v198 = vadd.f32 %v89, %v197
    %v199 = vpop.f32.mrb[0].mxu0
    %v200 = vadd.f32 %v89, %v199
    %201 = vmatprep.mubr.bf16.mxu0 0
    %202 = vmatmul.mubr.bf16.gmra.mrb[0].mxu0 %v134
    %v203 = vpop.f32.mrb[0].mxu0
    %v204 = vadd.f32 %v94, %v203
    %v205 = vpop.f32.mrb[0].mxu0
    %v206 = vadd.f32 %v94, %v205
    %v207 = vpop.f32.mrb[0].mxu0
    %v208 = vadd.f32 %v99, %v207
    %v209 = vpop.f32.mrb[0].mxu0
    %v210 = vadd.f32 %v99, %v209
    %211 = vdwg.mxu0
    %212 = vmatprep.subr.bf16.mxu0 %v147
    %213 = vmatpush1.bf16.msra.mxu0 %v144
    %214 = vmatprep.subr.bf16.mxu0 0
    %215 = vmatpush1.bf16.msra.mxu0 0
    %216 = vmatprep.subr.bf16.mxu0 0
    %217 = vmatpush1.bf16.msra.mxu0 0
    %218 = vmatprep.subr.bf16.mxu0 0
    %219 = vmatpush1.bf16.msra.mxu0 0
    %220 = vmatprep.subr.bf16.mxu0 0
    %221 = vmatpush1.bf16.msra.mxu0 0
    %222 = vmatprep.subr.bf16.mxu0 0
    %223 = vmatpush1.bf16.msra.mxu0 0
    %224 = vmatprep.subr.bf16.mxu0 0
    %225 = vmatpush1.bf16.msra.mxu0 0
    %226 = vmatprep.subr.bf16.mxu0 0
    %227 = vmatpush1.bf16.msra.mxu0 0
    %228 = vmatprep.subr.bf16.mxu0 0
    %229 = vmatpush1.bf16.msra.mxu0 0
    %230 = vmatprep.subr.bf16.mxu0 0
    %231 = vmatpush1.bf16.msra.mxu0 0
    %232 = vmatprep.subr.bf16.mxu0 0
    %233 = vmatpush1.bf16.msra.mxu0 0
    %234 = vmatprep.subr.bf16.mxu0 0
    %235 = vmatpush1.bf16.msra.mxu0 0
    %236 = vmatprep.subr.bf16.mxu0 0
    %237 = vmatpush1.bf16.msra.mxu0 0
    %238 = vmatprep.subr.bf16.mxu0 0
    %239 = vmatpush1.bf16.msra.mxu0 0
    %240 = vmatprep.subr.bf16.mxu0 0
    %241 = vmatpush1.bf16.msra.mxu0 0
    %242 = vmatprep.subr.bf16.mxu0 0
    %243 = vmatpush1.bf16.msra.mxu0 0
    %244 = vmatprep.mubr.bf16.mxu0 0
    %245 = vmatmul.mubr.bf16.gmra.mrb[0].mxu0 %v128
    %v246 = vpop.f32.mrb[0].mxu0
    %v247 = vadd.f32 %v74, %v246
    %v248 = vpop.f32.mrb[0].mxu0
    %v249 = vadd.f32 %v74, %v248
    %v250 = vpop.f32.mrb[0].mxu0
    %v251 = vadd.f32 %v79, %v250
    %v252 = vpop.f32.mrb[0].mxu0
    %v253 = vadd.f32 %v79, %v252
    %254 = vmatprep.mubr.bf16.mxu0 0
    %255 = vmatmul.mubr.bf16.gmra.mrb[0].mxu0 %v131
    %v256 = vpop.f32.mrb[0].mxu0
    %v257 = vadd.f32 %v84, %v256
    %v258 = vpop.f32.mrb[0].mxu0
    %v259 = vadd.f32 %v84, %v258
    %v260 = vpop.f32.mrb[0].mxu0
    %v261 = vadd.f32 %v89, %v260
    %v262 = vpop.f32.mrb[0].mxu0
    %v263 = vadd.f32 %v89, %v262
    %264 = vmatprep.mubr.bf16.mxu0 0
    %265 = vmatmul.mubr.bf16.gmra.mrb[0].mxu0 %v134
    %v266 = vpop.f32.mrb[0].mxu0
    %v267 = vadd.f32 %v94, %v266
    %v268 = vpop.f32.mrb[0].mxu0
    %v269 = vadd.f32 %v94, %v268
    %v270 = vpop.f32.mrb[0].mxu0
    %v271 = vadd.f32 %v99, %v270
    %v272 = vpop.f32.mrb[0].mxu0
    %v273 = vadd.f32 %v99, %v272
    %274 = vdwg.mxu0
    %v275 = vadd.f32 %v184, %v188
    %v276 = vrot.slane %v275, 4
    %v277 = vadd.f32 %v275, %v276
    %v278 = vrot.slane %v277, 2
    %v279 = vadd.f32 %v277, %v278
    %v280 = vrot.slane %v279, 1
    %v281 = vadd.f32 %v279, %v280
    %v282 = vadd.f32 %v186, %v190
    %v283 = vrot.slane %v282, 4
    %v284 = vadd.f32 %v282, %v283
    %v285 = vrot.slane %v284, 2
    %v286 = vadd.f32 %v284, %v285
    %v287 = vrot.slane %v286, 1
    %v288 = vadd.f32 %v286, %v287
    %v289 = vadd.f32 %v247, %v251
    %v290 = vrot.slane %v289, 4
    %v291 = vadd.f32 %v289, %v290
    %v292 = vrot.slane %v291, 2
    %v293 = vadd.f32 %v291, %v292
    %v294 = vrot.slane %v293, 1
    %v295 = vadd.f32 %v293, %v294
    %v296 = vadd.f32 %v249, %v253
    %v297 = vrot.slane %v296, 4
    %v298 = vadd.f32 %v296, %v297
    %v299 = vrot.slane %v298, 2
    %v300 = vadd.f32 %v298, %v299
    %v301 = vrot.slane %v300, 1
    %v302 = vadd.f32 %v300, %v301
    %v303 = vmul.f32 %v281, 0.0625
    %v304 = vmul.f32 %v288, 0.0625
    %v305 = vmul.f32 %v295, 0.0625
    %v306 = vmul.f32 %v302, 0.0625
    %v307 = vmul.f32 %v184, %v184
    %v308 = vmul.f32 %v186, %v186
    %v309 = vmul.f32 %v247, %v247
    %v310 = vmul.f32 %v249, %v249
    %v311 = vmul.f32 %v188, %v188
    %v312 = vmul.f32 %v190, %v190
    %v313 = vmul.f32 %v251, %v251
    %v314 = vmul.f32 %v253, %v253
    %v315 = vadd.f32 %v307, %v311
    %v316 = vrot.slane %v315, 4
    %v317 = vadd.f32 %v315, %v316
    %v318 = vrot.slane %v317, 2
    %v319 = vadd.f32 %v317, %v318
    %v320 = vrot.slane %v319, 1
    %v321 = vadd.f32 %v319, %v320
    %v322 = vadd.f32 %v308, %v312
    %v323 = vrot.slane %v322, 4
    %v324 = vadd.f32 %v322, %v323
    %v325 = vrot.slane %v324, 2
    %v326 = vadd.f32 %v324, %v325
    %v327 = vrot.slane %v326, 1
    %v328 = vadd.f32 %v326, %v327
    %v329 = vadd.f32 %v309, %v313
    %v330 = vrot.slane %v329, 4
    %v331 = vadd.f32 %v329, %v330
    %v332 = vrot.slane %v331, 2
    %v333 = vadd.f32 %v331, %v332
    %v334 = vrot.slane %v333, 1
    %v335 = vadd.f32 %v333, %v334
    %v336 = vadd.f32 %v310, %v314
    %v337 = vrot.slane %v336, 4
    %v338 = vadd.f32 %v336, %v337
    %v339 = vrot.slane %v338, 2
    %v340 = vadd.f32 %v338, %v339
    %v341 = vrot.slane %v340, 1
    %v342 = vadd.f32 %v340, %v341
    %v343 = vmul.f32 %v321, 0.0625
    %v344 = vmul.f32 %v328, 0.0625
    %v345 = vmul.f32 %v335, 0.0625
    %v346 = vmul.f32 %v342, 0.0625
    %v347 = vmul.f32 %v303, %v303
    %v348 = vmul.f32 %v304, %v304
    %v349 = vmul.f32 %v305, %v305
    %v350 = vmul.f32 %v306, %v306
    %v351 = vsub.f32 %v343, %v347
    %v352 = vsub.f32 %v344, %v348
    %v353 = vsub.f32 %v345, %v349
    %v354 = vsub.f32 %v346, %v350
    %v355 = vsub.f32 %v184, %v303
    %v356 = vsub.f32 %v186, %v304
    %v357 = vsub.f32 %v247, %v305
    %v358 = vsub.f32 %v249, %v306
    %v359 = vsub.f32 %v188, %v303
    %v360 = vsub.f32 %v190, %v304
    %v361 = vsub.f32 %v251, %v305
    %v362 = vsub.f32 %v253, %v306
    %v363 = vadd.f32 %v351, 1e-05
    %v364 = vadd.f32 %v352, 1e-05
    %v365 = vadd.f32 %v353, 1e-05
    %v366 = vadd.f32 %v354, 1e-05
    %v367 = vrsqrt.pop %v363
    %v368 = vrsqrt.pop %v364
    %v369 = vrsqrt.pop %v365
    %v370 = vrsqrt.pop %v366
    %v371 = vmul.f32 %v355, %v367
    %v372 = vmul.f32 %v356, %v368
    %v373 = vmul.f32 %v357, %v369
    %v374 = vmul.f32 %v358, %v370
    %v375 = vmul.f32 %v359, %v367
    %v376 = vmul.f32 %v360, %v368
    %v377 = vmul.f32 %v361, %v369
    %v378 = vmul.f32 %v362, %v370
    %379 = vst [vmem:[#allocation3] sm:$0xff] %v371
    %380 = vst [vmem:[#allocation3 + $0x8] sm:$0xff] %v372
    %381 = vst [vmem:[#allocation3 + $0x10] sm:$0xff] %v373
    %382 = vst [vmem:[#allocation3 + $0x18] sm:$0xff] %v374
    %383 = vst [vmem:[#allocation3 + $0x20] sm:$0xff] %v375
    %384 = vst [vmem:[#allocation3 + $0x28] sm:$0xff] %v376
    %385 = vst [vmem:[#allocation3 + $0x30] sm:$0xff] %v377
    %386 = vst [vmem:[#allocation3 + $0x38] sm:$0xff] %v378
    %v387 = vadd.f32 %v194, %v198
    %v388 = vrot.slane %v387, 4
    %v389 = vadd.f32 %v387, %v388
    %v390 = vrot.slane %v389, 2
    %v391 = vadd.f32 %v389, %v390
    %v392 = vrot.slane %v391, 1
    %v393 = vadd.f32 %v391, %v392
    %v394 = vadd.f32 %v196, %v200
    %v395 = vrot.slane %v394, 4
    %v396 = vadd.f32 %v394, %v395
    %v397 = vrot.slane %v396, 2
    %v398 = vadd.f32 %v396, %v397
    %v399 = vrot.slane %v398, 1
    %v400 = vadd.f32 %v398, %v399
    %v401 = vadd.f32 %v257, %v261
    %v402 = vrot.slane %v401, 4
    %v403 = vadd.f32 %v401, %v402
    %v404 = vrot.slane %v403, 2
    %v405 = vadd.f32 %v403, %v404
    %v406 = vrot.slane %v405, 1
    %v407 = vadd.f32 %v405, %v406
    %v408 = vadd.f32 %v259, %v263
    %v409 = vrot.slane %v408, 4
    %v410 = vadd.f32 %v408, %v409
    %v411 = vrot.slane %v410, 2
    %v412 = vadd.f32 %v410, %v411
    %v413 = vrot.slane %v412, 1
    %v414 = vadd.f32 %v412, %v413
    %v415 = vmul.f32 %v393, 0.0625
    %v416 = vmul.f32 %v400, 0.0625
    %v417 = vmul.f32 %v407, 0.0625
    %v418 = vmul.f32 %v414, 0.0625
    %v419 = vmul.f32 %v194, %v194
    %v420 = vmul.f32 %v196, %v196
    %v421 = vmul.f32 %v257, %v257
    %v422 = vmul.f32 %v259, %v259
    %v423 = vmul.f32 %v198, %v198
    %v424 = vmul.f32 %v200, %v200
    %v425 = vmul.f32 %v261, %v261
    %v426 = vmul.f32 %v263, %v263
    %v427 = vadd.f32 %v419, %v423
    %v428 = vrot.slane %v427, 4
    %v429 = vadd.f32 %v427, %v428
    %v430 = vrot.slane %v429, 2
    %v431 = vadd.f32 %v429, %v430
    %v432 = vrot.slane %v431, 1
    %v433 = vadd.f32 %v431, %v432
    %v434 = vadd.f32 %v420, %v424
    %v435 = vrot.slane %v434, 4
    %v436 = vadd.f32 %v434, %v435
    %v437 = vrot.slane %v436, 2
    %v438 = vadd.f32 %v436, %v437
    %v439 = vrot.slane %v438, 1
    %v440 = vadd.f32 %v438, %v439
    %v441 = vadd.f32 %v421, %v425
    %v442 = vrot.slane %v441, 4
    %v443 = vadd.f32 %v441, %v442
    %v444 = vrot.slane %v443, 2
    %v445 = vadd.f32 %v443, %v444
    %v446 = vrot.slane %v445, 1
    %v447 = vadd.f32 %v445, %v446
    %v448 = vadd.f32 %v422, %v426
    %v449 = vrot.slane %v448, 4
    %v450 = vadd.f32 %v448, %v449
    %v451 = vrot.slane %v450, 2
    %v452 = vadd.f32 %v450, %v451
    %v453 = vrot.slane %v452, 1
    %v454 = vadd.f32 %v452, %v453
    %v455 = vmul.f32 %v433, 0.0625
    %v456 = vmul.f32 %v440, 0.0625
    %v457 = vmul.f32 %v447, 0.0625
    %v458 = vmul.f32 %v454, 0.0625
    %v459 = vmul.f32 %v415, %v415
    %v460 = vmul.f32 %v416, %v416
    %v461 = vmul.f32 %v417, %v417
    %v462 = vmul.f32 %v418, %v418
    %v463 = vsub.f32 %v455, %v459
    %v464 = vsub.f32 %v456, %v460
    %v465 = vsub.f32 %v457, %v461
    %v466 = vsub.f32 %v458, %v462
    %v467 = vsub.f32 %v194, %v415
    %v468 = vsub.f32 %v196, %v416
    %v469 = vsub.f32 %v257, %v417
    %v470 = vsub.f32 %v259, %v418
    %v471 = vsub.f32 %v198, %v415
    %v472 = vsub.f32 %v200, %v416
    %v473 = vsub.f32 %v261, %v417
    %v474 = vsub.f32 %v263, %v418
    %v475 = vadd.f32 %v463, 1e-05
    %v476 = vadd.f32 %v464, 1e-05
    %v477 = vadd.f32 %v465, 1e-05
    %v478 = vadd.f32 %v466, 1e-05
    %v479 = vrsqrt.pop %v475
    %v480 = vrsqrt.pop %v476
    %v481 = vrsqrt.pop %v477
    %v482 = vrsqrt.pop %v478
    %v483 = vmul.f32 %v467, %v479
    %v484 = vmul.f32 %v468, %v480
    %v485 = vmul.f32 %v469, %v481
    %v486 = vmul.f32 %v470, %v482
    %v487 = vmul.f32 %v471, %v479
    %v488 = vmul.f32 %v472, %v480
    %v489 = vmul.f32 %v473, %v481
    %v490 = vmul.f32 %v474, %v482
    %491 = vst [vmem:[#allocation3 + $0x40] sm:$0xff] %v483
    %492 = vst [vmem:[#allocation3 + $0x48] sm:$0xff] %v484
    %493 = vst [vmem:[#allocation3 + $0x50] sm:$0xff] %v485
    %494 = vst [vmem:[#allocation3 + $0x58] sm:$0xff] %v486
    %495 = vst [vmem:[#allocation3 + $0x60] sm:$0xff] %v487
    %496 = vst [vmem:[#allocation3 + $0x68] sm:$0xff] %v488
    %497 = vst [vmem:[#allocation3 + $0x70] sm:$0xff] %v489
    %498 = vst [vmem:[#allocation3 + $0x78] sm:$0xff] %v490
    %v499 = vadd.f32 %v204, %v208
    %v500 = vrot.slane %v499, 4
    %v501 = vadd.f32 %v499, %v500
    %v502 = vrot.slane %v501, 2
    %v503 = vadd.f32 %v501, %v502
    %v504 = vrot.slane %v503, 1
    %v505 = vadd.f32 %v503, %v504
    %v506 = vadd.f32 %v206, %v210
    %v507 = vrot.slane %v506, 4
    %v508 = vadd.f32 %v506, %v507
    %v509 = vrot.slane %v508, 2
    %v510 = vadd.f32 %v508, %v509
    %v511 = vrot.slane %v510, 1
    %v512 = vadd.f32 %v510, %v511
    %v513 = vadd.f32 %v267, %v271
    %v514 = vrot.slane %v513, 4
    %v515 = vadd.f32 %v513, %v514
    %v516 = vrot.slane %v515, 2
    %v517 = vadd.f32 %v515, %v516
    %v518 = vrot.slane %v517, 1
    %v519 = vadd.f32 %v517, %v518
    %v520 = vadd.f32 %v269, %v273
    %v521 = vrot.slane %v520, 4
    %v522 = vadd.f32 %v520, %v521
    %v523 = vrot.slane %v522, 2
    %v524 = vadd.f32 %v522, %v523
    %v525 = vrot.slane %v524, 1
    %v526 = vadd.f32 %v524, %v525
    %v527 = vmul.f32 %v505, 0.0625
    %v528 = vmul.f32 %v512, 0.0625
    %v529 = vmul.f32 %v519, 0.0625
    %v530 = vmul.f32 %v526, 0.0625
    %v531 = vmul.f32 %v204, %v204
    %v532 = vmul.f32 %v206, %v206
    %v533 = vmul.f32 %v267, %v267
    %v534 = vmul.f32 %v269, %v269
    %v535 = vmul.f32 %v208, %v208
    %v536 = vmul.f32 %v210, %v210
    %v537 = vmul.f32 %v271, %v271
    %v538 = vmul.f32 %v273, %v273
    %v539 = vadd.f32 %v531, %v535
    %v540 = vrot.slane %v539, 4
    %v541 = vadd.f32 %v539, %v540
    %v542 = vrot.slane %v541, 2
    %v543 = vadd.f32 %v541, %v542
    %v544 = vrot.slane %v543, 1
    %v545 = vadd.f32 %v543, %v544
    %v546 = vadd.f32 %v532, %v536
    %v547 = vrot.slane %v546, 4
    %v548 = vadd.f32 %v546, %v547
    %v549 = vrot.slane %v548, 2
    %v550 = vadd.f32 %v548, %v549
    %v551 = vrot.slane %v550, 1
    %v552 = vadd.f32 %v550, %v551
    %v553 = vadd.f32 %v533, %v537
    %v554 = vrot.slane %v553, 4
    %v555 = vadd.f32 %v553, %v554
    %v556 = vrot.slane %v555, 2
    %v557 = vadd.f32 %v555, %v556
    %v558 = vrot.slane %v557, 1
    %v559 = vadd.f32 %v557, %v558
    %v560 = vadd.f32 %v534, %v538
    %v561 = vrot.slane %v560, 4
    %v562 = vadd.f32 %v560, %v561
    %v563 = vrot.slane %v562, 2
    %v564 = vadd.f32 %v562, %v563
    %v565 = vrot.slane %v564, 1
    %v566 = vadd.f32 %v564, %v565
    %v567 = vmul.f32 %v545, 0.0625
    %v568 = vmul.f32 %v552, 0.0625
    %v569 = vmul.f32 %v559, 0.0625
    %v570 = vmul.f32 %v566, 0.0625
    %v571 = vmul.f32 %v527, %v527
    %v572 = vmul.f32 %v528, %v528
    %v573 = vmul.f32 %v529, %v529
    %v574 = vmul.f32 %v530, %v530
    %v575 = vsub.f32 %v567, %v571
    %v576 = vsub.f32 %v568, %v572
    %v577 = vsub.f32 %v569, %v573
    %v578 = vsub.f32 %v570, %v574
    %v579 = vsub.f32 %v204, %v527
    %v580 = vsub.f32 %v206, %v528
    %v581 = vsub.f32 %v267, %v529
    %v582 = vsub.f32 %v269, %v530
    %v583 = vsub.f32 %v208, %v527
    %v584 = vsub.f32 %v210, %v528
    %v585 = vsub.f32 %v271, %v529
    %v586 = vsub.f32 %v273, %v530
    %v587 = vadd.f32 %v575, 1e-05
    %v588 = vadd.f32 %v576, 1e-05
    %v589 = vadd.f32 %v577, 1e-05
    %v590 = vadd.f32 %v578, 1e-05
    %v591 = vrsqrt.pop %v587
    %v592 = vrsqrt.pop %v588
    %v593 = vrsqrt.pop %v589
    %v594 = vrsqrt.pop %v590
    %v595 = vmul.f32 %v579, %v591
    %v596 = vmul.f32 %v580, %v592
    %v597 = vmul.f32 %v581, %v593
    %v598 = vmul.f32 %v582, %v594
    %v599 = vmul.f32 %v583, %v591
    %v600 = vmul.f32 %v584, %v592
    %v601 = vmul.f32 %v585, %v593
    %v602 = vmul.f32 %v586, %v594
    %603 = vst [vmem:[#allocation3 + $0x80] sm:$0xff] %v595
    %604 = vst [vmem:[#allocation3 + $0x88] sm:$0xff] %v596
    %605 = vst [vmem:[#allocation3 + $0x90] sm:$0xff] %v597
    %606 = vst [vmem:[#allocation3 + $0x98] sm:$0xff] %v598
    %607 = vst [vmem:[#allocation3 + $0xa0] sm:$0xff] %v599
    %608 = vst [vmem:[#allocation3 + $0xa8] sm:$0xff] %v600
    %609 = vst [vmem:[#allocation3 + $0xb0] sm:$0xff] %v601
    %610 = vst [vmem:[#allocation3 + $0xb8] sm:$0xff] %v602
    %v611 = vld [vmem:[%s3] sm:$0xf]
    %v612 = vld [vmem:[%s3 + $0x4] sm:$0xf]
    %v613 = vld [vmem:[%s3 + $0x8] sm:$0xf]
    %v614 = vld [vmem:[%s3 + $0xc] sm:$0xf]
    %v615 = vld [vmem:[%s3 + $0x10] sm:$0xf]
    %v616 = vld [vmem:[%s3 + $0x14] sm:$0xf]
    %v617 = vld [vmem:[#allocation3] sm:$0xff]
    %v618 = vld [vmem:[#allocation3 + $0x8] sm:$0xff]
    %v619 = vld [vmem:[#allocation3 + $0x10] sm:$0xff]
    %v620 = vld [vmem:[#allocation3 + $0x18] sm:$0xff]
    %v621 = vld [vmem:[#allocation3 + $0x20] sm:$0xff]
    %v622 = vld [vmem:[#allocation3 + $0x28] sm:$0xff]
    %v623 = vld [vmem:[#allocation3 + $0x30] sm:$0xff]
    %v624 = vld [vmem:[#allocation3 + $0x38] sm:$0xff]
    %v625 = vld [vmem:[#allocation3 + $0x40] sm:$0xff]
    %v626 = vld [vmem:[#allocation3 + $0x48] sm:$0xff]
    %v627 = vld [vmem:[#allocation3 + $0x50] sm:$0xff]
    %v628 = vld [vmem:[#allocation3 + $0x58] sm:$0xff]
    %v629 = vld [vmem:[#allocation3 + $0x60] sm:$0xff]
    %v630 = vld [vmem:[#allocation3 + $0x68] sm:$0xff]
    %v631 = vld [vmem:[#allocation3 + $0x70] sm:$0xff]
    %v632 = vld [vmem:[#allocation3 + $0x78] sm:$0xff]
    %v633 = vld [vmem:[#allocation3 + $0x80] sm:$0xff]
    %v634 = vld [vmem:[#allocation3 + $0x88] sm:$0xff]
    %v635 = vld [vmem:[#allocation3 + $0x90] sm:$0xff]
    %v636 = vld [vmem:[#allocation3 + $0x98] sm:$0xff]
    %v637 = vld [vmem:[#allocation3 + $0xa0] sm:$0xff]
    %v638 = vld [vmem:[#allocation3 + $0xa8] sm:$0xff]
    %v639 = vld [vmem:[#allocation3 + $0xb0] sm:$0xff]
    %v640 = vld [vmem:[#allocation3 + $0xb8] sm:$0xff]
    %v641 = vpack.c.bf16 %v621, %v617
    %v642 = vpack.c.bf16 %v622, %v618
    %v643 = vpack.c.bf16 %v623, %v619
    %v644 = vpack.c.bf16 %v624, %v620
    %v645 = vpack.c.bf16 %v629, %v625
    %v646 = vpack.c.bf16 %v630, %v626
    %v647 = vpack.c.bf16 %v631, %v627
    %v648 = vpack.c.bf16 %v632, %v628
    %v649 = vpack.c.bf16 %v637, %v633
    %v650 = vpack.c.bf16 %v638, %v634
    %v651 = vpack.c.bf16 %v639, %v635
    %v652 = vpack.c.bf16 %v640, %v636
    %v653 = vld [vmem:[%s4] sm:$0xff]
    %v654 = vld [vmem:[%s4 + $0x8] sm:$0xff]
    %v655 = vld [vmem:[%s4 + $0x10] sm:$0xff]
    %v656 = vld [vmem:[%s4 + $0x18] sm:$0xff]
    %v657 = vld [vmem:[%s4 + $0x20] sm:$0xff]
    %v658 = vld [vmem:[%s4 + $0x28] sm:$0xff]
    %660 = vset.pattern.permute.xlu0 0
    %661 = vperm.xlu0 %660, %v653
    %v662 = vpop.permute.xlu0 %661
    %665 = vset.pattern.permute.xlu0 0
    %666 = vperm.xlu0 %665, %v654
    %v667 = vpop.permute.xlu0 %666
    %670 = vset.pattern.permute.xlu0 0
    %671 = vperm.xlu0 %670, %v655
    %v672 = vpop.permute.xlu0 %671
    %675 = vset.pattern.permute.xlu0 0
    %676 = vperm.xlu0 %675, %v656
    %v677 = vpop.permute.xlu0 %676
    %680 = vset.pattern.permute.xlu0 0
    %681 = vperm.xlu0 %680, %v657
    %v682 = vpop.permute.xlu0 %681
    %685 = vset.pattern.permute.xlu0 0
    %686 = vperm.xlu0 %685, %v658
    %v687 = vpop.permute.xlu0 %686
    %v695 = vunpack.c.l.b16 %v611
    %v696 = vunpack.c.l.b16 %v612
    %v697 = vunpack.c.l.b16 %v613
    %v698 = vunpack.c.l.b16 %v614
    %v699 = vunpack.c.l.b16 %v615
    %v700 = vunpack.c.l.b16 %v616
    %v701 = vpack.c.b16 %v696, %v695
    %v702 = vpack.c.b16 %v698, %v697
    %v703 = vpack.c.b16 %v700, %v699
    %vm704 = vcmask 392192
    %v706 = vsel %vm704, %v701, 0
    %v709 = vsel %vm704, %v702, 0
    %v712 = vsel %vm704, %v703, 0
    %714 = vmatprep.subr.bf16.mxu0 %v642
    %715 = vmatpush1.bf16.msra.mxu0 %v641
    %716 = vmatprep.subr.bf16.mxu0 %v646
    %717 = vmatpush1.bf16.msra.mxu0 %v645
    %718 = vmatprep.subr.bf16.mxu0 %v650
    %719 = vmatpush1.bf16.msra.mxu0 %v649
    %720 = vmatprep.subr.bf16.mxu0 0
    %721 = vmatpush1.bf16.msra.mxu0 0
    %722 = vmatprep.subr.bf16.mxu0 0
    %723 = vmatpush1.bf16.msra.mxu0 0
    %724 = vmatprep.subr.bf16.mxu0 0
    %725 = vmatpush1.bf16.msra.mxu0 0
    %726 = vmatprep.subr.bf16.mxu0 0
    %727 = vmatpush1.bf16.msra.mxu0 0
    %728 = vmatprep.subr.bf16.mxu0 0
    %729 = vmatpush1.bf16.msra.mxu0 0
    %730 = vmatprep.subr.bf16.mxu0 0
    %731 = vmatpush1.bf16.msra.mxu0 0
    %732 = vmatprep.subr.bf16.mxu0 0
    %733 = vmatpush1.bf16.msra.mxu0 0
    %734 = vmatprep.subr.bf16.mxu0 0
    %735 = vmatpush1.bf16.msra.mxu0 0
    %736 = vmatprep.subr.bf16.mxu0 0
    %737 = vmatpush1.bf16.msra.mxu0 0
    %738 = vmatprep.subr.bf16.mxu0 0
    %739 = vmatpush1.bf16.msra.mxu0 0
    %740 = vmatprep.subr.bf16.mxu0 0
    %741 = vmatpush1.bf16.msra.mxu0 0
    %742 = vmatprep.subr.bf16.mxu0 0
    %743 = vmatpush1.bf16.msra.mxu0 0
    %744 = vmatprep.subr.bf16.mxu0 0
    %745 = vmatpush1.bf16.msra.mxu0 0
    %746 = vmatprep.mubr.bf16.mxu0 0
    %747 = vmatmul.mubr.bf16.gmra.mrb[0].mxu0 %v706
    %v748 = vpop.f32.mrb[0].mxu0
    %v749 = vadd.f32 %v662, %v748
    %v750 = vpop.f32.mrb[0].mxu0
    %v751 = vadd.f32 %v662, %v750
    %v752 = vpop.f32.mrb[0].mxu0
    %v753 = vadd.f32 %v667, %v752
    %v754 = vpop.f32.mrb[0].mxu0
    %v755 = vadd.f32 %v667, %v754
    %756 = vmatprep.mubr.bf16.mxu0 0
    %757 = vmatmul.mubr.bf16.gmra.mrb[0].mxu0 %v709
    %v758 = vpop.f32.mrb[0].mxu0
    %v759 = vadd.f32 %v672, %v758
    %v760 = vpop.f32.mrb[0].mxu0
    %v761 = vadd.f32 %v672, %v760
    %v762 = vpop.f32.mrb[0].mxu0
    %v763 = vadd.f32 %v677, %v762
    %v764 = vpop.f32.mrb[0].mxu0
    %v765 = vadd.f32 %v677, %v764
    %766 = vmatprep.mubr.bf16.mxu0 0
    %767 = vmatmul.mubr.bf16.gmra.mrb[0].mxu0 %v712
    %v768 = vpop.f32.mrb[0].mxu0
    %v769 = vadd.f32 %v682, %v768
    %v770 = vpop.f32.mrb[0].mxu0
    %v771 = vadd.f32 %v682, %v770
    %v772 = vpop.f32.mrb[0].mxu0
    %v773 = vadd.f32 %v687, %v772
    %v774 = vpop.f32.mrb[0].mxu0
    %v775 = vadd.f32 %v687, %v774
    %776 = vdwg.mxu0
    %777 = vmatprep.subr.bf16.mxu0 %v644
    %778 = vmatpush1.bf16.msra.mxu0 %v643
    %779 = vmatprep.subr.bf16.mxu0 %v648
    %780 = vmatpush1.bf16.msra.mxu0 %v647
    %781 = vmatprep.subr.bf16.mxu0 %v652
    %782 = vmatpush1.bf16.msra.mxu0 %v651
    %783 = vmatprep.subr.bf16.mxu0 0
    %784 = vmatpush1.bf16.msra.mxu0 0
    %785 = vmatprep.subr.bf16.mxu0 0
    %786 = vmatpush1.bf16.msra.mxu0 0
    %787 = vmatprep.subr.bf16.mxu0 0
    %788 = vmatpush1.bf16.msra.mxu0 0
    %789 = vmatprep.subr.bf16.mxu0 0
    %790 = vmatpush1.bf16.msra.mxu0 0
    %791 = vmatprep.subr.bf16.mxu0 0
    %792 = vmatpush1.bf16.msra.mxu0 0
    %793 = vmatprep.subr.bf16.mxu0 0
    %794 = vmatpush1.bf16.msra.mxu0 0
    %795 = vmatprep.subr.bf16.mxu0 0
    %796 = vmatpush1.bf16.msra.mxu0 0
    %797 = vmatprep.subr.bf16.mxu0 0
    %798 = vmatpush1.bf16.msra.mxu0 0
    %799 = vmatprep.subr.bf16.mxu0 0
    %800 = vmatpush1.bf16.msra.mxu0 0
    %801 = vmatprep.subr.bf16.mxu0 0
    %802 = vmatpush1.bf16.msra.mxu0 0
    %803 = vmatprep.subr.bf16.mxu0 0
    %804 = vmatpush1.bf16.msra.mxu0 0
    %805 = vmatprep.subr.bf16.mxu0 0
    %806 = vmatpush1.bf16.msra.mxu0 0
    %807 = vmatprep.subr.bf16.mxu0 0
    %808 = vmatpush1.bf16.msra.mxu0 0
    %809 = vmatprep.mubr.bf16.mxu0 0
    %810 = vmatmul.mubr.bf16.gmra.mrb[0].mxu0 %v706
    %v811 = vpop.f32.mrb[0].mxu0
    %v812 = vadd.f32 %v662, %v811
    %v813 = vpop.f32.mrb[0].mxu0
    %v814 = vadd.f32 %v662, %v813
    %v815 = vpop.f32.mrb[0].mxu0
    %v816 = vadd.f32 %v667, %v815
    %v817 = vpop.f32.mrb[0].mxu0
    %v818 = vadd.f32 %v667, %v817
    %819 = vmatprep.mubr.bf16.mxu0 0
    %820 = vmatmul.mubr.bf16.gmra.mrb[0].mxu0 %v709
    %v821 = vpop.f32.mrb[0].mxu0
    %v822 = vadd.f32 %v672, %v821
    %v823 = vpop.f32.mrb[0].mxu0
    %v824 = vadd.f32 %v672, %v823
    %v825 = vpop.f32.mrb[0].mxu0
    %v826 = vadd.f32 %v677, %v825
    %v827 = vpop.f32.mrb[0].mxu0
    %v828 = vadd.f32 %v677, %v827
    %829 = vmatprep.mubr.bf16.mxu0 0
    %830 = vmatmul.mubr.bf16.gmra.mrb[0].mxu0 %v712
    %v831 = vpop.f32.mrb[0].mxu0
    %v832 = vadd.f32 %v682, %v831
    %v833 = vpop.f32.mrb[0].mxu0
    %v834 = vadd.f32 %v682, %v833
    %v835 = vpop.f32.mrb[0].mxu0
    %v836 = vadd.f32 %v687, %v835
    %v837 = vpop.f32.mrb[0].mxu0
    %v838 = vadd.f32 %v687, %v837
    %839 = vdwg.mxu0
    %v840 = vmul.f32 %v749, %v759
    %v841 = vmul.f32 %v753, %v763
    %v842 = vadd.f32 %v840, %v841
    %v843 = vrot.slane %v842, 4
    %v844 = vadd.f32 %v842, %v843
    %v845 = vrot.slane %v844, 2
    %v846 = vadd.f32 %v844, %v845
    %v847 = vrot.slane %v846, 1
    %v848 = vadd.f32 %v846, %v847
    %v849 = vmul.f32 %v749, %v761
    %v850 = vmul.f32 %v753, %v765
    %v851 = vadd.f32 %v849, %v850
    %v852 = vrot.slane %v851, 4
    %v853 = vadd.f32 %v851, %v852
    %v854 = vrot.slane %v853, 2
    %v855 = vadd.f32 %v853, %v854
    %v856 = vrot.slane %v855, 1
    %v857 = vadd.f32 %v855, %v856
    %v858 = vmul.f32 %v749, %v822
    %v859 = vmul.f32 %v753, %v826
    %v860 = vadd.f32 %v858, %v859
    %v861 = vrot.slane %v860, 4
    %v862 = vadd.f32 %v860, %v861
    %v863 = vrot.slane %v862, 2
    %v864 = vadd.f32 %v862, %v863
    %v865 = vrot.slane %v864, 1
    %v866 = vadd.f32 %v864, %v865
    %v867 = vmul.f32 %v749, %v824
    %v868 = vmul.f32 %v753, %v828
    %v869 = vadd.f32 %v867, %v868
    %v870 = vrot.slane %v869, 4
    %v871 = vadd.f32 %v869, %v870
    %v872 = vrot.slane %v871, 2
    %v873 = vadd.f32 %v871, %v872
    %v874 = vrot.slane %v873, 1
    %v875 = vadd.f32 %v873, %v874
    %v876 = vmax.f32 %v848, %v857
    %v877 = vmax.f32 %v876, %v866
    %v878 = vmax.f32 %v877, %v875
    %v879 = vsub.f32 %v848, %v878
    %v880 = vmul.f32 %v879, 1.442695
    %v881 = vpow.pop %v880
    %v882 = vsub.f32 %v857, %v878
    %v883 = vmul.f32 %v882, 1.442695
    %v884 = vpow.pop %v883
    %v885 = vsub.f32 %v866, %v878
    %v886 = vmul.f32 %v885, 1.442695
    %v887 = vpow.pop %v886
    %v888 = vsub.f32 %v875, %v878
    %v889 = vmul.f32 %v888, 1.442695
    %v890 = vpow.pop %v889
    %v891 = vadd.f32 %v881, %v884
    %v892 = vadd.f32 %v891, %v887
    %v893 = vadd.f32 %v892, %v890
    %v894 = vrcp.pop %v893
    %v895 = vmul.f32 %v881, %v894
    %v896 = vmul.f32 %v895, %v769
    %v897 = vmul.f32 %v895, %v773
    %v898 = vmul.f32 %v884, %v894
    %v899 = vmul.f32 %v898, %v771
    %v900 = vmul.f32 %v898, %v775
    %v901 = vadd.f32 %v896, %v899
    %v902 = vadd.f32 %v897, %v900
    %v903 = vmul.f32 %v887, %v894
    %v904 = vmul.f32 %v903, %v832
    %v905 = vmul.f32 %v903, %v836
    %v906 = vadd.f32 %v901, %v904
    %v907 = vadd.f32 %v902, %v905
    %v908 = vmul.f32 %v890, %v894
    %v909 = vmul.f32 %v908, %v834
    %v910 = vmul.f32 %v908, %v838
    %v911 = vadd.f32 %v906, %v909
    %v912 = vadd.f32 %v907, %v910
    %913 = vst [vmem:[#allocation4] sm:$0xff] %v911
    %914 = vst [vmem:[#allocation4 + $0x20] sm:$0xff] %v912
    %v915 = vmul.f32 %v751, %v759
    %v916 = vmul.f32 %v755, %v763
    %v917 = vadd.f32 %v915, %v916
    %v918 = vrot.slane %v917, 4
    %v919 = vadd.f32 %v917, %v918
    %v920 = vrot.slane %v919, 2
    %v921 = vadd.f32 %v919, %v920
    %v922 = vrot.slane %v921, 1
    %v923 = vadd.f32 %v921, %v922
    %v924 = vmul.f32 %v751, %v761
    %v925 = vmul.f32 %v755, %v765
    %v926 = vadd.f32 %v924, %v925
    %v927 = vrot.slane %v926, 4
    %v928 = vadd.f32 %v926, %v927
    %v929 = vrot.slane %v928, 2
    %v930 = vadd.f32 %v928, %v929
    %v931 = vrot.slane %v930, 1
    %v932 = vadd.f32 %v930, %v931
    %v933 = vmul.f32 %v751, %v822
    %v934 = vmul.f32 %v755, %v826
    %v935 = vadd.f32 %v933, %v934
    %v936 = vrot.slane %v935, 4
    %v937 = vadd.f32 %v935, %v936
    %v938 = vrot.slane %v937, 2
    %v939 = vadd.f32 %v937, %v938
    %v940 = vrot.slane %v939, 1
    %v941 = vadd.f32 %v939, %v940
    %v942 = vmul.f32 %v751, %v824
    %v943 = vmul.f32 %v755, %v828
    %v944 = vadd.f32 %v942, %v943
    %v945 = vrot.slane %v944, 4
    %v946 = vadd.f32 %v944, %v945
    %v947 = vrot.slane %v946, 2
    %v948 = vadd.f32 %v946, %v947
    %v949 = vrot.slane %v948, 1
    %v950 = vadd.f32 %v948, %v949
    %v951 = vmax.f32 %v923, %v932
    %v952 = vmax.f32 %v951, %v941
    %v953 = vmax.f32 %v952, %v950
    %v954 = vsub.f32 %v923, %v953
    %v955 = vmul.f32 %v954, 1.442695
    %v956 = vpow.pop %v955
    %v957 = vsub.f32 %v932, %v953
    %v958 = vmul.f32 %v957, 1.442695
    %v959 = vpow.pop %v958
    %v960 = vsub.f32 %v941, %v953
    %v961 = vmul.f32 %v960, 1.442695
    %v962 = vpow.pop %v961
    %v963 = vsub.f32 %v950, %v953
    %v964 = vmul.f32 %v963, 1.442695
    %v965 = vpow.pop %v964
    %v966 = vadd.f32 %v956, %v959
    %v967 = vadd.f32 %v966, %v962
    %v968 = vadd.f32 %v967, %v965
    %v969 = vrcp.pop %v968
    %v970 = vmul.f32 %v956, %v969
    %v971 = vmul.f32 %v970, %v769
    %v972 = vmul.f32 %v970, %v773
    %v973 = vmul.f32 %v959, %v969
    %v974 = vmul.f32 %v973, %v771
    %v975 = vmul.f32 %v973, %v775
    %v976 = vadd.f32 %v971, %v974
    %v977 = vadd.f32 %v972, %v975
    %v978 = vmul.f32 %v962, %v969
    %v979 = vmul.f32 %v978, %v832
    %v980 = vmul.f32 %v978, %v836
    %v981 = vadd.f32 %v976, %v979
    %v982 = vadd.f32 %v977, %v980
    %v983 = vmul.f32 %v965, %v969
    %v984 = vmul.f32 %v983, %v834
    %v985 = vmul.f32 %v983, %v838
    %v986 = vadd.f32 %v981, %v984
    %v987 = vadd.f32 %v982, %v985
    %988 = vst [vmem:[#allocation4 + $0x8] sm:$0xff] %v986
    %989 = vst [vmem:[#allocation4 + $0x28] sm:$0xff] %v987
    %v990 = vmul.f32 %v812, %v759
    %v991 = vmul.f32 %v816, %v763
    %v992 = vadd.f32 %v990, %v991
    %v993 = vrot.slane %v992, 4
    %v994 = vadd.f32 %v992, %v993
    %v995 = vrot.slane %v994, 2
    %v996 = vadd.f32 %v994, %v995
    %v997 = vrot.slane %v996, 1
    %v998 = vadd.f32 %v996, %v997
    %v999 = vmul.f32 %v812, %v761
    %v1000 = vmul.f32 %v816, %v765
    %v1001 = vadd.f32 %v999, %v1000
    %v1002 = vrot.slane %v1001, 4
    %v1003 = vadd.f32 %v1001, %v1002
    %v1004 = vrot.slane %v1003, 2
    %v1005 = vadd.f32 %v1003, %v1004
    %v1006 = vrot.slane %v1005, 1
    %v1007 = vadd.f32 %v1005, %v1006
    %v1008 = vmul.f32 %v812, %v822
    %v1009 = vmul.f32 %v816, %v826
    %v1010 = vadd.f32 %v1008, %v1009
    %v1011 = vrot.slane %v1010, 4
    %v1012 = vadd.f32 %v1010, %v1011
    %v1013 = vrot.slane %v1012, 2
    %v1014 = vadd.f32 %v1012, %v1013
    %v1015 = vrot.slane %v1014, 1
    %v1016 = vadd.f32 %v1014, %v1015
    %v1017 = vmul.f32 %v812, %v824
    %v1018 = vmul.f32 %v816, %v828
    %v1019 = vadd.f32 %v1017, %v1018
    %v1020 = vrot.slane %v1019, 4
    %v1021 = vadd.f32 %v1019, %v1020
    %v1022 = vrot.slane %v1021, 2
    %v1023 = vadd.f32 %v1021, %v1022
    %v1024 = vrot.slane %v1023, 1
    %v1025 = vadd.f32 %v1023, %v1024
    %v1026 = vmax.f32 %v998, %v1007
    %v1027 = vmax.f32 %v1026, %v1016
    %v1028 = vmax.f32 %v1027, %v1025
    %v1029 = vsub.f32 %v998, %v1028
    %v1030 = vmul.f32 %v1029, 1.442695
    %v1031 = vpow.pop %v1030
    %v1032 = vsub.f32 %v1007, %v1028
    %v1033 = vmul.f32 %v1032, 1.442695
    %v1034 = vpow.pop %v1033
    %v1035 = vsub.f32 %v1016, %v1028
    %v1036 = vmul.f32 %v1035, 1.442695
    %v1037 = vpow.pop %v1036
    %v1038 = vsub.f32 %v1025, %v1028
    %v1039 = vmul.f32 %v1038, 1.442695
    %v1040 = vpow.pop %v1039
    %v1041 = vadd.f32 %v1031, %v1034
    %v1042 = vadd.f32 %v1041, %v1037
    %v1043 = vadd.f32 %v1042, %v1040
    %v1044 = vrcp.pop %v1043
    %v1045 = vmul.f32 %v1031, %v1044
    %v1046 = vmul.f32 %v1045, %v769
    %v1047 = vmul.f32 %v1045, %v773
    %v1048 = vmul.f32 %v1034, %v1044
    %v1049 = vmul.f32 %v1048, %v771
    %v1050 = vmul.f32 %v1048, %v775
    %v1051 = vadd.f32 %v1046, %v1049
    %v1052 = vadd.f32 %v1047, %v1050
    %v1053 = vmul.f32 %v1037, %v1044
    %v1054 = vmul.f32 %v1053, %v832
    %v1055 = vmul.f32 %v1053, %v836
    %v1056 = vadd.f32 %v1051, %v1054
    %v1057 = vadd.f32 %v1052, %v1055
    %v1058 = vmul.f32 %v1040, %v1044
    %v1059 = vmul.f32 %v1058, %v834
    %v1060 = vmul.f32 %v1058, %v838
    %v1061 = vadd.f32 %v1056, %v1059
    %v1062 = vadd.f32 %v1057, %v1060
    %1063 = vst [vmem:[#allocation4 + $0x10] sm:$0xff] %v1061
    %1064 = vst [vmem:[#allocation4 + $0x30] sm:$0xff] %v1062
    %v1065 = vmul.f32 %v814, %v759
    %v1066 = vmul.f32 %v818, %v763
    %v1067 = vadd.f32 %v1065, %v1066
    %v1068 = vrot.slane %v1067, 4
    %v1069 = vadd.f32 %v1067, %v1068
    %v1070 = vrot.slane %v1069, 2
    %v1071 = vadd.f32 %v1069, %v1070
    %v1072 = vrot.slane %v1071, 1
    %v1073 = vadd.f32 %v1071, %v1072
    %v1074 = vmul.f32 %v814, %v761
    %v1075 = vmul.f32 %v818, %v765
    %v1076 = vadd.f32 %v1074, %v1075
    %v1077 = vrot.slane %v1076, 4
    %v1078 = vadd.f32 %v1076, %v1077
    %v1079 = vrot.slane %v1078, 2
    %v1080 = vadd.f32 %v1078, %v1079
    %v1081 = vrot.slane %v1080, 1
    %v1082 = vadd.f32 %v1080, %v1081
    %v1083 = vmul.f32 %v814, %v822
    %v1084 = vmul.f32 %v818, %v826
    %v1085 = vadd.f32 %v1083, %v1084
    %v1086 = vrot.slane %v1085, 4
    %v1087 = vadd.f32 %v1085, %v1086
    %v1088 = vrot.slane %v1087, 2
    %v1089 = vadd.f32 %v1087, %v1088
    %v1090 = vrot.slane %v1089, 1
    %v1091 = vadd.f32 %v1089, %v1090
    %v1092 = vmul.f32 %v814, %v824
    %v1093 = vmul.f32 %v818, %v828
    %v1094 = vadd.f32 %v1092, %v1093
    %v1095 = vrot.slane %v1094, 4
    %v1096 = vadd.f32 %v1094, %v1095
    %v1097 = vrot.slane %v1096, 2
    %v1098 = vadd.f32 %v1096, %v1097
    %v1099 = vrot.slane %v1098, 1
    %v1100 = vadd.f32 %v1098, %v1099
    %v1101 = vmax.f32 %v1073, %v1082
    %v1102 = vmax.f32 %v1101, %v1091
    %v1103 = vmax.f32 %v1102, %v1100
    %v1104 = vsub.f32 %v1073, %v1103
    %v1105 = vmul.f32 %v1104, 1.442695
    %v1106 = vpow.pop %v1105
    %v1107 = vsub.f32 %v1082, %v1103
    %v1108 = vmul.f32 %v1107, 1.442695
    %v1109 = vpow.pop %v1108
    %v1110 = vsub.f32 %v1091, %v1103
    %v1111 = vmul.f32 %v1110, 1.442695
    %v1112 = vpow.pop %v1111
    %v1113 = vsub.f32 %v1100, %v1103
    %v1114 = vmul.f32 %v1113, 1.442695
    %v1115 = vpow.pop %v1114
    %v1116 = vadd.f32 %v1106, %v1109
    %v1117 = vadd.f32 %v1116, %v1112
    %v1118 = vadd.f32 %v1117, %v1115
    %v1119 = vrcp.pop %v1118
    %v1120 = vmul.f32 %v1106, %v1119
    %v1121 = vmul.f32 %v1120, %v769
    %v1122 = vmul.f32 %v1120, %v773
    %v1123 = vmul.f32 %v1109, %v1119
    %v1124 = vmul.f32 %v1123, %v771
    %v1125 = vmul.f32 %v1123, %v775
    %v1126 = vadd.f32 %v1121, %v1124
    %v1127 = vadd.f32 %v1122, %v1125
    %v1128 = vmul.f32 %v1112, %v1119
    %v1129 = vmul.f32 %v1128, %v832
    %v1130 = vmul.f32 %v1128, %v836
    %v1131 = vadd.f32 %v1126, %v1129
    %v1132 = vadd.f32 %v1127, %v1130
    %v1133 = vmul.f32 %v1115, %v1119
    %v1134 = vmul.f32 %v1133, %v834
    %v1135 = vmul.f32 %v1133, %v838
    %v1136 = vadd.f32 %v1131, %v1134
    %v1137 = vadd.f32 %v1132, %v1135
    %1138 = vst [vmem:[#allocation4 + $0x18] sm:$0xff] %v1136
    %1139 = vst [vmem:[#allocation4 + $0x38] sm:$0xff] %v1137
    %v1140 = vld [vmem:[%s7] sm:$0xf]
    %v1141 = vld [vmem:[%s7 + $0x4] sm:$0xf]
    %v1142 = vld [vmem:[#allocation4] sm:$0xff]
    %v1143 = vld [vmem:[#allocation4 + $0x8] sm:$0xff]
    %v1144 = vld [vmem:[#allocation4 + $0x10] sm:$0xff]
    %v1145 = vld [vmem:[#allocation4 + $0x18] sm:$0xff]
    %v1146 = vld [vmem:[#allocation4 + $0x20] sm:$0xff]
    %v1147 = vld [vmem:[#allocation4 + $0x28] sm:$0xff]
    %v1148 = vld [vmem:[#allocation4 + $0x30] sm:$0xff]
    %v1149 = vld [vmem:[#allocation4 + $0x38] sm:$0xff]
    %v1150 = vpack.c.bf16 %v1146, %v1142
    %v1151 = vpack.c.bf16 %v1147, %v1143
    %v1152 = vpack.c.bf16 %v1148, %v1144
    %v1153 = vpack.c.bf16 %v1149, %v1145
    %v1154 = vld [vmem:[%s8] sm:$0xff]
    %v1155 = vld [vmem:[%s8 + $0x8] sm:$0xff]
    %1157 = vset.pattern.permute.xlu0 0
    %1158 = vperm.xlu0 %1157, %v1154
    %v1159 = vpop.permute.xlu0 %1158
    %1162 = vset.pattern.permute.xlu0 0
    %1163 = vperm.xlu0 %1162, %v1155
    %v1164 = vpop.permute.xlu0 %1163
    %v1168 = vunpack.c.l.b16 %v1140
    %v1169 = vunpack.c.l.b16 %v1141
    %v1170 = vpack.c.b16 %v1169, %v1168
    %vm1171 = vcmask 130048
    %v1173 = vsel %vm1171, %v1170, 0
    %1175 = vmatprep.subr.bf16.mxu0 %v1151
    %1176 = vmatpush1.bf16.msra.mxu0 %v1150
    %1177 = vmatprep.subr.bf16.mxu0 0
    %1178 = vmatpush1.bf16.msra.mxu0 0
    %1179 = vmatprep.subr.bf16.mxu0 0
    %1180 = vmatpush1.bf16.msra.mxu0 0
    %1181 = vmatprep.subr.bf16.mxu0 0
    %1182 = vmatpush1.bf16.msra.mxu0 0
    %1183 = vmatprep.subr.bf16.mxu0 0
    %1184 = vmatpush1.bf16.msra.mxu0 0
    %1185 = vmatprep.subr.bf16.mxu0 0
    %1186 = vmatpush1.bf16.msra.mxu0 0
    %1187 = vmatprep.subr.bf16.mxu0 0
    %1188 = vmatpush1.bf16.msra.mxu0 0
    %1189 = vmatprep.subr.bf16.mxu0 0
    %1190 = vmatpush1.bf16.msra.mxu0 0
    %1191 = vmatprep.subr.bf16.mxu0 0
    %1192 = vmatpush1.bf16.msra.mxu0 0
    %1193 = vmatprep.subr.bf16.mxu0 0
    %1194 = vmatpush1.bf16.msra.mxu0 0
    %1195 = vmatprep.subr.bf16.mxu0 0
    %1196 = vmatpush1.bf16.msra.mxu0 0
    %1197 = vmatprep.subr.bf16.mxu0 0
    %1198 = vmatpush1.bf16.msra.mxu0 0
    %1199 = vmatprep.subr.bf16.mxu0 0
    %1200 = vmatpush1.bf16.msra.mxu0 0
    %1201 = vmatprep.subr.bf16.mxu0 0
    %1202 = vmatpush1.bf16.msra.mxu0 0
    %1203 = vmatprep.subr.bf16.mxu0 0
    %1204 = vmatpush1.bf16.msra.mxu0 0
    %1205 = vmatprep.subr.bf16.mxu0 0
    %1206 = vmatpush1.bf16.msra.mxu0 0
    %1207 = vmatprep.mubr.bf16.mxu0 0
    %1208 = vmatmul.mubr.bf16.gmra.mrb[0].mxu0 %v1173
    %v1209 = vpop.f32.mrb[0].mxu0
    %v1210 = vadd.f32 %v1159, %v1209
    %v1211 = vpop.f32.mrb[0].mxu0
    %v1212 = vadd.f32 %v1159, %v1211
    %v1213 = vpop.f32.mrb[0].mxu0
    %v1214 = vadd.f32 %v1164, %v1213
    %v1215 = vpop.f32.mrb[0].mxu0
    %v1216 = vadd.f32 %v1164, %v1215
    %1217 = vdwg.mxu0
    %1218 = vmatprep.subr.bf16.mxu0 %v1153
    %1219 = vmatpush1.bf16.msra.mxu0 %v1152
    %1220 = vmatprep.subr.bf16.mxu0 0
    %1221 = vmatpush1.bf16.msra.mxu0 0
    %1222 = vmatprep.subr.bf16.mxu0 0
    %1223 = vmatpush1.bf16.msra.mxu0 0
    %1224 = vmatprep.subr.bf16.mxu0 0
    %1225 = vmatpush1.bf16.msra.mxu0 0
    %1226 = vmatprep.subr.bf16.mxu0 0
    %1227 = vmatpush1.bf16.msra.mxu0 0
    %1228 = vmatprep.subr.bf16.mxu0 0
    %1229 = vmatpush1.bf16.msra.mxu0 0
    %1230 = vmatprep.subr.bf16.mxu0 0
    %1231 = vmatpush1.bf16.msra.mxu0 0
    %1232 = vmatprep.subr.bf16.mxu0 0
    %1233 = vmatpush1.bf16.msra.mxu0 0
    %1234 = vmatprep.subr.bf16.mxu0 0
    %1235 = vmatpush1.bf16.msra.mxu0 0
    %1236 = vmatprep.subr.bf16.mxu0 0
    %1237 = vmatpush1.bf16.msra.mxu0 0
    %1238 = vmatprep.subr.bf16.mxu0 0
    %1239 = vmatpush1.bf16.msra.mxu0 0
    %1240 = vmatprep.subr.bf16.mxu0 0
    %1241 = vmatpush1.bf16.msra.mxu0 0
    %1242 = vmatprep.subr.bf16.mxu0 0
    %1243 = vmatpush1.bf16.msra.mxu0 0
    %1244 = vmatprep.subr.bf16.mxu0 0
    %1245 = vmatpush1.bf16.msra.mxu0 0
    %1246 = vmatprep.subr.bf16.mxu0 0
    %1247 = vmatpush1.bf16.msra.mxu0 0
    %1248 = vmatprep.subr.bf16.mxu0 0
    %1249 = vmatpush1.bf16.msra.mxu0 0
    %1250 = vmatprep.mubr.bf16.mxu0 0
    %1251 = vmatmul.mubr.bf16.gmra.mrb[0].mxu0 %v1173
    %v1252 = vpop.f32.mrb[0].mxu0
    %v1253 = vadd.f32 %v1159, %v1252
    %v1254 = vpop.f32.mrb[0].mxu0
    %v1255 = vadd.f32 %v1159, %v1254
    %v1256 = vpop.f32.mrb[0].mxu0
    %v1257 = vadd.f32 %v1164, %v1256
    %v1258 = vpop.f32.mrb[0].mxu0
    %v1259 = vadd.f32 %v1164, %v1258
    %1260 = vdwg.mxu0
    %v1261 = vld [vmem:[%s9] sm:$0xf]
    %v1262 = vld [vmem:[%s9 + $0x4] sm:$0xf]
    %v1263 = vpack.c.bf16 %v1214, %v1210
    %v1264 = vpack.c.bf16 %v1216, %v1212
    %v1265 = vpack.c.bf16 %v1257, %v1253
    %v1266 = vpack.c.bf16 %v1259, %v1255
    %v1267 = vld [vmem:[%s10] sm:$0xff]
    %v1268 = vld [vmem:[%s10 + $0x8] sm:$0xff]
    %1270 = vset.pattern.permute.xlu0 0
    %1271 = vperm.xlu0 %1270, %v1267
    %v1272 = vpop.permute.xlu0 %1271
    %1275 = vset.pattern.permute.xlu0 0
    %1276 = vperm.xlu0 %1275, %v1268
    %v1277 = vpop.permute.xlu0 %1276
    %v1281 = vunpack.c.l.b16 %v1261
    %v1282 = vunpack.c.l.b16 %v1262
    %v1283 = vpack.c.b16 %v1282, %v1281
    %v1285 = vsel %vm1171, %v1283, 0
    %1287 = vmatprep.subr.bf16.mxu0 %v1264
    %1288 = vmatpush1.bf16.msra.mxu0 %v1263
    %1289 = vmatprep.subr.bf16.mxu0 0
    %1290 = vmatpush1.bf16.msra.mxu0 0
    %1291 = vmatprep.subr.bf16.mxu0 0
    %1292 = vmatpush1.bf16.msra.mxu0 0
    %1293 = vmatprep.subr.bf16.mxu0 0
    %1294 = vmatpush1.bf16.msra.mxu0 0
    %1295 = vmatprep.subr.bf16.mxu0 0
    %1296 = vmatpush1.bf16.msra.mxu0 0
    %1297 = vmatprep.subr.bf16.mxu0 0
    %1298 = vmatpush1.bf16.msra.mxu0 0
    %1299 = vmatprep.subr.bf16.mxu0 0
    %1300 = vmatpush1.bf16.msra.mxu0 0
    %1301 = vmatprep.subr.bf16.mxu0 0
    %1302 = vmatpush1.bf16.msra.mxu0 0
    %1303 = vmatprep.subr.bf16.mxu0 0
    %1304 = vmatpush1.bf16.msra.mxu0 0
    %1305 = vmatprep.subr.bf16.mxu0 0
    %1306 = vmatpush1.bf16.msra.mxu0 0
    %1307 = vmatprep.subr.bf16.mxu0 0
    %1308 = vmatpush1.bf16.msra.mxu0 0
    %1309 = vmatprep.subr.bf16.mxu0 0
    %1310 = vmatpush1.bf16.msra.mxu0 0
    %1311 = vmatprep.subr.bf16.mxu0 0
    %1312 = vmatpush1.bf16.msra.mxu0 0
    %1313 = vmatprep.subr.bf16.mxu0 0
    %1314 = vmatpush1.bf16.msra.mxu0 0
    %1315 = vmatprep.subr.bf16.mxu0 0
    %1316 = vmatpush1.bf16.msra.mxu0 0
    %1317 = vmatprep.subr.bf16.mxu0 0
    %1318 = vmatpush1.bf16.msra.mxu0 0
    %1319 = vmatprep.mubr.bf16.mxu0 0
    %1320 = vmatmul.mubr.bf16.gmra.mrb[0].mxu0 %v1285
    %v1321 = vpop.f32.mrb[0].mxu0
    %v1322 = vadd.f32 %v1272, %v1321
    %v1323 = vpop.f32.mrb[0].mxu0
    %v1324 = vadd.f32 %v1272, %v1323
    %v1325 = vpop.f32.mrb[0].mxu0
    %v1326 = vadd.f32 %v1277, %v1325
    %v1327 = vpop.f32.mrb[0].mxu0
    %v1328 = vadd.f32 %v1277, %v1327
    %1329 = vdwg.mxu0
    %1330 = vmatprep.subr.bf16.mxu0 %v1266
    %1331 = vmatpush1.bf16.msra.mxu0 %v1265
    %1332 = vmatprep.subr.bf16.mxu0 0
    %1333 = vmatpush1.bf16.msra.mxu0 0
    %1334 = vmatprep.subr.bf16.mxu0 0
    %1335 = vmatpush1.bf16.msra.mxu0 0
    %1336 = vmatprep.subr.bf16.mxu0 0
    %1337 = vmatpush1.bf16.msra.mxu0 0
    %1338 = vmatprep.subr.bf16.mxu0 0
    %1339 = vmatpush1.bf16.msra.mxu0 0
    %1340 = vmatprep.subr.bf16.mxu0 0
    %1341 = vmatpush1.bf16.msra.mxu0 0
    %1342 = vmatprep.subr.bf16.mxu0 0
    %1343 = vmatpush1.bf16.msra.mxu0 0
    %1344 = vmatprep.subr.bf16.mxu0 0
    %1345 = vmatpush1.bf16.msra.mxu0 0
    %1346 = vmatprep.subr.bf16.mxu0 0
    %1347 = vmatpush1.bf16.msra.mxu0 0
    %1348 = vmatprep.subr.bf16.mxu0 0
    %1349 = vmatpush1.bf16.msra.mxu0 0
    %1350 = vmatprep.subr.bf16.mxu0 0
    %1351 = vmatpush1.bf16.msra.mxu0 0
    %1352 = vmatprep.subr.bf16.mxu0 0
    %1353 = vmatpush1.bf16.msra.mxu0 0
    %1354 = vmatprep.subr.bf16.mxu0 0
    %1355 = vmatpush1.bf16.msra.mxu0 0
    %1356 = vmatprep.subr.bf16.mxu0 0
    %1357 = vmatpush1.bf16.msra.mxu0 0
    %1358 = vmatprep.subr.bf16.mxu0 0
    %1359 = vmatpush1.bf16.msra.mxu0 0
    %1360 = vmatprep.subr.bf16.mxu0 0
    %1361 = vmatpush1.bf16.msra.mxu0 0
    %1362 = vmatprep.mubr.bf16.mxu0 0
    %1363 = vmatmul.mubr.bf16.gmra.mrb[0].mxu0 %v1285
    %v1364 = vpop.f32.mrb[0].mxu0
    %v1365 = vadd.f32 %v1272, %v1364
    %v1366 = vpop.f32.mrb[0].mxu0
    %v1367 = vadd.f32 %v1272, %v1366
    %v1368 = vpop.f32.mrb[0].mxu0
    %v1369 = vadd.f32 %v1277, %v1368
    %v1370 = vpop.f32.mrb[0].mxu0
    %v1371 = vadd.f32 %v1277, %v1370
    %1372 = vdwg.mxu0
    %v1373 = vmul.f32 %v1322, 0.5
    %v1374 = vmul.f32 %v1324, 0.5
    %v1375 = vmul.f32 %v1365, 0.5
    %v1376 = vmul.f32 %v1367, 0.5
    %v1377 = vmul.f32 %v1326, 0.5
    %v1378 = vmul.f32 %v1328, 0.5
    %v1379 = vmul.f32 %v1369, 0.5
    %v1380 = vmul.f32 %v1371, 0.5
    %v1381 = vmul.f32 %v1322, 0.70710677
    %v1382 = vmul.f32 %v1324, 0.70710677
    %v1383 = vmul.f32 %v1365, 0.70710677
    %v1384 = vmul.f32 %v1367, 0.70710677
    %v1385 = vmul.f32 %v1326, 0.70710677
    %v1386 = vmul.f32 %v1328, 0.70710677
    %v1387 = vmul.f32 %v1369, 0.70710677
    %v1388 = vmul.f32 %v1371, 0.70710677
    %v1389 = verf.f32.pop %v1381
    %v1390 = verf.f32.pop %v1382
    %v1391 = verf.f32.pop %v1383
    %v1392 = verf.f32.pop %v1384
    %v1393 = verf.f32.pop %v1385
    %v1394 = verf.f32.pop %v1386
    %v1395 = verf.f32.pop %v1387
    %v1396 = verf.f32.pop %v1388
    %v1397 = vadd.f32 %v1389, 1.0
    %v1398 = vadd.f32 %v1390, 1.0
    %v1399 = vadd.f32 %v1391, 1.0
    %v1400 = vadd.f32 %v1392, 1.0
    %v1401 = vadd.f32 %v1393, 1.0
    %v1402 = vadd.f32 %v1394, 1.0
    %v1403 = vadd.f32 %v1395, 1.0
    %v1404 = vadd.f32 %v1396, 1.0
    %v1405 = vmul.f32 %v1373, %v1397
    %v1406 = vmul.f32 %v1374, %v1398
    %v1407 = vmul.f32 %v1375, %v1399
    %v1408 = vmul.f32 %v1376, %v1400
    %v1409 = vmul.f32 %v1377, %v1401
    %v1410 = vmul.f32 %v1378, %v1402
    %v1411 = vmul.f32 %v1379, %v1403
    %v1412 = vmul.f32 %v1380, %v1404
    %v1413 = vld [vmem:[%s11] sm:$0xf]
    %v1414 = vld [vmem:[%s11 + $0x4] sm:$0xf]
    %v1415 = vpack.c.bf16 %v1409, %v1405
    %v1416 = vpack.c.bf16 %v1410, %v1406
    %v1417 = vpack.c.bf16 %v1411, %v1407
    %v1418 = vpack.c.bf16 %v1412, %v1408
    %v1419 = vld [vmem:[%s12] sm:$0xff]
    %v1420 = vld [vmem:[%s12 + $0x8] sm:$0xff]
    %1422 = vset.pattern.permute.xlu0 0
    %1423 = vperm.xlu0 %1422, %v1419
    %v1424 = vpop.permute.xlu0 %1423
    %1427 = vset.pattern.permute.xlu0 0
    %1428 = vperm.xlu0 %1427, %v1420
    %v1429 = vpop.permute.xlu0 %1428
    %v1433 = vunpack.c.l.b16 %v1413
    %v1434 = vunpack.c.l.b16 %v1414
    %v1435 = vpack.c.b16 %v1434, %v1433
    %v1437 = vsel %vm1171, %v1435, 0
    %1439 = vmatprep.subr.bf16.mxu0 %v1416
    %1440 = vmatpush1.bf16.msra.mxu0 %v1415
    %1441 = vmatprep.subr.bf16.mxu0 0
    %1442 = vmatpush1.bf16.msra.mxu0 0
    %1443 = vmatprep.subr.bf16.mxu0 0
    %1444 = vmatpush1.bf16.msra.mxu0 0
    %1445 = vmatprep.subr.bf16.mxu0 0
    %1446 = vmatpush1.bf16.msra.mxu0 0
    %1447 = vmatprep.subr.bf16.mxu0 0
    %1448 = vmatpush1.bf16.msra.mxu0 0
    %1449 = vmatprep.subr.bf16.mxu0 0
    %1450 = vmatpush1.bf16.msra.mxu0 0
    %1451 = vmatprep.subr.bf16.mxu0 0
    %1452 = vmatpush1.bf16.msra.mxu0 0
    %1453 = vmatprep.subr.bf16.mxu0 0
    %1454 = vmatpush1.bf16.msra.mxu0 0
    %1455 = vmatprep.subr.bf16.mxu0 0
    %1456 = vmatpush1.bf16.msra.mxu0 0
    %1457 = vmatprep.subr.bf16.mxu0 0
    %1458 = vmatpush1.bf16.msra.mxu0 0
    %1459 = vmatprep.subr.bf16.mxu0 0
    %1460 = vmatpush1.bf16.msra.mxu0 0
    %1461 = vmatprep.subr.bf16.mxu0 0
    %1462 = vmatpush1.bf16.msra.mxu0 0
    %1463 = vmatprep.subr.bf16.mxu0 0
    %1464 = vmatpush1.bf16.msra.mxu0 0
    %1465 = vmatprep.subr.bf16.mxu0 0
    %1466 = vmatpush1.bf16.msra.mxu0 0
    %1467 = vmatprep.subr.bf16.mxu0 0
    %1468 = vmatpush1.bf16.msra.mxu0 0
    %1469 = vmatprep.subr.bf16.mxu0 0
    %1470 = vmatpush1.bf16.msra.mxu0 0
    %1471 = vmatprep.mubr.bf16.mxu0 0
    %1472 = vmatmul.mubr.bf16.gmra.mrb[0].mxu0 %v1437
    %v1473 = vpop.f32.mrb[0].mxu0
    %v1474 = vadd.f32 %v1424, %v1473
    %v1475 = vpop.f32.mrb[0].mxu0
    %v1476 = vadd.f32 %v1424, %v1475
    %v1477 = vpop.f32.mrb[0].mxu0
    %v1478 = vadd.f32 %v1429, %v1477
    %v1479 = vpop.f32.mrb[0].mxu0
    %v1480 = vadd.f32 %v1429, %v1479
    %1481 = vdwg.mxu0
    %1482 = vmatprep.subr.bf16.mxu0 %v1418
    %1483 = vmatpush1.bf16.msra.mxu0 %v1417
    %1484 = vmatprep.subr.bf16.mxu0 0
    %1485 = vmatpush1.bf16.msra.mxu0 0
    %1486 = vmatprep.subr.bf16.mxu0 0
    %1487 = vmatpush1.bf16.msra.mxu0 0
    %1488 = vmatprep.subr.bf16.mxu0 0
    %1489 = vmatpush1.bf16.msra.mxu0 0
    %1490 = vmatprep.subr.bf16.mxu0 0
    %1491 = vmatpush1.bf16.msra.mxu0 0
    %1492 = vmatprep.subr.bf16.mxu0 0
    %1493 = vmatpush1.bf16.msra.mxu0 0
    %1494 = vmatprep.subr.bf16.mxu0 0
    %1495 = vmatpush1.bf16.msra.mxu0 0
    %1496 = vmatprep.subr.bf16.mxu0 0
    %1497 = vmatpush1.bf16.msra.mxu0 0
    %1498 = vmatprep.subr.bf16.mxu0 0
    %1499 = vmatpush1.bf16.msra.mxu0 0
    %1500 = vmatprep.subr.bf16.mxu0 0
    %1501 = vmatpush1.bf16.msra.mxu0 0
    %1502 = vmatprep.subr.bf16.mxu0 0
    %1503 = vmatpush1.bf16.msra.mxu0 0
    %1504 = vmatprep.subr.bf16.mxu0 0
    %1505 = vmatpush1.bf16.msra.mxu0 0
    %1506 = vmatprep.subr.bf16.mxu0 0
    %1507 = vmatpush1.bf16.msra.mxu0 0
    %1508 = vmatprep.subr.bf16.mxu0 0
    %1509 = vmatpush1.bf16.msra.mxu0 0
    %1510 = vmatprep.subr.bf16.mxu0 0
    %1511 = vmatpush1.bf16.msra.mxu0 0
    %1512 = vmatprep.subr.bf16.mxu0 0
    %1513 = vmatpush1.bf16.msra.mxu0 0
    %1514 = vmatprep.mubr.bf16.mxu0 0
    %1515 = vmatmul.mubr.bf16.gmra.mrb[0].mxu0 %v1437
    %v1516 = vpop.f32.mrb[0].mxu0
    %v1517 = vadd.f32 %v1424, %v1516
    %v1518 = vpop.f32.mrb[0].mxu0
    %v1519 = vadd.f32 %v1424, %v1518
    %v1520 = vpop.f32.mrb[0].mxu0
    %v1521 = vadd.f32 %v1429, %v1520
    %v1522 = vpop.f32.mrb[0].mxu0
    %v1523 = vadd.f32 %v1429, %v1522
    %1524 = vdwg.mxu0
    %v1525 = vadd.f32 %v1210, %v1474
    %v1526 = vadd.f32 %v1212, %v1476
    %v1527 = vadd.f32 %v1253, %v1517
    %v1528 = vadd.f32 %v1255, %v1519
    %v1529 = vadd.f32 %v1214, %v1478
    %v1530 = vadd.f32 %v1216, %v1480
    %v1531 = vadd.f32 %v1257, %v1521
    %v1532 = vadd.f32 %v1259, %v1523
    %s1533 = scalar_lea.vmem %s5, 24
    %v1534 = vld [vmem:[%s1533] sm:$0xf]
    %v1535 = vld [vmem:[%s1533 + $0x4] sm:$0xf]
    %v1536 = vld [vmem:[%s1533 + $0x8] sm:$0xf]
    %v1537 = vld [vmem:[%s1533 + $0xc] sm:$0xf]
    %v1538 = vld [vmem:[%s1533 + $0x10] sm:$0xf]
    %v1539 = vld [vmem:[%s1533 + $0x14] sm:$0xf]
    %v1540 = vpack.c.bf16 %v1529, %v1525
    %v1541 = vpack.c.bf16 %v1530, %v1526
    %v1542 = vpack.c.bf16 %v1531, %v1527
    %v1543 = vpack.c.bf16 %v1532, %v1528
    %s1544 = scalar_lea.vmem %s6, 48
    %v1545 = vld [vmem:[%s1544] sm:$0xff]
    %v1546 = vld [vmem:[%s1544 + $0x8] sm:$0xff]
    %v1547 = vld [vmem:[%s1544 + $0x10] sm:$0xff]
    %v1548 = vld [vmem:[%s1544 + $0x18] sm:$0xff]
    %v1549 = vld [vmem:[%s1544 + $0x20] sm:$0xff]
    %v1550 = vld [vmem:[%s1544 + $0x28] sm:$0xff]
    %1552 = vset.pattern.permute.xlu0 0
    %1553 = vperm.xlu0 %1552, %v1545
    %v1554 = vpop.permute.xlu0 %1553
    %1557 = vset.pattern.permute.xlu0 0
    %1558 = vperm.xlu0 %1557, %v1546
    %v1559 = vpop.permute.xlu0 %1558
    %1562 = vset.pattern.permute.xlu0 0
    %1563 = vperm.xlu0 %1562, %v1547
    %v1564 = vpop.permute.xlu0 %1563
    %1567 = vset.pattern.permute.xlu0 0
    %1568 = vperm.xlu0 %1567, %v1548
    %v1569 = vpop.permute.xlu0 %1568
    %1572 = vset.pattern.permute.xlu0 0
    %1573 = vperm.xlu0 %1572, %v1549
    %v1574 = vpop.permute.xlu0 %1573
    %1577 = vset.pattern.permute.xlu0 0
    %1578 = vperm.xlu0 %1577, %v1550
    %v1579 = vpop.permute.xlu0 %1578
    %v1587 = vunpack.c.l.b16 %v1534
    %v1588 = vunpack.c.l.b16 %v1535
    %v1589 = vunpack.c.l.b16 %v1536
    %v1590 = vunpack.c.l.b16 %v1537
    %v1591 = vunpack.c.l.b16 %v1538
    %v1592 = vunpack.c.l.b16 %v1539
    %v1593 = vpack.c.b16 %v1588, %v1587
    %v1594 = vpack.c.b16 %v1590, %v1589
    %v1595 = vpack.c.b16 %v1592, %v1591
    %v1597 = vsel %vm1171, %v1593, 0
    %v1600 = vsel %vm1171, %v1594, 0
    %v1603 = vsel %vm1171, %v1595, 0
    %1605 = vmatprep.subr.bf16.mxu0 %v1541
    %1606 = vmatpush1.bf16.msra.mxu0 %v1540
    %1607 = vmatprep.subr.bf16.mxu0 0
    %1608 = vmatpush1.bf16.msra.mxu0 0
    %1609 = vmatprep.subr.bf16.mxu0 0
    %1610 = vmatpush1.bf16.msra.mxu0 0
    %1611 = vmatprep.subr.bf16.mxu0 0
    %1612 = vmatpush1.bf16.msra.mxu0 0
    %1613 = vmatprep.subr.bf16.mxu0 0
    %1614 = vmatpush1.bf16.msra.mxu0 0
    %1615 = vmatprep.subr.bf16.mxu0 0
    %1616 = vmatpush1.bf16.msra.mxu0 0
    %1617 = vmatprep.subr.bf16.mxu0 0
    %1618 = vmatpush1.bf16.msra.mxu0 0
    %1619 = vmatprep.subr.bf16.mxu0 0
    %1620 = vmatpush1.bf16.msra.mxu0 0
    %1621 = vmatprep.subr.bf16.mxu0 0
    %1622 = vmatpush1.bf16.msra.mxu0 0
    %1623 = vmatprep.subr.bf16.mxu0 0
    %1624 = vmatpush1.bf16.msra.mxu0 0
    %1625 = vmatprep.subr.bf16.mxu0 0
    %1626 = vmatpush1.bf16.msra.mxu0 0
    %1627 = vmatprep.subr.bf16.mxu0 0
    %1628 = vmatpush1.bf16.msra.mxu0 0
    %1629 = vmatprep.subr.bf16.mxu0 0
    %1630 = vmatpush1.bf16.msra.mxu0 0
    %1631 = vmatprep.subr.bf16.mxu0 0
    %1632 = vmatpush1.bf16.msra.mxu0 0
    %1633 = vmatprep.subr.bf16.mxu0 0
    %1634 = vmatpush1.bf16.msra.mxu0 0
    %1635 = vmatprep.subr.bf16.mxu0 0
    %1636 = vmatpush1.bf16.msra.mxu0 0
    %1637 = vmatprep.mubr.bf16.mxu0 0
    %1638 = vmatmul.mubr.bf16.gmra.mrb[0].mxu0 %v1597
    %v1639 = vpop.f32.mrb[0].mxu0
    %v1640 = vadd.f32 %v1554, %v1639
    %v1641 = vpop.f32.mrb[0].mxu0
    %v1642 = vadd.f32 %v1554, %v1641
    %v1643 = vpop.f32.mrb[0].mxu0
    %v1644 = vadd.f32 %v1559, %v1643
    %v1645 = vpop.f32.mrb[0].mxu0
    %v1646 = vadd.f32 %v1559, %v1645
    %1647 = vmatprep.mubr.bf16.mxu0 0
    %1648 = vmatmul.mubr.bf16.gmra.mrb[0].mxu0 %v1600
    %v1649 = vpop.f32.mrb[0].mxu0
    %v1650 = vadd.f32 %v1564, %v1649
    %v1651 = vpop.f32.mrb[0].mxu0
    %v1652 = vadd.f32 %v1564, %v1651
    %v1653 = vpop.f32.mrb[0].mxu0
    %v1654 = vadd.f32 %v1569, %v1653
    %v1655 = vpop.f32.mrb[0].mxu0
    %v1656 = vadd.f32 %v1569, %v1655
    %1657 = vmatprep.mubr.bf16.mxu0 0
    %1658 = vmatmul.mubr.bf16.gmra.mrb[0].mxu0 %v1603
    %v1659 = vpop.f32.mrb[0].mxu0
    %v1660 = vadd.f32 %v1574, %v1659
    %v1661 = vpop.f32.mrb[0].mxu0
    %v1662 = vadd.f32 %v1574, %v1661
    %v1663 = vpop.f32.mrb[0].mxu0
    %v1664 = vadd.f32 %v1579, %v1663
    %v1665 = vpop.f32.mrb[0].mxu0
    %v1666 = vadd.f32 %v1579, %v1665
    %1667 = vdwg.mxu0
    %1668 = vmatprep.subr.bf16.mxu0 %v1543
    %1669 = vmatpush1.bf16.msra.mxu0 %v1542
    %1670 = vmatprep.subr.bf16.mxu0 0
    %1671 = vmatpush1.bf16.msra.mxu0 0
    %1672 = vmatprep.subr.bf16.mxu0 0
    %1673 = vmatpush1.bf16.msra.mxu0 0
    %1674 = vmatprep.subr.bf16.mxu0 0
    %1675 = vmatpush1.bf16.msra.mxu0 0
    %1676 = vmatprep.subr.bf16.mxu0 0
    %1677 = vmatpush1.bf16.msra.mxu0 0
    %1678 = vmatprep.subr.bf16.mxu0 0
    %1679 = vmatpush1.bf16.msra.mxu0 0
    %1680 = vmatprep.subr.bf16.mxu0 0
    %1681 = vmatpush1.bf16.msra.mxu0 0
    %1682 = vmatprep.subr.bf16.mxu0 0
    %1683 = vmatpush1.bf16.msra.mxu0 0
    %1684 = vmatprep.subr.bf16.mxu0 0
    %1685 = vmatpush1.bf16.msra.mxu0 0
    %1686 = vmatprep.subr.bf16.mxu0 0
    %1687 = vmatpush1.bf16.msra.mxu0 0
    %1688 = vmatprep.subr.bf16.mxu0 0
    %1689 = vmatpush1.bf16.msra.mxu0 0
    %1690 = vmatprep.subr.bf16.mxu0 0
    %1691 = vmatpush1.bf16.msra.mxu0 0
    %1692 = vmatprep.subr.bf16.mxu0 0
    %1693 = vmatpush1.bf16.msra.mxu0 0
    %1694 = vmatprep.subr.bf16.mxu0 0
    %1695 = vmatpush1.bf16.msra.mxu0 0
    %1696 = vmatprep.subr.bf16.mxu0 0
    %1697 = vmatpush1.bf16.msra.mxu0 0
    %1698 = vmatprep.subr.bf16.mxu0 0
    %1699 = vmatpush1.bf16.msra.mxu0 0
    %1700 = vmatprep.mubr.bf16.mxu0 0
    %1701 = vmatmul.mubr.bf16.gmra.mrb[0].mxu0 %v1597
    %v1702 = vpop.f32.mrb[0].mxu0
    %v1703 = vadd.f32 %v1554, %v1702
    %v1704 = vpop.f32.mrb[0].mxu0
    %v1705 = vadd.f32 %v1554, %v1704
    %v1706 = vpop.f32.mrb[0].mxu0
    %v1707 = vadd.f32 %v1559, %v1706
    %v1708 = vpop.f32.mrb[0].mxu0
    %v1709 = vadd.f32 %v1559, %v1708
    %1710 = vmatprep.mubr.bf16.mxu0 0
    %1711 = vmatmul.mubr.bf16.gmra.mrb[0].mxu0 %v1600
    %v1712 = vpop.f32.mrb[0].mxu0
    %v1713 = vadd.f32 %v1564, %v1712
    %v1714 = vpop.f32.mrb[0].mxu0
    %v1715 = vadd.f32 %v1564, %v1714
    %v1716 = vpop.f32.mrb[0].mxu0
    %v1717 = vadd.f32 %v1569, %v1716
    %v1718 = vpop.f32.mrb[0].mxu0
    %v1719 = vadd.f32 %v1569, %v1718
    %1720 = vmatprep.mubr.bf16.mxu0 0
    %1721 = vmatmul.mubr.bf16.gmra.mrb[0].mxu0 %v1603
    %v1722 = vpop.f32.mrb[0].mxu0
    %v1723 = vadd.f32 %v1574, %v1722
    %v1724 = vpop.f32.mrb[0].mxu0
    %v1725 = vadd.f32 %v1574, %v1724
    %v1726 = vpop.f32.mrb[0].mxu0
    %v1727 = vadd.f32 %v1579, %v1726
    %v1728 = vpop.f32.mrb[0].mxu0
    %v1729 = vadd.f32 %v1579, %v1728
    %1730 = vdwg.mxu0
    %v1731 = vmul.f32 %v1640, %v1650
    %v1732 = vmul.f32 %v1644, %v1654
    %v1733 = vadd.f32 %v1731, %v1732
    %v1734 = vrot.slane %v1733, 4
    %v1735 = vadd.f32 %v1733, %v1734
    %v1736 = vrot.slane %v1735, 2
    %v1737 = vadd.f32 %v1735, %v1736
    %v1738 = vrot.slane %v1737, 1
    %v1739 = vadd.f32 %v1737, %v1738
    %v1740 = vmul.f32 %v1640, %v1652
    %v1741 = vmul.f32 %v1644, %v1656
    %v1742 = vadd.f32 %v1740, %v1741
    %v1743 = vrot.slane %v1742, 4
    %v1744 = vadd.f32 %v1742, %v1743
    %v1745 = vrot.slane %v1744, 2
    %v1746 = vadd.f32 %v1744, %v1745
    %v1747 = vrot.slane %v1746, 1
    %v1748 = vadd.f32 %v1746, %v1747
    %v1749 = vmul.f32 %v1640, %v1713
    %v1750 = vmul.f32 %v1644, %v1717
    %v1751 = vadd.f32 %v1749, %v1750
    %v1752 = vrot.slane %v1751, 4
    %v1753 = vadd.f32 %v1751, %v1752
    %v1754 = vrot.slane %v1753, 2
    %v1755 = vadd.f32 %v1753, %v1754
    %v1756 = vrot.slane %v1755, 1
    %v1757 = vadd.f32 %v1755, %v1756
    %v1758 = vmul.f32 %v1640, %v1715
    %v1759 = vmul.f32 %v1644, %v1719
    %v1760 = vadd.f32 %v1758, %v1759
    %v1761 = vrot.slane %v1760, 4
    %v1762 = vadd.f32 %v1760, %v1761
    %v1763 = vrot.slane %v1762, 2
    %v1764 = vadd.f32 %v1762, %v1763
    %v1765 = vrot.slane %v1764, 1
    %v1766 = vadd.f32 %v1764, %v1765
    %v1767 = vmax.f32 %v1739, %v1748
    %v1768 = vmax.f32 %v1767, %v1757
    %v1769 = vmax.f32 %v1768, %v1766
    %v1770 = vsub.f32 %v1739, %v1769
    %v1771 = vmul.f32 %v1770, 1.442695
    %v1772 = vpow.pop %v1771
    %v1773 = vsub.f32 %v1748, %v1769
    %v1774 = vmul.f32 %v1773, 1.442695
    %v1775 = vpow.pop %v1774
    %v1776 = vsub.f32 %v1757, %v1769
    %v1777 = vmul.f32 %v1776, 1.442695
    %v1778 = vpow.pop %v1777
    %v1779 = vsub.f32 %v1766, %v1769
    %v1780 = vmul.f32 %v1779, 1.442695
    %v1781 = vpow.pop %v1780
    %v1782 = vadd.f32 %v1772, %v1775
    %v1783 = vadd.f32 %v1782, %v1778
    %v1784 = vadd.f32 %v1783, %v1781
    %v1785 = vrcp.pop %v1784
    %v1786 = vmul.f32 %v1772, %v1785
    %v1787 = vmul.f32 %v1786, %v1660
    %v1788 = vmul.f32 %v1786, %v1664
    %v1789 = vmul.f32 %v1775, %v1785
    %v1790 = vmul.f32 %v1789, %v1662
    %v1791 = vmul.f32 %v1789, %v1666
    %v1792 = vadd.f32 %v1787, %v1790
    %v1793 = vadd.f32 %v1788, %v1791
    %v1794 = vmul.f32 %v1778, %v1785
    %v1795 = vmul.f32 %v1794, %v1723
    %v1796 = vmul.f32 %v1794, %v1727
    %v1797 = vadd.f32 %v1792, %v1795
    %v1798 = vadd.f32 %v1793, %v1796
    %v1799 = vmul.f32 %v1781, %v1785
    %v1800 = vmul.f32 %v1799, %v1725
    %v1801 = vmul.f32 %v1799, %v1729
    %v1802 = vadd.f32 %v1797, %v1800
    %v1803 = vadd.f32 %v1798, %v1801
    %1804 = vst [vmem:[#allocation4] sm:$0xff] %v1802
    %1805 = vst [vmem:[#allocation4 + $0x20] sm:$0xff] %v1803
    %v1806 = vmul.f32 %v1642, %v1650
    %v1807 = vmul.f32 %v1646, %v1654
    %v1808 = vadd.f32 %v1806, %v1807
    %v1809 = vrot.slane %v1808, 4
    %v1810 = vadd.f32 %v1808, %v1809
    %v1811 = vrot.slane %v1810, 2
    %v1812 = vadd.f32 %v1810, %v1811
    %v1813 = vrot.slane %v1812, 1
    %v1814 = vadd.f32 %v1812, %v1813
    %v1815 = vmul.f32 %v1642, %v1652
    %v1816 = vmul.f32 %v1646, %v1656
    %v1817 = vadd.f32 %v1815, %v1816
    %v1818 = vrot.slane %v1817, 4
    %v1819 = vadd.f32 %v1817, %v1818
    %v1820 = vrot.slane %v1819, 2
    %v1821 = vadd.f32 %v1819, %v1820
    %v1822 = vrot.slane %v1821, 1
    %v1823 = vadd.f32 %v1821, %v1822
    %v1824 = vmul.f32 %v1642, %v1713
    %v1825 = vmul.f32 %v1646, %v1717
    %v1826 = vadd.f32 %v1824, %v1825
    %v1827 = vrot.slane %v1826, 4
    %v1828 = vadd.f32 %v1826, %v1827
    %v1829 = vrot.slane %v1828, 2
    %v1830 = vadd.f32 %v1828, %v1829
    %v1831 = vrot.slane %v1830, 1
    %v1832 = vadd.f32 %v1830, %v1831
    %v1833 = vmul.f32 %v1642, %v1715
    %v1834 = vmul.f32 %v1646, %v1719
    %v1835 = vadd.f32 %v1833, %v1834
    %v1836 = vrot.slane %v1835, 4
    %v1837 = vadd.f32 %v1835, %v1836
    %v1838 = vrot.slane %v1837, 2
    %v1839 = vadd.f32 %v1837, %v1838
    %v1840 = vrot.slane %v1839, 1
    %v1841 = vadd.f32 %v1839, %v1840
    %v1842 = vmax.f32 %v1814, %v1823
    %v1843 = vmax.f32 %v1842, %v1832
    %v1844 = vmax.f32 %v1843, %v1841
    %v1845 = vsub.f32 %v1814, %v1844
    %v1846 = vmul.f32 %v1845, 1.442695
    %v1847 = vpow.pop %v1846
    %v1848 = vsub.f32 %v1823, %v1844
    %v1849 = vmul.f32 %v1848, 1.442695
    %v1850 = vpow.pop %v1849
    %v1851 = vsub.f32 %v1832, %v1844
    %v1852 = vmul.f32 %v1851, 1.442695
    %v1853 = vpow.pop %v1852
    %v1854 = vsub.f32 %v1841, %v1844
    %v1855 = vmul.f32 %v1854, 1.442695
    %v1856 = vpow.pop %v1855
    %v1857 = vadd.f32 %v1847, %v1850
    %v1858 = vadd.f32 %v1857, %v1853
    %v1859 = vadd.f32 %v1858, %v1856
    %v1860 = vrcp.pop %v1859
    %v1861 = vmul.f32 %v1847, %v1860
    %v1862 = vmul.f32 %v1861, %v1660
    %v1863 = vmul.f32 %v1861, %v1664
    %v1864 = vmul.f32 %v1850, %v1860
    %v1865 = vmul.f32 %v1864, %v1662
    %v1866 = vmul.f32 %v1864, %v1666
    %v1867 = vadd.f32 %v1862, %v1865
    %v1868 = vadd.f32 %v1863, %v1866
    %v1869 = vmul.f32 %v1853, %v1860
    %v1870 = vmul.f32 %v1869, %v1723
    %v1871 = vmul.f32 %v1869, %v1727
    %v1872 = vadd.f32 %v1867, %v1870
    %v1873 = vadd.f32 %v1868, %v1871
    %v1874 = vmul.f32 %v1856, %v1860
    %v1875 = vmul.f32 %v1874, %v1725
    %v1876 = vmul.f32 %v1874, %v1729
    %v1877 = vadd.f32 %v1872, %v1875
    %v1878 = vadd.f32 %v1873, %v1876
    %1879 = vst [vmem:[#allocation4 + $0x8] sm:$0xff] %v1877
    %1880 = vst [vmem:[#allocation4 + $0x28] sm:$0xff] %v1878
    %v1881 = vmul.f32 %v1703, %v1650
    %v1882 = vmul.f32 %v1707, %v1654
    %v1883 = vadd.f32 %v1881, %v1882
    %v1884 = vrot.slane %v1883, 4
    %v1885 = vadd.f32 %v1883, %v1884
    %v1886 = vrot.slane %v1885, 2
    %v1887 = vadd.f32 %v1885, %v1886
    %v1888 = vrot.slane %v1887, 1
    %v1889 = vadd.f32 %v1887, %v1888
    %v1890 = vmul.f32 %v1703, %v1652
    %v1891 = vmul.f32 %v1707, %v1656
    %v1892 = vadd.f32 %v1890, %v1891
    %v1893 = vrot.slane %v1892, 4
    %v1894 = vadd.f32 %v1892, %v1893
    %v1895 = vrot.slane %v1894, 2
    %v1896 = vadd.f32 %v1894, %v1895
    %v1897 = vrot.slane %v1896, 1
    %v1898 = vadd.f32 %v1896, %v1897
    %v1899 = vmul.f32 %v1703, %v1713
    %v1900 = vmul.f32 %v1707, %v1717
    %v1901 = vadd.f32 %v1899, %v1900
    %v1902 = vrot.slane %v1901, 4
    %v1903 = vadd.f32 %v1901, %v1902
    %v1904 = vrot.slane %v1903, 2
    %v1905 = vadd.f32 %v1903, %v1904
    %v1906 = vrot.slane %v1905, 1
    %v1907 = vadd.f32 %v1905, %v1906
    %v1908 = vmul.f32 %v1703, %v1715
    %v1909 = vmul.f32 %v1707, %v1719
    %v1910 = vadd.f32 %v1908, %v1909
    %v1911 = vrot.slane %v1910, 4
    %v1912 = vadd.f32 %v1910, %v1911
    %v1913 = vrot.slane %v1912, 2
    %v1914 = vadd.f32 %v1912, %v1913
    %v1915 = vrot.slane %v1914, 1
    %v1916 = vadd.f32 %v1914, %v1915
    %v1917 = vmax.f32 %v1889, %v1898
    %v1918 = vmax.f32 %v1917, %v1907
    %v1919 = vmax.f32 %v1918, %v1916
    %v1920 = vsub.f32 %v1889, %v1919
    %v1921 = vmul.f32 %v1920, 1.442695
    %v1922 = vpow.pop %v1921
    %v1923 = vsub.f32 %v1898, %v1919
    %v1924 = vmul.f32 %v1923, 1.442695
    %v1925 = vpow.pop %v1924
    %v1926 = vsub.f32 %v1907, %v1919
    %v1927 = vmul.f32 %v1926, 1.442695
    %v1928 = vpow.pop %v1927
    %v1929 = vsub.f32 %v1916, %v1919
    %v1930 = vmul.f32 %v1929, 1.442695
    %v1931 = vpow.pop %v1930
    %v1932 = vadd.f32 %v1922, %v1925
    %v1933 = vadd.f32 %v1932, %v1928
    %v1934 = vadd.f32 %v1933, %v1931
    %v1935 = vrcp.pop %v1934
    %v1936 = vmul.f32 %v1922, %v1935
    %v1937 = vmul.f32 %v1936, %v1660
    %v1938 = vmul.f32 %v1936, %v1664
    %v1939 = vmul.f32 %v1925, %v1935
    %v1940 = vmul.f32 %v1939, %v1662
    %v1941 = vmul.f32 %v1939, %v1666
    %v1942 = vadd.f32 %v1937, %v1940
    %v1943 = vadd.f32 %v1938, %v1941
    %v1944 = vmul.f32 %v1928, %v1935
    %v1945 = vmul.f32 %v1944, %v1723
    %v1946 = vmul.f32 %v1944, %v1727
    %v1947 = vadd.f32 %v1942, %v1945
    %v1948 = vadd.f32 %v1943, %v1946
    %v1949 = vmul.f32 %v1931, %v1935
    %v1950 = vmul.f32 %v1949, %v1725
    %v1951 = vmul.f32 %v1949, %v1729
    %v1952 = vadd.f32 %v1947, %v1950
    %v1953 = vadd.f32 %v1948, %v1951
    %1954 = vst [vmem:[#allocation4 + $0x10] sm:$0xff] %v1952
    %1955 = vst [vmem:[#allocation4 + $0x30] sm:$0xff] %v1953
    %v1956 = vmul.f32 %v1705, %v1650
    %v1957 = vmul.f32 %v1709, %v1654
    %v1958 = vadd.f32 %v1956, %v1957
    %v1959 = vrot.slane %v1958, 4
    %v1960 = vadd.f32 %v1958, %v1959
    %v1961 = vrot.slane %v1960, 2
    %v1962 = vadd.f32 %v1960, %v1961
    %v1963 = vrot.slane %v1962, 1
    %v1964 = vadd.f32 %v1962, %v1963
    %v1965 = vmul.f32 %v1705, %v1652
    %v1966 = vmul.f32 %v1709, %v1656
    %v1967 = vadd.f32 %v1965, %v1966
    %v1968 = vrot.slane %v1967, 4
    %v1969 = vadd.f32 %v1967, %v1968
    %v1970 = vrot.slane %v1969, 2
    %v1971 = vadd.f32 %v1969, %v1970
    %v1972 = vrot.slane %v1971, 1
    %v1973 = vadd.f32 %v1971, %v1972
    %v1974 = vmul.f32 %v1705, %v1713
    %v1975 = vmul.f32 %v1709, %v1717
    %v1976 = vadd.f32 %v1974, %v1975
    %v1977 = vrot.slane %v1976, 4
    %v1978 = vadd.f32 %v1976, %v1977
    %v1979 = vrot.slane %v1978, 2
    %v1980 = vadd.f32 %v1978, %v1979
    %v1981 = vrot.slane %v1980, 1
    %v1982 = vadd.f32 %v1980, %v1981
    %v1983 = vmul.f32 %v1705, %v1715
    %v1984 = vmul.f32 %v1709, %v1719
    %v1985 = vadd.f32 %v1983, %v1984
    %v1986 = vrot.slane %v1985, 4
    %v1987 = vadd.f32 %v1985, %v1986
    %v1988 = vrot.slane %v1987, 2
    %v1989 = vadd.f32 %v1987, %v1988
    %v1990 = vrot.slane %v1989, 1
    %v1991 = vadd.f32 %v1989, %v1990
    %v1992 = vmax.f32 %v1964, %v1973
    %v1993 = vmax.f32 %v1992, %v1982
    %v1994 = vmax.f32 %v1993, %v1991
    %v1995 = vsub.f32 %v1964, %v1994
    %v1996 = vmul.f32 %v1995, 1.442695
    %v1997 = vpow.pop %v1996
    %v1998 = vsub.f32 %v1973, %v1994
    %v1999 = vmul.f32 %v1998, 1.442695
    %v2000 = vpow.pop %v1999
    %v2001 = vsub.f32 %v1982, %v1994
    %v2002 = vmul.f32 %v2001, 1.442695
    %v2003 = vpow.pop %v2002
    %v2004 = vsub.f32 %v1991, %v1994
    %v2005 = vmul.f32 %v2004, 1.442695
    %v2006 = vpow.pop %v2005
    %v2007 = vadd.f32 %v1997, %v2000
    %v2008 = vadd.f32 %v2007, %v2003
    %v2009 = vadd.f32 %v2008, %v2006
    %v2010 = vrcp.pop %v2009
    %v2011 = vmul.f32 %v1997, %v2010
    %v2012 = vmul.f32 %v2011, %v1660
    %v2013 = vmul.f32 %v2011, %v1664
    %v2014 = vmul.f32 %v2000, %v2010
    %v2015 = vmul.f32 %v2014, %v1662
    %v2016 = vmul.f32 %v2014, %v1666
    %v2017 = vadd.f32 %v2012, %v2015
    %v2018 = vadd.f32 %v2013, %v2016
    %v2019 = vmul.f32 %v2003, %v2010
    %v2020 = vmul.f32 %v2019, %v1723
    %v2021 = vmul.f32 %v2019, %v1727
    %v2022 = vadd.f32 %v2017, %v2020
    %v2023 = vadd.f32 %v2018, %v2021
    %v2024 = vmul.f32 %v2006, %v2010
    %v2025 = vmul.f32 %v2024, %v1725
    %v2026 = vmul.f32 %v2024, %v1729
    %v2027 = vadd.f32 %v2022, %v2025
    %v2028 = vadd.f32 %v2023, %v2026
    %2029 = vst [vmem:[#allocation4 + $0x18] sm:$0xff] %v2027
    %2030 = vst [vmem:[#allocation4 + $0x38] sm:$0xff] %v2028
    %s2031 = scalar_lea.vmem %s7, 8
    %v2032 = vld [vmem:[%s2031] sm:$0xf]
    %v2033 = vld [vmem:[%s2031 + $0x4] sm:$0xf]
    %v2034 = vld [vmem:[#allocation4] sm:$0xff]
    %v2035 = vld [vmem:[#allocation4 + $0x8] sm:$0xff]
    %v2036 = vld [vmem:[#allocation4 + $0x10] sm:$0xff]
    %v2037 = vld [vmem:[#allocation4 + $0x18] sm:$0xff]
    %v2038 = vld [vmem:[#allocation4 + $0x20] sm:$0xff]
    %v2039 = vld [vmem:[#allocation4 + $0x28] sm:$0xff]
    %v2040 = vld [vmem:[#allocation4 + $0x30] sm:$0xff]
    %v2041 = vld [vmem:[#allocation4 + $0x38] sm:$0xff]
    %v2042 = vpack.c.bf16 %v2038, %v2034
    %v2043 = vpack.c.bf16 %v2039, %v2035
    %v2044 = vpack.c.bf16 %v2040, %v2036
    %v2045 = vpack.c.bf16 %v2041, %v2037
    %s2046 = scalar_lea.vmem %s8, 16
    %v2047 = vld [vmem:[%s2046] sm:$0xff]
    %v2048 = vld [vmem:[%s2046 + $0x8] sm:$0xff]
    %2050 = vset.pattern.permute.xlu0 0
    %2051 = vperm.xlu0 %2050, %v2047
    %v2052 = vpop.permute.xlu0 %2051
    %2055 = vset.pattern.permute.xlu0 0
    %2056 = vperm.xlu0 %2055, %v2048
    %v2057 = vpop.permute.xlu0 %2056
    %v2061 = vunpack.c.l.b16 %v2032
    %v2062 = vunpack.c.l.b16 %v2033
    %v2063 = vpack.c.b16 %v2062, %v2061
    %v2065 = vsel %vm1171, %v2063, 0
    %2067 = vmatprep.subr.bf16.mxu0 %v2043
    %2068 = vmatpush1.bf16.msra.mxu0 %v2042
    %2069 = vmatprep.subr.bf16.mxu0 0
    %2070 = vmatpush1.bf16.msra.mxu0 0
    %2071 = vmatprep.subr.bf16.mxu0 0
    %2072 = vmatpush1.bf16.msra.mxu0 0
    %2073 = vmatprep.subr.bf16.mxu0 0
    %2074 = vmatpush1.bf16.msra.mxu0 0
    %2075 = vmatprep.subr.bf16.mxu0 0
    %2076 = vmatpush1.bf16.msra.mxu0 0
    %2077 = vmatprep.subr.bf16.mxu0 0
    %2078 = vmatpush1.bf16.msra.mxu0 0
    %2079 = vmatprep.subr.bf16.mxu0 0
    %2080 = vmatpush1.bf16.msra.mxu0 0
    %2081 = vmatprep.subr.bf16.mxu0 0
    %2082 = vmatpush1.bf16.msra.mxu0 0
    %2083 = vmatprep.subr.bf16.mxu0 0
    %2084 = vmatpush1.bf16.msra.mxu0 0
    %2085 = vmatprep.subr.bf16.mxu0 0
    %2086 = vmatpush1.bf16.msra.mxu0 0
    %2087 = vmatprep.subr.bf16.mxu0 0
    %2088 = vmatpush1.bf16.msra.mxu0 0
    %2089 = vmatprep.subr.bf16.mxu0 0
    %2090 = vmatpush1.bf16.msra.mxu0 0
    %2091 = vmatprep.subr.bf16.mxu0 0
    %2092 = vmatpush1.bf16.msra.mxu0 0
    %2093 = vmatprep.subr.bf16.mxu0 0
    %2094 = vmatpush1.bf16.msra.mxu0 0
    %2095 = vmatprep.subr.bf16.mxu0 0
    %2096 = vmatpush1.bf16.msra.mxu0 0
    %2097 = vmatprep.subr.bf16.mxu0 0
    %2098 = vmatpush1.bf16.msra.mxu0 0
    %2099 = vmatprep.mubr.bf16.mxu0 0
    %2100 = vmatmul.mubr.bf16.gmra.mrb[0].mxu0 %v2065
    %v2101 = vpop.f32.mrb[0].mxu0
    %v2102 = vadd.f32 %v2052, %v2101
    %v2103 = vpop.f32.mrb[0].mxu0
    %v2104 = vadd.f32 %v2052, %v2103
    %v2105 = vpop.f32.mrb[0].mxu0
    %v2106 = vadd.f32 %v2057, %v2105
    %v2107 = vpop.f32.mrb[0].mxu0
    %v2108 = vadd.f32 %v2057, %v2107
    %2109 = vdwg.mxu0
    %2110 = vmatprep.subr.bf16.mxu0 %v2045
    %2111 = vmatpush1.bf16.msra.mxu0 %v2044
    %2112 = vmatprep.subr.bf16.mxu0 0
    %2113 = vmatpush1.bf16.msra.mxu0 0
    %2114 = vmatprep.subr.bf16.mxu0 0
    %2115 = vmatpush1.bf16.msra.mxu0 0
    %2116 = vmatprep.subr.bf16.mxu0 0
    %2117 = vmatpush1.bf16.msra.mxu0 0
    %2118 = vmatprep.subr.bf16.mxu0 0
    %2119 = vmatpush1.bf16.msra.mxu0 0
    %2120 = vmatprep.subr.bf16.mxu0 0
    %2121 = vmatpush1.bf16.msra.mxu0 0
    %2122 = vmatprep.subr.bf16.mxu0 0
    %2123 = vmatpush1.bf16.msra.mxu0 0
    %2124 = vmatprep.subr.bf16.mxu0 0
    %2125 = vmatpush1.bf16.msra.mxu0 0
    %2126 = vmatprep.subr.bf16.mxu0 0
    %2127 = vmatpush1.bf16.msra.mxu0 0
    %2128 = vmatprep.subr.bf16.mxu0 0
    %2129 = vmatpush1.bf16.msra.mxu0 0
    %2130 = vmatprep.subr.bf16.mxu0 0
    %2131 = vmatpush1.bf16.msra.mxu0 0
    %2132 = vmatprep.subr.bf16.mxu0 0
    %2133 = vmatpush1.bf16.msra.mxu0 0
    %2134 = vmatprep.subr.bf16.mxu0 0
    %2135 = vmatpush1.bf16.msra.mxu0 0
    %2136 = vmatprep.subr.bf16.mxu0 0
    %2137 = vmatpush1.bf16.msra.mxu0 0
    %2138 = vmatprep.subr.bf16.mxu0 0
    %2139 = vmatpush1.bf16.msra.mxu0 0
    %2140 = vmatprep.subr.bf16.mxu0 0
    %2141 = vmatpush1.bf16.msra.mxu0 0
    %2142 = vmatprep.mubr.bf16.mxu0 0
    %2143 = vmatmul.mubr.bf16.gmra.mrb[0].mxu0 %v2065
    %v2144 = vpop.f32.mrb[0].mxu0
    %v2145 = vadd.f32 %v2052, %v2144
    %v2146 = vpop.f32.mrb[0].mxu0
    %v2147 = vadd.f32 %v2052, %v2146
    %v2148 = vpop.f32.mrb[0].mxu0
    %v2149 = vadd.f32 %v2057, %v2148
    %v2150 = vpop.f32.mrb[0].mxu0
    %v2151 = vadd.f32 %v2057, %v2150
    %2152 = vdwg.mxu0
    %s2153 = scalar_lea.vmem %s9, 8
    %v2154 = vld [vmem:[%s2153] sm:$0xf]
    %v2155 = vld [vmem:[%s2153 + $0x4] sm:$0xf]
    %v2156 = vpack.c.bf16 %v2106, %v2102
    %v2157 = vpack.c.bf16 %v2108, %v2104
    %v2158 = vpack.c.bf16 %v2149, %v2145
    %v2159 = vpack.c.bf16 %v2151, %v2147
    %s2160 = scalar_lea.vmem %s10, 16
    %v2161 = vld [vmem:[%s2160] sm:$0xff]
    %v2162 = vld [vmem:[%s2160 + $0x8] sm:$0xff]
    %2164 = vset.pattern.permute.xlu0 0
    %2165 = vperm.xlu0 %2164, %v2161
    %v2166 = vpop.permute.xlu0 %2165
    %2169 = vset.pattern.permute.xlu0 0
    %2170 = vperm.xlu0 %2169, %v2162
    %v2171 = vpop.permute.xlu0 %2170
    %v2175 = vunpack.c.l.b16 %v2154
    %v2176 = vunpack.c.l.b16 %v2155
    %v2177 = vpack.c.b16 %v2176, %v2175
    %v2179 = vsel %vm1171, %v2177, 0
    %2181 = vmatprep.subr.bf16.mxu0 %v2157
    %2182 = vmatpush1.bf16.msra.mxu0 %v2156
    %2183 = vmatprep.subr.bf16.mxu0 0
    %2184 = vmatpush1.bf16.msra.mxu0 0
    %2185 = vmatprep.subr.bf16.mxu0 0
    %2186 = vmatpush1.bf16.msra.mxu0 0
    %2187 = vmatprep.subr.bf16.mxu0 0
    %2188 = vmatpush1.bf16.msra.mxu0 0
    %2189 = vmatprep.subr.bf16.mxu0 0
    %2190 = vmatpush1.bf16.msra.mxu0 0
    %2191 = vmatprep.subr.bf16.mxu0 0
    %2192 = vmatpush1.bf16.msra.mxu0 0
    %2193 = vmatprep.subr.bf16.mxu0 0
    %2194 = vmatpush1.bf16.msra.mxu0 0
    %2195 = vmatprep.subr.bf16.mxu0 0
    %2196 = vmatpush1.bf16.msra.mxu0 0
    %2197 = vmatprep.subr.bf16.mxu0 0
    %2198 = vmatpush1.bf16.msra.mxu0 0
    %2199 = vmatprep.subr.bf16.mxu0 0
    %2200 = vmatpush1.bf16.msra.mxu0 0
    %2201 = vmatprep.subr.bf16.mxu0 0
    %2202 = vmatpush1.bf16.msra.mxu0 0
    %2203 = vmatprep.subr.bf16.mxu0 0
    %2204 = vmatpush1.bf16.msra.mxu0 0
    %2205 = vmatprep.subr.bf16.mxu0 0
    %2206 = vmatpush1.bf16.msra.mxu0 0
    %2207 = vmatprep.subr.bf16.mxu0 0
    %2208 = vmatpush1.bf16.msra.mxu0 0
    %2209 = vmatprep.subr.bf16.mxu0 0
    %2210 = vmatpush1.bf16.msra.mxu0 0
    %2211 = vmatprep.subr.bf16.mxu0 0
    %2212 = vmatpush1.bf16.msra.mxu0 0
    %2213 = vmatprep.mubr.bf16.mxu0 0
    %2214 = vmatmul.mubr.bf16.gmra.mrb[0].mxu0 %v2179
    %v2215 = vpop.f32.mrb[0].mxu0
    %v2216 = vadd.f32 %v2166, %v2215
    %v2217 = vpop.f32.mrb[0].mxu0
    %v2218 = vadd.f32 %v2166, %v2217
    %v2219 = vpop.f32.mrb[0].mxu0
    %v2220 = vadd.f32 %v2171, %v2219
    %v2221 = vpop.f32.mrb[0].mxu0
    %v2222 = vadd.f32 %v2171, %v2221
    %2223 = vdwg.mxu0
    %2224 = vmatprep.subr.bf16.mxu0 %v2159
    %2225 = vmatpush1.bf16.msra.mxu0 %v2158
    %2226 = vmatprep.subr.bf16.mxu0 0
    %2227 = vmatpush1.bf16.msra.mxu0 0
    %2228 = vmatprep.subr.bf16.mxu0 0
    %2229 = vmatpush1.bf16.msra.mxu0 0
    %2230 = vmatprep.subr.bf16.mxu0 0
    %2231 = vmatpush1.bf16.msra.mxu0 0
    %2232 = vmatprep.subr.bf16.mxu0 0
    %2233 = vmatpush1.bf16.msra.mxu0 0
    %2234 = vmatprep.subr.bf16.mxu0 0
    %2235 = vmatpush1.bf16.msra.mxu0 0
    %2236 = vmatprep.subr.bf16.mxu0 0
    %2237 = vmatpush1.bf16.msra.mxu0 0
    %2238 = vmatprep.subr.bf16.mxu0 0
    %2239 = vmatpush1.bf16.msra.mxu0 0
    %2240 = vmatprep.subr.bf16.mxu0 0
    %2241 = vmatpush1.bf16.msra.mxu0 0
    %2242 = vmatprep.subr.bf16.mxu0 0
    %2243 = vmatpush1.bf16.msra.mxu0 0
    %2244 = vmatprep.subr.bf16.mxu0 0
    %2245 = vmatpush1.bf16.msra.mxu0 0
    %2246 = vmatprep.subr.bf16.mxu0 0
    %2247 = vmatpush1.bf16.msra.mxu0 0
    %2248 = vmatprep.subr.bf16.mxu0 0
    %2249 = vmatpush1.bf16.msra.mxu0 0
    %2250 = vmatprep.subr.bf16.mxu0 0
    %2251 = vmatpush1.bf16.msra.mxu0 0
    %2252 = vmatprep.subr.bf16.mxu0 0
    %2253 = vmatpush1.bf16.msra.mxu0 0
    %2254 = vmatprep.subr.bf16.mxu0 0
    %2255 = vmatpush1.bf16.msra.mxu0 0
    %2256 = vmatprep.mubr.bf16.mxu0 0
    %2257 = vmatmul.mubr.bf16.gmra.mrb[0].mxu0 %v2179
    %v2258 = vpop.f32.mrb[0].mxu0
    %v2259 = vadd.f32 %v2166, %v2258
    %v2260 = vpop.f32.mrb[0].mxu0
    %v2261 = vadd.f32 %v2166, %v2260
    %v2262 = vpop.f32.mrb[0].mxu0
    %v2263 = vadd.f32 %v2171, %v2262
    %v2264 = vpop.f32.mrb[0].mxu0
    %v2265 = vadd.f32 %v2171, %v2264
    %2266 = vdwg.mxu0
    %v2267 = vmul.f32 %v2216, 0.5
    %v2268 = vmul.f32 %v2218, 0.5
    %v2269 = vmul.f32 %v2259, 0.5
    %v2270 = vmul.f32 %v2261, 0.5
    %v2271 = vmul.f32 %v2220, 0.5
    %v2272 = vmul.f32 %v2222, 0.5
    %v2273 = vmul.f32 %v2263, 0.5
    %v2274 = vmul.f32 %v2265, 0.5
    %v2275 = vmul.f32 %v2216, 0.70710677
    %v2276 = vmul.f32 %v2218, 0.70710677
    %v2277 = vmul.f32 %v2259, 0.70710677
    %v2278 = vmul.f32 %v2261, 0.70710677
    %v2279 = vmul.f32 %v2220, 0.70710677
    %v2280 = vmul.f32 %v2222, 0.70710677
    %v2281 = vmul.f32 %v2263, 0.70710677
    %v2282 = vmul.f32 %v2265, 0.70710677
    %v2283 = verf.f32.pop %v2275
    %v2284 = verf.f32.pop %v2276
    %v2285 = verf.f32.pop %v2277
    %v2286 = verf.f32.pop %v2278
    %v2287 = verf.f32.pop %v2279
    %v2288 = verf.f32.pop %v2280
    %v2289 = verf.f32.pop %v2281
    %v2290 = verf.f32.pop %v2282
    %v2291 = vadd.f32 %v2283, 1.0
    %v2292 = vadd.f32 %v2284, 1.0
    %v2293 = vadd.f32 %v2285, 1.0
    %v2294 = vadd.f32 %v2286, 1.0
    %v2295 = vadd.f32 %v2287, 1.0
    %v2296 = vadd.f32 %v2288, 1.0
    %v2297 = vadd.f32 %v2289, 1.0
    %v2298 = vadd.f32 %v2290, 1.0
    %v2299 = vmul.f32 %v2267, %v2291
    %v2300 = vmul.f32 %v2268, %v2292
    %v2301 = vmul.f32 %v2269, %v2293
    %v2302 = vmul.f32 %v2270, %v2294
    %v2303 = vmul.f32 %v2271, %v2295
    %v2304 = vmul.f32 %v2272, %v2296
    %v2305 = vmul.f32 %v2273, %v2297
    %v2306 = vmul.f32 %v2274, %v2298
    %s2307 = scalar_lea.vmem %s11, 8
    %v2308 = vld [vmem:[%s2307] sm:$0xf]
    %v2309 = vld [vmem:[%s2307 + $0x4] sm:$0xf]
    %v2310 = vpack.c.bf16 %v2303, %v2299
    %v2311 = vpack.c.bf16 %v2304, %v2300
    %v2312 = vpack.c.bf16 %v2305, %v2301
    %v2313 = vpack.c.bf16 %v2306, %v2302
    %s2314 = scalar_lea.vmem %s12, 16
    %v2315 = vld [vmem:[%s2314] sm:$0xff]
    %v2316 = vld [vmem:[%s2314 + $0x8] sm:$0xff]
    %2318 = vset.pattern.permute.xlu0 0
    %2319 = vperm.xlu0 %2318, %v2315
    %v2320 = vpop.permute.xlu0 %2319
    %2323 = vset.pattern.permute.xlu0 0
    %2324 = vperm.xlu0 %2323, %v2316
    %v2325 = vpop.permute.xlu0 %2324
    %v2329 = vunpack.c.l.b16 %v2308
    %v2330 = vunpack.c.l.b16 %v2309
    %v2331 = vpack.c.b16 %v2330, %v2329
    %v2333 = vsel %vm1171, %v2331, 0
    %2335 = vmatprep.subr.bf16.mxu0 %v2311
    %2336 = vmatpush1.bf16.msra.mxu0 %v2310
    %2337 = vmatprep.subr.bf16.mxu0 0
    %2338 = vmatpush1.bf16.msra.mxu0 0
    %2339 = vmatprep.subr.bf16.mxu0 0
    %2340 = vmatpush1.bf16.msra.mxu0 0
    %2341 = vmatprep.subr.bf16.mxu0 0
    %2342 = vmatpush1.bf16.msra.mxu0 0
    %2343 = vmatprep.subr.bf16.mxu0 0
    %2344 = vmatpush1.bf16.msra.mxu0 0
    %2345 = vmatprep.subr.bf16.mxu0 0
    %2346 = vmatpush1.bf16.msra.mxu0 0
    %2347 = vmatprep.subr.bf16.mxu0 0
    %2348 = vmatpush1.bf16.msra.mxu0 0
    %2349 = vmatprep.subr.bf16.mxu0 0
    %2350 = vmatpush1.bf16.msra.mxu0 0
    %2351 = vmatprep.subr.bf16.mxu0 0
    %2352 = vmatpush1.bf16.msra.mxu0 0
    %2353 = vmatprep.subr.bf16.mxu0 0
    %2354 = vmatpush1.bf16.msra.mxu0 0
    %2355 = vmatprep.subr.bf16.mxu0 0
    %2356 = vmatpush1.bf16.msra.mxu0 0
    %2357 = vmatprep.subr.bf16.mxu0 0
    %2358 = vmatpush1.bf16.msra.mxu0 0
    %2359 = vmatprep.subr.bf16.mxu0 0
    %2360 = vmatpush1.bf16.msra.mxu0 0
    %2361 = vmatprep.subr.bf16.mxu0 0
    %2362 = vmatpush1.bf16.msra.mxu0 0
    %2363 = vmatprep.subr.bf16.mxu0 0
    %2364 = vmatpush1.bf16.msra.mxu0 0
    %2365 = vmatprep.subr.bf16.mxu0 0
    %2366 = vmatpush1.bf16.msra.mxu0 0
    %2367 = vmatprep.mubr.bf16.mxu0 0
    %2368 = vmatmul.mubr.bf16.gmra.mrb[0].mxu0 %v2333
    %v2369 = vpop.f32.mrb[0].mxu0
    %v2370 = vadd.f32 %v2320, %v2369
    %v2371 = vpop.f32.mrb[0].mxu0
    %v2372 = vadd.f32 %v2320, %v2371
    %v2373 = vpop.f32.mrb[0].mxu0
    %v2374 = vadd.f32 %v2325, %v2373
    %v2375 = vpop.f32.mrb[0].mxu0
    %v2376 = vadd.f32 %v2325, %v2375
    %2377 = vdwg.mxu0
    %2378 = vmatprep.subr.bf16.mxu0 %v2313
    %2379 = vmatpush1.bf16.msra.mxu0 %v2312
    %2380 = vmatprep.subr.bf16.mxu0 0
    %2381 = vmatpush1.bf16.msra.mxu0 0
    %2382 = vmatprep.subr.bf16.mxu0 0
    %2383 = vmatpush1.bf16.msra.mxu0 0
    %2384 = vmatprep.subr.bf16.mxu0 0
    %2385 = vmatpush1.bf16.msra.mxu0 0
    %2386 = vmatprep.subr.bf16.mxu0 0
    %2387 = vmatpush1.bf16.msra.mxu0 0
    %2388 = vmatprep.subr.bf16.mxu0 0
    %2389 = vmatpush1.bf16.msra.mxu0 0
    %2390 = vmatprep.subr.bf16.mxu0 0
    %2391 = vmatpush1.bf16.msra.mxu0 0
    %2392 = vmatprep.subr.bf16.mxu0 0
    %2393 = vmatpush1.bf16.msra.mxu0 0
    %2394 = vmatprep.subr.bf16.mxu0 0
    %2395 = vmatpush1.bf16.msra.mxu0 0
    %2396 = vmatprep.subr.bf16.mxu0 0
    %2397 = vmatpush1.bf16.msra.mxu0 0
    %2398 = vmatprep.subr.bf16.mxu0 0
    %2399 = vmatpush1.bf16.msra.mxu0 0
    %2400 = vmatprep.subr.bf16.mxu0 0
    %2401 = vmatpush1.bf16.msra.mxu0 0
    %2402 = vmatprep.subr.bf16.mxu0 0
    %2403 = vmatpush1.bf16.msra.mxu0 0
    %2404 = vmatprep.subr.bf16.mxu0 0
    %2405 = vmatpush1.bf16.msra.mxu0 0
    %2406 = vmatprep.subr.bf16.mxu0 0
    %2407 = vmatpush1.bf16.msra.mxu0 0
    %2408 = vmatprep.subr.bf16.mxu0 0
    %2409 = vmatpush1.bf16.msra.mxu0 0
    %2410 = vmatprep.mubr.bf16.mxu0 0
    %2411 = vmatmul.mubr.bf16.gmra.mrb[0].mxu0 %v2333
    %v2412 = vpop.f32.mrb[0].mxu0
    %v2413 = vadd.f32 %v2320, %v2412
    %v2414 = vpop.f32.mrb[0].mxu0
    %v2415 = vadd.f32 %v2320, %v2414
    %v2416 = vpop.f32.mrb[0].mxu0
    %v2417 = vadd.f32 %v2325, %v2416
    %v2418 = vpop.f32.mrb[0].mxu0
    %v2419 = vadd.f32 %v2325, %v2418
    %2420 = vdwg.mxu0
    %v2421 = vadd.f32 %v2102, %v2370
    %v2422 = vadd.f32 %v2104, %v2372
    %v2423 = vadd.f32 %v2145, %v2413
    %v2424 = vadd.f32 %v2147, %v2415
    %v2425 = vadd.f32 %v2106, %v2374
    %v2426 = vadd.f32 %v2108, %v2376
    %v2427 = vadd.f32 %v2149, %v2417
    %v2428 = vadd.f32 %v2151, %v2419
    %s2429 = scalar_lea.vmem %s5, 48
    %v2430 = vld [vmem:[%s2429] sm:$0xf]
    %v2431 = vld [vmem:[%s2429 + $0x4] sm:$0xf]
    %v2432 = vld [vmem:[%s2429 + $0x8] sm:$0xf]
    %v2433 = vld [vmem:[%s2429 + $0xc] sm:$0xf]
    %v2434 = vld [vmem:[%s2429 + $0x10] sm:$0xf]
    %v2435 = vld [vmem:[%s2429 + $0x14] sm:$0xf]
    %v2436 = vpack.c.bf16 %v2425, %v2421
    %v2437 = vpack.c.bf16 %v2426, %v2422
    %v2438 = vpack.c.bf16 %v2427, %v2423
    %v2439 = vpack.c.bf16 %v2428, %v2424
    %s2440 = scalar_lea.vmem %s6, 96
    %v2441 = vld [vmem:[%s2440] sm:$0xff]
    %v2442 = vld [vmem:[%s2440 + $0x8] sm:$0xff]
    %v2443 = vld [vmem:[%s2440 + $0x10] sm:$0xff]
    %v2444 = vld [vmem:[%s2440 + $0x18] sm:$0xff]
    %v2445 = vld [vmem:[%s2440 + $0x20] sm:$0xff]
    %v2446 = vld [vmem:[%s2440 + $0x28] sm:$0xff]
    %2448 = vset.pattern.permute.xlu0 0
    %2449 = vperm.xlu0 %2448, %v2441
    %v2450 = vpop.permute.xlu0 %2449
    %2453 = vset.pattern.permute.xlu0 0
    %2454 = vperm.xlu0 %2453, %v2442
    %v2455 = vpop.permute.xlu0 %2454
    %2458 = vset.pattern.permute.xlu0 0
    %2459 = vperm.xlu0 %2458, %v2443
    %v2460 = vpop.permute.xlu0 %2459
    %2463 = vset.pattern.permute.xlu0 0
    %2464 = vperm.xlu0 %2463, %v2444
    %v2465 = vpop.permute.xlu0 %2464
    %2468 = vset.pattern.permute.xlu0 0
    %2469 = vperm.xlu0 %2468, %v2445
    %v2470 = vpop.permute.xlu0 %2469
    %2473 = vset.pattern.permute.xlu0 0
    %2474 = vperm.xlu0 %2473, %v2446
    %v2475 = vpop.permute.xlu0 %2474
    %v2483 = vunpack.c.l.b16 %v2430
    %v2484 = vunpack.c.l.b16 %v2431
    %v2485 = vunpack.c.l.b16 %v2432
    %v2486 = vunpack.c.l.b16 %v2433
    %v2487 = vunpack.c.l.b16 %v2434
    %v2488 = vunpack.c.l.b16 %v2435
    %v2489 = vpack.c.b16 %v2484, %v2483
    %v2490 = vpack.c.b16 %v2486, %v2485
    %v2491 = vpack.c.b16 %v2488, %v2487
    %v2493 = vsel %vm1171, %v2489, 0
    %v2496 = vsel %vm1171, %v2490, 0
    %v2499 = vsel %vm1171, %v2491, 0
    %2501 = vmatprep.subr.bf16.mxu0 %v2437
    %2502 = vmatpush1.bf16.msra.mxu0 %v2436
    %2503 = vmatprep.subr.bf16.mxu0 0
    %2504 = vmatpush1.bf16.msra.mxu0 0
    %2505 = vmatprep.subr.bf16.mxu0 0
    %2506 = vmatpush1.bf16.msra.mxu0 0
    %2507 = vmatprep.subr.bf16.mxu0 0
    %2508 = vmatpush1.bf16.msra.mxu0 0
    %2509 = vmatprep.subr.bf16.mxu0 0
    %2510 = vmatpush1.bf16.msra.mxu0 0
    %2511 = vmatprep.subr.bf16.mxu0 0
    %2512 = vmatpush1.bf16.msra.mxu0 0
    %2513 = vmatprep.subr.bf16.mxu0 0
    %2514 = vmatpush1.bf16.msra.mxu0 0
    %2515 = vmatprep.subr.bf16.mxu0 0
    %2516 = vmatpush1.bf16.msra.mxu0 0
    %2517 = vmatprep.subr.bf16.mxu0 0
    %2518 = vmatpush1.bf16.msra.mxu0 0
    %2519 = vmatprep.subr.bf16.mxu0 0
    %2520 = vmatpush1.bf16.msra.mxu0 0
    %2521 = vmatprep.subr.bf16.mxu0 0
    %2522 = vmatpush1.bf16.msra.mxu0 0
    %2523 = vmatprep.subr.bf16.mxu0 0
    %2524 = vmatpush1.bf16.msra.mxu0 0
    %2525 = vmatprep.subr.bf16.mxu0 0
    %2526 = vmatpush1.bf16.msra.mxu0 0
    %2527 = vmatprep.subr.bf16.mxu0 0
    %2528 = vmatpush1.bf16.msra.mxu0 0
    %2529 = vmatprep.subr.bf16.mxu0 0
    %2530 = vmatpush1.bf16.msra.mxu0 0
    %2531 = vmatprep.subr.bf16.mxu0 0
    %2532 = vmatpush1.bf16.msra.mxu0 0
    %2533 = vmatprep.mubr.bf16.mxu0 0
    %2534 = vmatmul.mubr.bf16.gmra.mrb[0].mxu0 %v2493
    %v2535 = vpop.f32.mrb[0].mxu0
    %v2536 = vadd.f32 %v2450, %v2535
    %v2537 = vpop.f32.mrb[0].mxu0
    %v2538 = vadd.f32 %v2450, %v2537
    %v2539 = vpop.f32.mrb[0].mxu0
    %v2540 = vadd.f32 %v2455, %v2539
    %v2541 = vpop.f32.mrb[0].mxu0
    %v2542 = vadd.f32 %v2455, %v2541
    %2543 = vmatprep.mubr.bf16.mxu0 0
    %2544 = vmatmul.mubr.bf16.gmra.mrb[0].mxu0 %v2496
    %v2545 = vpop.f32.mrb[0].mxu0
    %v2546 = vadd.f32 %v2460, %v2545
    %v2547 = vpop.f32.mrb[0].mxu0
    %v2548 = vadd.f32 %v2460, %v2547
    %v2549 = vpop.f32.mrb[0].mxu0
    %v2550 = vadd.f32 %v2465, %v2549
    %v2551 = vpop.f32.mrb[0].mxu0
    %v2552 = vadd.f32 %v2465, %v2551
    %2553 = vmatprep.mubr.bf16.mxu0 0
    %2554 = vmatmul.mubr.bf16.gmra.mrb[0].mxu0 %v2499
    %v2555 = vpop.f32.mrb[0].mxu0
    %v2556 = vadd.f32 %v2470, %v2555
    %v2557 = vpop.f32.mrb[0].mxu0
    %v2558 = vadd.f32 %v2470, %v2557
    %v2559 = vpop.f32.mrb[0].mxu0
    %v2560 = vadd.f32 %v2475, %v2559
    %v2561 = vpop.f32.mrb[0].mxu0
    %v2562 = vadd.f32 %v2475, %v2561
    %2563 = vdwg.mxu0
    %2564 = vmatprep.subr.bf16.mxu0 %v2439
    %2565 = vmatpush1.bf16.msra.mxu0 %v2438
    %2566 = vmatprep.subr.bf16.mxu0 0
    %2567 = vmatpush1.bf16.msra.mxu0 0
    %2568 = vmatprep.subr.bf16.mxu0 0
    %2569 = vmatpush1.bf16.msra.mxu0 0
    %2570 = vmatprep.subr.bf16.mxu0 0
    %2571 = vmatpush1.bf16.msra.mxu0 0
    %2572 = vmatprep.subr.bf16.mxu0 0
    %2573 = vmatpush1.bf16.msra.mxu0 0
    %2574 = vmatprep.subr.bf16.mxu0 0
    %2575 = vmatpush1.bf16.msra.mxu0 0
    %2576 = vmatprep.subr.bf16.mxu0 0
    %2577 = vmatpush1.bf16.msra.mxu0 0
    %2578 = vmatprep.subr.bf16.mxu0 0
    %2579 = vmatpush1.bf16.msra.mxu0 0
    %2580 = vmatprep.subr.bf16.mxu0 0
    %2581 = vmatpush1.bf16.msra.mxu0 0
    %2582 = vmatprep.subr.bf16.mxu0 0
    %2583 = vmatpush1.bf16.msra.mxu0 0
    %2584 = vmatprep.subr.bf16.mxu0 0
    %2585 = vmatpush1.bf16.msra.mxu0 0
    %2586 = vmatprep.subr.bf16.mxu0 0
    %2587 = vmatpush1.bf16.msra.mxu0 0
    %2588 = vmatprep.subr.bf16.mxu0 0
    %2589 = vmatpush1.bf16.msra.mxu0 0
    %2590 = vmatprep.subr.bf16.mxu0 0
    %2591 = vmatpush1.bf16.msra.mxu0 0
    %2592 = vmatprep.subr.bf16.mxu0 0
    %2593 = vmatpush1.bf16.msra.mxu0 0
    %2594 = vmatprep.subr.bf16.mxu0 0
    %2595 = vmatpush1.bf16.msra.mxu0 0
    %2596 = vmatprep.mubr.bf16.mxu0 0
    %2597 = vmatmul.mubr.bf16.gmra.mrb[0].mxu0 %v2493
    %v2598 = vpop.f32.mrb[0].mxu0
    %v2599 = vadd.f32 %v2450, %v2598
    %v2600 = vpop.f32.mrb[0].mxu0
    %v2601 = vadd.f32 %v2450, %v2600
    %v2602 = vpop.f32.mrb[0].mxu0
    %v2603 = vadd.f32 %v2455, %v2602
    %v2604 = vpop.f32.mrb[0].mxu0
    %v2605 = vadd.f32 %v2455, %v2604
    %2606 = vmatprep.mubr.bf16.mxu0 0
    %2607 = vmatmul.mubr.bf16.gmra.mrb[0].mxu0 %v2496
    %v2608 = vpop.f32.mrb[0].mxu0
    %v2609 = vadd.f32 %v2460, %v2608
    %v2610 = vpop.f32.mrb[0].mxu0
    %v2611 = vadd.f32 %v2460, %v2610
    %v2612 = vpop.f32.mrb[0].mxu0
    %v2613 = vadd.f32 %v2465, %v2612
    %v2614 = vpop.f32.mrb[0].mxu0
    %v2615 = vadd.f32 %v2465, %v2614
    %2616 = vmatprep.mubr.bf16.mxu0 0
    %2617 = vmatmul.mubr.bf16.gmra.mrb[0].mxu0 %v2499
    %v2618 = vpop.f32.mrb[0].mxu0
    %v2619 = vadd.f32 %v2470, %v2618
    %v2620 = vpop.f32.mrb[0].mxu0
    %v2621 = vadd.f32 %v2470, %v2620
    %v2622 = vpop.f32.mrb[0].mxu0
    %v2623 = vadd.f32 %v2475, %v2622
    %v2624 = vpop.f32.mrb[0].mxu0
    %v2625 = vadd.f32 %v2475, %v2624
    %2626 = vdwg.mxu0
    %v2627 = vmul.f32 %v2536, %v2546
    %v2628 = vmul.f32 %v2540, %v2550
    %v2629 = vadd.f32 %v2627, %v2628
    %v2630 = vrot.slane %v2629, 4
    %v2631 = vadd.f32 %v2629, %v2630
    %v2632 = vrot.slane %v2631, 2
    %v2633 = vadd.f32 %v2631, %v2632
    %v2634 = vrot.slane %v2633, 1
    %v2635 = vadd.f32 %v2633, %v2634
    %v2636 = vmul.f32 %v2536, %v2548
    %v2637 = vmul.f32 %v2540, %v2552
    %v2638 = vadd.f32 %v2636, %v2637
    %v2639 = vrot.slane %v2638, 4
    %v2640 = vadd.f32 %v2638, %v2639
    %v2641 = vrot.slane %v2640, 2
    %v2642 = vadd.f32 %v2640, %v2641
    %v2643 = vrot.slane %v2642, 1
    %v2644 = vadd.f32 %v2642, %v2643
    %v2645 = vmul.f32 %v2536, %v2609
    %v2646 = vmul.f32 %v2540, %v2613
    %v2647 = vadd.f32 %v2645, %v2646
    %v2648 = vrot.slane %v2647, 4
    %v2649 = vadd.f32 %v2647, %v2648
    %v2650 = vrot.slane %v2649, 2
    %v2651 = vadd.f32 %v2649, %v2650
    %v2652 = vrot.slane %v2651, 1
    %v2653 = vadd.f32 %v2651, %v2652
    %v2654 = vmul.f32 %v2536, %v2611
    %v2655 = vmul.f32 %v2540, %v2615
    %v2656 = vadd.f32 %v2654, %v2655
    %v2657 = vrot.slane %v2656, 4
    %v2658 = vadd.f32 %v2656, %v2657
    %v2659 = vrot.slane %v2658, 2
    %v2660 = vadd.f32 %v2658, %v2659
    %v2661 = vrot.slane %v2660, 1
    %v2662 = vadd.f32 %v2660, %v2661
    %v2663 = vmax.f32 %v2635, %v2644
    %v2664 = vmax.f32 %v2663, %v2653
    %v2665 = vmax.f32 %v2664, %v2662
    %v2666 = vsub.f32 %v2635, %v2665
    %v2667 = vmul.f32 %v2666, 1.442695
    %v2668 = vpow.pop %v2667
    %v2669 = vsub.f32 %v2644, %v2665
    %v2670 = vmul.f32 %v2669, 1.442695
    %v2671 = vpow.pop %v2670
    %v2672 = vsub.f32 %v2653, %v2665
    %v2673 = vmul.f32 %v2672, 1.442695
    %v2674 = vpow.pop %v2673
    %v2675 = vsub.f32 %v2662, %v2665
    %v2676 = vmul.f32 %v2675, 1.442695
    %v2677 = vpow.pop %v2676
    %v2678 = vadd.f32 %v2668, %v2671
    %v2679 = vadd.f32 %v2678, %v2674
    %v2680 = vadd.f32 %v2679, %v2677
    %v2681 = vrcp.pop %v2680
    %v2682 = vmul.f32 %v2668, %v2681
    %v2683 = vmul.f32 %v2682, %v2556
    %v2684 = vmul.f32 %v2682, %v2560
    %v2685 = vmul.f32 %v2671, %v2681
    %v2686 = vmul.f32 %v2685, %v2558
    %v2687 = vmul.f32 %v2685, %v2562
    %v2688 = vadd.f32 %v2683, %v2686
    %v2689 = vadd.f32 %v2684, %v2687
    %v2690 = vmul.f32 %v2674, %v2681
    %v2691 = vmul.f32 %v2690, %v2619
    %v2692 = vmul.f32 %v2690, %v2623
    %v2693 = vadd.f32 %v2688, %v2691
    %v2694 = vadd.f32 %v2689, %v2692
    %v2695 = vmul.f32 %v2677, %v2681
    %v2696 = vmul.f32 %v2695, %v2621
    %v2697 = vmul.f32 %v2695, %v2625
    %v2698 = vadd.f32 %v2693, %v2696
    %v2699 = vadd.f32 %v2694, %v2697
    %2700 = vst [vmem:[#allocation4] sm:$0xff] %v2698
    %2701 = vst [vmem:[#allocation4 + $0x20] sm:$0xff] %v2699
    %v2702 = vmul.f32 %v2538, %v2546
    %v2703 = vmul.f32 %v2542, %v2550
    %v2704 = vadd.f32 %v2702, %v2703
    %v2705 = vrot.slane %v2704, 4
    %v2706 = vadd.f32 %v2704, %v2705
    %v2707 = vrot.slane %v2706, 2
    %v2708 = vadd.f32 %v2706, %v2707
    %v2709 = vrot.slane %v2708, 1
    %v2710 = vadd.f32 %v2708, %v2709
    %v2711 = vmul.f32 %v2538, %v2548
    %v2712 = vmul.f32 %v2542, %v2552
    %v2713 = vadd.f32 %v2711, %v2712
    %v2714 = vrot.slane %v2713, 4
    %v2715 = vadd.f32 %v2713, %v2714
    %v2716 = vrot.slane %v2715, 2
    %v2717 = vadd.f32 %v2715, %v2716
    %v2718 = vrot.slane %v2717, 1
    %v2719 = vadd.f32 %v2717, %v2718
    %v2720 = vmul.f32 %v2538, %v2609
    %v2721 = vmul.f32 %v2542, %v2613
    %v2722 = vadd.f32 %v2720, %v2721
    %v2723 = vrot.slane %v2722, 4
    %v2724 = vadd.f32 %v2722, %v2723
    %v2725 = vrot.slane %v2724, 2
    %v2726 = vadd.f32 %v2724, %v2725
    %v2727 = vrot.slane %v2726, 1
    %v2728 = vadd.f32 %v2726, %v2727
    %v2729 = vmul.f32 %v2538, %v2611
    %v2730 = vmul.f32 %v2542, %v2615
    %v2731 = vadd.f32 %v2729, %v2730
    %v2732 = vrot.slane %v2731, 4
    %v2733 = vadd.f32 %v2731, %v2732
    %v2734 = vrot.slane %v2733, 2
    %v2735 = vadd.f32 %v2733, %v2734
    %v2736 = vrot.slane %v2735, 1
    %v2737 = vadd.f32 %v2735, %v2736
    %v2738 = vmax.f32 %v2710, %v2719
    %v2739 = vmax.f32 %v2738, %v2728
    %v2740 = vmax.f32 %v2739, %v2737
    %v2741 = vsub.f32 %v2710, %v2740
    %v2742 = vmul.f32 %v2741, 1.442695
    %v2743 = vpow.pop %v2742
    %v2744 = vsub.f32 %v2719, %v2740
    %v2745 = vmul.f32 %v2744, 1.442695
    %v2746 = vpow.pop %v2745
    %v2747 = vsub.f32 %v2728, %v2740
    %v2748 = vmul.f32 %v2747, 1.442695
    %v2749 = vpow.pop %v2748
    %v2750 = vsub.f32 %v2737, %v2740
    %v2751 = vmul.f32 %v2750, 1.442695
    %v2752 = vpow.pop %v2751
    %v2753 = vadd.f32 %v2743, %v2746
    %v2754 = vadd.f32 %v2753, %v2749
    %v2755 = vadd.f32 %v2754, %v2752
    %v2756 = vrcp.pop %v2755
    %v2757 = vmul.f32 %v2743, %v2756
    %v2758 = vmul.f32 %v2757, %v2556
    %v2759 = vmul.f32 %v2757, %v2560
    %v2760 = vmul.f32 %v2746, %v2756
    %v2761 = vmul.f32 %v2760, %v2558
    %v2762 = vmul.f32 %v2760, %v2562
    %v2763 = vadd.f32 %v2758, %v2761
    %v2764 = vadd.f32 %v2759, %v2762
    %v2765 = vmul.f32 %v2749, %v2756
    %v2766 = vmul.f32 %v2765, %v2619
    %v2767 = vmul.f32 %v2765, %v2623
    %v2768 = vadd.f32 %v2763, %v2766
    %v2769 = vadd.f32 %v2764, %v2767
    %v2770 = vmul.f32 %v2752, %v2756
    %v2771 = vmul.f32 %v2770, %v2621
    %v2772 = vmul.f32 %v2770, %v2625
    %v2773 = vadd.f32 %v2768, %v2771
    %v2774 = vadd.f32 %v2769, %v2772
    %2775 = vst [vmem:[#allocation4 + $0x8] sm:$0xff] %v2773
    %2776 = vst [vmem:[#allocation4 + $0x28] sm:$0xff] %v2774
    %v2777 = vmul.f32 %v2599, %v2546
    %v2778 = vmul.f32 %v2603, %v2550
    %v2779 = vadd.f32 %v2777, %v2778
    %v2780 = vrot.slane %v2779, 4
    %v2781 = vadd.f32 %v2779, %v2780
    %v2782 = vrot.slane %v2781, 2
    %v2783 = vadd.f32 %v2781, %v2782
    %v2784 = vrot.slane %v2783, 1
    %v2785 = vadd.f32 %v2783, %v2784
    %v2786 = vmul.f32 %v2599, %v2548
    %v2787 = vmul.f32 %v2603, %v2552
    %v2788 = vadd.f32 %v2786, %v2787
    %v2789 = vrot.slane %v2788, 4
    %v2790 = vadd.f32 %v2788, %v2789
    %v2791 = vrot.slane %v2790, 2
    %v2792 = vadd.f32 %v2790, %v2791
    %v2793 = vrot.slane %v2792, 1
    %v2794 = vadd.f32 %v2792, %v2793
    %v2795 = vmul.f32 %v2599, %v2609
    %v2796 = vmul.f32 %v2603, %v2613
    %v2797 = vadd.f32 %v2795, %v2796
    %v2798 = vrot.slane %v2797, 4
    %v2799 = vadd.f32 %v2797, %v2798
    %v2800 = vrot.slane %v2799, 2
    %v2801 = vadd.f32 %v2799, %v2800
    %v2802 = vrot.slane %v2801, 1
    %v2803 = vadd.f32 %v2801, %v2802
    %v2804 = vmul.f32 %v2599, %v2611
    %v2805 = vmul.f32 %v2603, %v2615
    %v2806 = vadd.f32 %v2804, %v2805
    %v2807 = vrot.slane %v2806, 4
    %v2808 = vadd.f32 %v2806, %v2807
    %v2809 = vrot.slane %v2808, 2
    %v2810 = vadd.f32 %v2808, %v2809
    %v2811 = vrot.slane %v2810, 1
    %v2812 = vadd.f32 %v2810, %v2811
    %v2813 = vmax.f32 %v2785, %v2794
    %v2814 = vmax.f32 %v2813, %v2803
    %v2815 = vmax.f32 %v2814, %v2812
    %v2816 = vsub.f32 %v2785, %v2815
    %v2817 = vmul.f32 %v2816, 1.442695
    %v2818 = vpow.pop %v2817
    %v2819 = vsub.f32 %v2794, %v2815
    %v2820 = vmul.f32 %v2819, 1.442695
    %v2821 = vpow.pop %v2820
    %v2822 = vsub.f32 %v2803, %v2815
    %v2823 = vmul.f32 %v2822, 1.442695
    %v2824 = vpow.pop %v2823
    %v2825 = vsub.f32 %v2812, %v2815
    %v2826 = vmul.f32 %v2825, 1.442695
    %v2827 = vpow.pop %v2826
    %v2828 = vadd.f32 %v2818, %v2821
    %v2829 = vadd.f32 %v2828, %v2824
    %v2830 = vadd.f32 %v2829, %v2827
    %v2831 = vrcp.pop %v2830
    %v2832 = vmul.f32 %v2818, %v2831
    %v2833 = vmul.f32 %v2832, %v2556
    %v2834 = vmul.f32 %v2832, %v2560
    %v2835 = vmul.f32 %v2821, %v2831
    %v2836 = vmul.f32 %v2835, %v2558
    %v2837 = vmul.f32 %v2835, %v2562
    %v2838 = vadd.f32 %v2833, %v2836
    %v2839 = vadd.f32 %v2834, %v2837
    %v2840 = vmul.f32 %v2824, %v2831
    %v2841 = vmul.f32 %v2840, %v2619
    %v2842 = vmul.f32 %v2840, %v2623
    %v2843 = vadd.f32 %v2838, %v2841
    %v2844 = vadd.f32 %v2839, %v2842
    %v2845 = vmul.f32 %v2827, %v2831
    %v2846 = vmul.f32 %v2845, %v2621
    %v2847 = vmul.f32 %v2845, %v2625
    %v2848 = vadd.f32 %v2843, %v2846
    %v2849 = vadd.f32 %v2844, %v2847
    %2850 = vst [vmem:[#allocation4 + $0x10] sm:$0xff] %v2848
    %2851 = vst [vmem:[#allocation4 + $0x30] sm:$0xff] %v2849
    %v2852 = vmul.f32 %v2601, %v2546
    %v2853 = vmul.f32 %v2605, %v2550
    %v2854 = vadd.f32 %v2852, %v2853
    %v2855 = vrot.slane %v2854, 4
    %v2856 = vadd.f32 %v2854, %v2855
    %v2857 = vrot.slane %v2856, 2
    %v2858 = vadd.f32 %v2856, %v2857
    %v2859 = vrot.slane %v2858, 1
    %v2860 = vadd.f32 %v2858, %v2859
    %v2861 = vmul.f32 %v2601, %v2548
    %v2862 = vmul.f32 %v2605, %v2552
    %v2863 = vadd.f32 %v2861, %v2862
    %v2864 = vrot.slane %v2863, 4
    %v2865 = vadd.f32 %v2863, %v2864
    %v2866 = vrot.slane %v2865, 2
    %v2867 = vadd.f32 %v2865, %v2866
    %v2868 = vrot.slane %v2867, 1
    %v2869 = vadd.f32 %v2867, %v2868
    %v2870 = vmul.f32 %v2601, %v2609
    %v2871 = vmul.f32 %v2605, %v2613
    %v2872 = vadd.f32 %v2870, %v2871
    %v2873 = vrot.slane %v2872, 4
    %v2874 = vadd.f32 %v2872, %v2873
    %v2875 = vrot.slane %v2874, 2
    %v2876 = vadd.f32 %v2874, %v2875
    %v2877 = vrot.slane %v2876, 1
    %v2878 = vadd.f32 %v2876, %v2877
    %v2879 = vmul.f32 %v2601, %v2611
    %v2880 = vmul.f32 %v2605, %v2615
    %v2881 = vadd.f32 %v2879, %v2880
    %v2882 = vrot.slane %v2881, 4
    %v2883 = vadd.f32 %v2881, %v2882
    %v2884 = vrot.slane %v2883, 2
    %v2885 = vadd.f32 %v2883, %v2884
    %v2886 = vrot.slane %v2885, 1
    %v2887 = vadd.f32 %v2885, %v2886
    %v2888 = vmax.f32 %v2860, %v2869
    %v2889 = vmax.f32 %v2888, %v2878
    %v2890 = vmax.f32 %v2889, %v2887
    %v2891 = vsub.f32 %v2860, %v2890
    %v2892 = vmul.f32 %v2891, 1.442695
    %v2893 = vpow.pop %v2892
    %v2894 = vsub.f32 %v2869, %v2890
    %v2895 = vmul.f32 %v2894, 1.442695
    %v2896 = vpow.pop %v2895
    %v2897 = vsub.f32 %v2878, %v2890
    %v2898 = vmul.f32 %v2897, 1.442695
    %v2899 = vpow.pop %v2898
    %v2900 = vsub.f32 %v2887, %v2890
    %v2901 = vmul.f32 %v2900, 1.442695
    %v2902 = vpow.pop %v2901
    %v2903 = vadd.f32 %v2893, %v2896
    %v2904 = vadd.f32 %v2903, %v2899
    %v2905 = vadd.f32 %v2904, %v2902
    %v2906 = vrcp.pop %v2905
    %v2907 = vmul.f32 %v2893, %v2906
    %v2908 = vmul.f32 %v2907, %v2556
    %v2909 = vmul.f32 %v2907, %v2560
    %v2910 = vmul.f32 %v2896, %v2906
    %v2911 = vmul.f32 %v2910, %v2558
    %v2912 = vmul.f32 %v2910, %v2562
    %v2913 = vadd.f32 %v2908, %v2911
    %v2914 = vadd.f32 %v2909, %v2912
    %v2915 = vmul.f32 %v2899, %v2906
    %v2916 = vmul.f32 %v2915, %v2619
    %v2917 = vmul.f32 %v2915, %v2623
    %v2918 = vadd.f32 %v2913, %v2916
    %v2919 = vadd.f32 %v2914, %v2917
    %v2920 = vmul.f32 %v2902, %v2906
    %v2921 = vmul.f32 %v2920, %v2621
    %v2922 = vmul.f32 %v2920, %v2625
    %v2923 = vadd.f32 %v2918, %v2921
    %v2924 = vadd.f32 %v2919, %v2922
    %2925 = vst [vmem:[#allocation4 + $0x18] sm:$0xff] %v2923
    %2926 = vst [vmem:[#allocation4 + $0x38] sm:$0xff] %v2924
    %s2927 = scalar_lea.vmem %s7, 16
    %v2928 = vld [vmem:[%s2927] sm:$0xf]
    %v2929 = vld [vmem:[%s2927 + $0x4] sm:$0xf]
    %v2930 = vld [vmem:[#allocation4] sm:$0xff]
    %v2931 = vld [vmem:[#allocation4 + $0x8] sm:$0xff]
    %v2932 = vld [vmem:[#allocation4 + $0x10] sm:$0xff]
    %v2933 = vld [vmem:[#allocation4 + $0x18] sm:$0xff]
    %v2934 = vld [vmem:[#allocation4 + $0x20] sm:$0xff]
    %v2935 = vld [vmem:[#allocation4 + $0x28] sm:$0xff]
    %v2936 = vld [vmem:[#allocation4 + $0x30] sm:$0xff]
    %v2937 = vld [vmem:[#allocation4 + $0x38] sm:$0xff]
    %v2938 = vpack.c.bf16 %v2934, %v2930
    %v2939 = vpack.c.bf16 %v2935, %v2931
    %v2940 = vpack.c.bf16 %v2936, %v2932
    %v2941 = vpack.c.bf16 %v2937, %v2933
    %s2942 = scalar_lea.vmem %s8, 32
    %v2943 = vld [vmem:[%s2942] sm:$0xff]
    %v2944 = vld [vmem:[%s2942 + $0x8] sm:$0xff]
    %2946 = vset.pattern.permute.xlu0 0
    %2947 = vperm.xlu0 %2946, %v2943
    %v2948 = vpop.permute.xlu0 %2947
    %2951 = vset.pattern.permute.xlu0 0
    %2952 = vperm.xlu0 %2951, %v2944
    %v2953 = vpop.permute.xlu0 %2952
    %v2957 = vunpack.c.l.b16 %v2928
    %v2958 = vunpack.c.l.b16 %v2929
    %v2959 = vpack.c.b16 %v2958, %v2957
    %v2961 = vsel %vm1171, %v2959, 0
    %2963 = vmatprep.subr.bf16.mxu0 %v2939
    %2964 = vmatpush1.bf16.msra.mxu0 %v2938
    %2965 = vmatprep.subr.bf16.mxu0 0
    %2966 = vmatpush1.bf16.msra.mxu0 0
    %2967 = vmatprep.subr.bf16.mxu0 0
    %2968 = vmatpush1.bf16.msra.mxu0 0
    %2969 = vmatprep.subr.bf16.mxu0 0
    %2970 = vmatpush1.bf16.msra.mxu0 0
    %2971 = vmatprep.subr.bf16.mxu0 0
    %2972 = vmatpush1.bf16.msra.mxu0 0
    %2973 = vmatprep.subr.bf16.mxu0 0
    %2974 = vmatpush1.bf16.msra.mxu0 0
    %2975 = vmatprep.subr.bf16.mxu0 0
    %2976 = vmatpush1.bf16.msra.mxu0 0
    %2977 = vmatprep.subr.bf16.mxu0 0
    %2978 = vmatpush1.bf16.msra.mxu0 0
    %2979 = vmatprep.subr.bf16.mxu0 0
    %2980 = vmatpush1.bf16.msra.mxu0 0
    %2981 = vmatprep.subr.bf16.mxu0 0
    %2982 = vmatpush1.bf16.msra.mxu0 0
    %2983 = vmatprep.subr.bf16.mxu0 0
    %2984 = vmatpush1.bf16.msra.mxu0 0
    %2985 = vmatprep.subr.bf16.mxu0 0
    %2986 = vmatpush1.bf16.msra.mxu0 0
    %2987 = vmatprep.subr.bf16.mxu0 0
    %2988 = vmatpush1.bf16.msra.mxu0 0
    %2989 = vmatprep.subr.bf16.mxu0 0
    %2990 = vmatpush1.bf16.msra.mxu0 0
    %2991 = vmatprep.subr.bf16.mxu0 0
    %2992 = vmatpush1.bf16.msra.mxu0 0
    %2993 = vmatprep.subr.bf16.mxu0 0
    %2994 = vmatpush1.bf16.msra.mxu0 0
    %2995 = vmatprep.mubr.bf16.mxu0 0
    %2996 = vmatmul.mubr.bf16.gmra.mrb[0].mxu0 %v2961
    %v2997 = vpop.f32.mrb[0].mxu0
    %v2998 = vadd.f32 %v2948, %v2997
    %v2999 = vpop.f32.mrb[0].mxu0
    %v3000 = vadd.f32 %v2948, %v2999
    %v3001 = vpop.f32.mrb[0].mxu0
    %v3002 = vadd.f32 %v2953, %v3001
    %v3003 = vpop.f32.mrb[0].mxu0
    %v3004 = vadd.f32 %v2953, %v3003
    %3005 = vdwg.mxu0
    %3006 = vmatprep.subr.bf16.mxu0 %v2941
    %3007 = vmatpush1.bf16.msra.mxu0 %v2940
    %3008 = vmatprep.subr.bf16.mxu0 0
    %3009 = vmatpush1.bf16.msra.mxu0 0
    %3010 = vmatprep.subr.bf16.mxu0 0
    %3011 = vmatpush1.bf16.msra.mxu0 0
    %3012 = vmatprep.subr.bf16.mxu0 0
    %3013 = vmatpush1.bf16.msra.mxu0 0
    %3014 = vmatprep.subr.bf16.mxu0 0
    %3015 = vmatpush1.bf16.msra.mxu0 0
    %3016 = vmatprep.subr.bf16.mxu0 0
    %3017 = vmatpush1.bf16.msra.mxu0 0
    %3018 = vmatprep.subr.bf16.mxu0 0
    %3019 = vmatpush1.bf16.msra.mxu0 0
    %3020 = vmatprep.subr.bf16.mxu0 0
    %3021 = vmatpush1.bf16.msra.mxu0 0
    %3022 = vmatprep.subr.bf16.mxu0 0
    %3023 = vmatpush1.bf16.msra.mxu0 0
    %3024 = vmatprep.subr.bf16.mxu0 0
    %3025 = vmatpush1.bf16.msra.mxu0 0
    %3026 = vmatprep.subr.bf16.mxu0 0
    %3027 = vmatpush1.bf16.msra.mxu0 0
    %3028 = vmatprep.subr.bf16.mxu0 0
    %3029 = vmatpush1.bf16.msra.mxu0 0
    %3030 = vmatprep.subr.bf16.mxu0 0
    %3031 = vmatpush1.bf16.msra.mxu0 0
    %3032 = vmatprep.subr.bf16.mxu0 0
    %3033 = vmatpush1.bf16.msra.mxu0 0
    %3034 = vmatprep.subr.bf16.mxu0 0
    %3035 = vmatpush1.bf16.msra.mxu0 0
    %3036 = vmatprep.subr.bf16.mxu0 0
    %3037 = vmatpush1.bf16.msra.mxu0 0
    %3038 = vmatprep.mubr.bf16.mxu0 0
    %3039 = vmatmul.mubr.bf16.gmra.mrb[0].mxu0 %v2961
    %v3040 = vpop.f32.mrb[0].mxu0
    %v3041 = vadd.f32 %v2948, %v3040
    %v3042 = vpop.f32.mrb[0].mxu0
    %v3043 = vadd.f32 %v2948, %v3042
    %v3044 = vpop.f32.mrb[0].mxu0
    %v3045 = vadd.f32 %v2953, %v3044
    %v3046 = vpop.f32.mrb[0].mxu0
    %v3047 = vadd.f32 %v2953, %v3046
    %3048 = vdwg.mxu0
    %s3049 = scalar_lea.vmem %s9, 16
    %v3050 = vld [vmem:[%s3049] sm:$0xf]
    %v3051 = vld [vmem:[%s3049 + $0x4] sm:$0xf]
    %v3052 = vpack.c.bf16 %v3002, %v2998
    %v3053 = vpack.c.bf16 %v3004, %v3000
    %v3054 = vpack.c.bf16 %v3045, %v3041
    %v3055 = vpack.c.bf16 %v3047, %v3043
    %s3056 = scalar_lea.vmem %s10, 32
    %v3057 = vld [vmem:[%s3056] sm:$0xff]
    %v3058 = vld [vmem:[%s3056 + $0x8] sm:$0xff]
    %3060 = vset.pattern.permute.xlu0 0
    %3061 = vperm.xlu0 %3060, %v3057
    %v3062 = vpop.permute.xlu0 %3061
    %3065 = vset.pattern.permute.xlu0 0
    %3066 = vperm.xlu0 %3065, %v3058
    %v3067 = vpop.permute.xlu0 %3066
    %v3071 = vunpack.c.l.b16 %v3050
    %v3072 = vunpack.c.l.b16 %v3051
    %v3073 = vpack.c.b16 %v3072, %v3071
    %v3075 = vsel %vm1171, %v3073, 0
    %3077 = vmatprep.subr.bf16.mxu0 %v3053
    %3078 = vmatpush1.bf16.msra.mxu0 %v3052
    %3079 = vmatprep.subr.bf16.mxu0 0
    %3080 = vmatpush1.bf16.msra.mxu0 0
    %3081 = vmatprep.subr.bf16.mxu0 0
    %3082 = vmatpush1.bf16.msra.mxu0 0
    %3083 = vmatprep.subr.bf16.mxu0 0
    %3084 = vmatpush1.bf16.msra.mxu0 0
    %3085 = vmatprep.subr.bf16.mxu0 0
    %3086 = vmatpush1.bf16.msra.mxu0 0
    %3087 = vmatprep.subr.bf16.mxu0 0
    %3088 = vmatpush1.bf16.msra.mxu0 0
    %3089 = vmatprep.subr.bf16.mxu0 0
    %3090 = vmatpush1.bf16.msra.mxu0 0
    %3091 = vmatprep.subr.bf16.mxu0 0
    %3092 = vmatpush1.bf16.msra.mxu0 0
    %3093 = vmatprep.subr.bf16.mxu0 0
    %3094 = vmatpush1.bf16.msra.mxu0 0
    %3095 = vmatprep.subr.bf16.mxu0 0
    %3096 = vmatpush1.bf16.msra.mxu0 0
    %3097 = vmatprep.subr.bf16.mxu0 0
    %3098 = vmatpush1.bf16.msra.mxu0 0
    %3099 = vmatprep.subr.bf16.mxu0 0
    %3100 = vmatpush1.bf16.msra.mxu0 0
    %3101 = vmatprep.subr.bf16.mxu0 0
    %3102 = vmatpush1.bf16.msra.mxu0 0
    %3103 = vmatprep.subr.bf16.mxu0 0
    %3104 = vmatpush1.bf16.msra.mxu0 0
    %3105 = vmatprep.subr.bf16.mxu0 0
    %3106 = vmatpush1.bf16.msra.mxu0 0
    %3107 = vmatprep.subr.bf16.mxu0 0
    %3108 = vmatpush1.bf16.msra.mxu0 0
    %3109 = vmatprep.mubr.bf16.mxu0 0
    %3110 = vmatmul.mubr.bf16.gmra.mrb[0].mxu0 %v3075
    %v3111 = vpop.f32.mrb[0].mxu0
    %v3112 = vadd.f32 %v3062, %v3111
    %v3113 = vpop.f32.mrb[0].mxu0
    %v3114 = vadd.f32 %v3062, %v3113
    %v3115 = vpop.f32.mrb[0].mxu0
    %v3116 = vadd.f32 %v3067, %v3115
    %v3117 = vpop.f32.mrb[0].mxu0
    %v3118 = vadd.f32 %v3067, %v3117
    %3119 = vdwg.mxu0
    %3120 = vmatprep.subr.bf16.mxu0 %v3055
    %3121 = vmatpush1.bf16.msra.mxu0 %v3054
    %3122 = vmatprep.subr.bf16.mxu0 0
    %3123 = vmatpush1.bf16.msra.mxu0 0
    %3124 = vmatprep.subr.bf16.mxu0 0
    %3125 = vmatpush1.bf16.msra.mxu0 0
    %3126 = vmatprep.subr.bf16.mxu0 0
    %3127 = vmatpush1.bf16.msra.mxu0 0
    %3128 = vmatprep.subr.bf16.mxu0 0
    %3129 = vmatpush1.bf16.msra.mxu0 0
    %3130 = vmatprep.subr.bf16.mxu0 0
    %3131 = vmatpush1.bf16.msra.mxu0 0
    %3132 = vmatprep.subr.bf16.mxu0 0
    %3133 = vmatpush1.bf16.msra.mxu0 0
    %3134 = vmatprep.subr.bf16.mxu0 0
    %3135 = vmatpush1.bf16.msra.mxu0 0
    %3136 = vmatprep.subr.bf16.mxu0 0
    %3137 = vmatpush1.bf16.msra.mxu0 0
    %3138 = vmatprep.subr.bf16.mxu0 0
    %3139 = vmatpush1.bf16.msra.mxu0 0
    %3140 = vmatprep.subr.bf16.mxu0 0
    %3141 = vmatpush1.bf16.msra.mxu0 0
    %3142 = vmatprep.subr.bf16.mxu0 0
    %3143 = vmatpush1.bf16.msra.mxu0 0
    %3144 = vmatprep.subr.bf16.mxu0 0
    %3145 = vmatpush1.bf16.msra.mxu0 0
    %3146 = vmatprep.subr.bf16.mxu0 0
    %3147 = vmatpush1.bf16.msra.mxu0 0
    %3148 = vmatprep.subr.bf16.mxu0 0
    %3149 = vmatpush1.bf16.msra.mxu0 0
    %3150 = vmatprep.subr.bf16.mxu0 0
    %3151 = vmatpush1.bf16.msra.mxu0 0
    %3152 = vmatprep.mubr.bf16.mxu0 0
    %3153 = vmatmul.mubr.bf16.gmra.mrb[0].mxu0 %v3075
    %v3154 = vpop.f32.mrb[0].mxu0
    %v3155 = vadd.f32 %v3062, %v3154
    %v3156 = vpop.f32.mrb[0].mxu0
    %v3157 = vadd.f32 %v3062, %v3156
    %v3158 = vpop.f32.mrb[0].mxu0
    %v3159 = vadd.f32 %v3067, %v3158
    %v3160 = vpop.f32.mrb[0].mxu0
    %v3161 = vadd.f32 %v3067, %v3160
    %3162 = vdwg.mxu0
    %v3163 = vmul.f32 %v3112, 0.5
    %v3164 = vmul.f32 %v3114, 0.5
    %v3165 = vmul.f32 %v3155, 0.5
    %v3166 = vmul.f32 %v3157, 0.5
    %v3167 = vmul.f32 %v3116, 0.5
    %v3168 = vmul.f32 %v3118, 0.5
    %v3169 = vmul.f32 %v3159, 0.5
    %v3170 = vmul.f32 %v3161, 0.5
    %v3171 = vmul.f32 %v3112, 0.70710677
    %v3172 = vmul.f32 %v3114, 0.70710677
    %v3173 = vmul.f32 %v3155, 0.70710677
    %v3174 = vmul.f32 %v3157, 0.70710677
    %v3175 = vmul.f32 %v3116, 0.70710677
    %v3176 = vmul.f32 %v3118, 0.70710677
    %v3177 = vmul.f32 %v3159, 0.70710677
    %v3178 = vmul.f32 %v3161, 0.70710677
    %v3179 = verf.f32.pop %v3171
    %v3180 = verf.f32.pop %v3172
    %v3181 = verf.f32.pop %v3173
    %v3182 = verf.f32.pop %v3174
    %v3183 = verf.f32.pop %v3175
    %v3184 = verf.f32.pop %v3176
    %v3185 = verf.f32.pop %v3177
    %v3186 = verf.f32.pop %v3178
    %v3187 = vadd.f32 %v3179, 1.0
    %v3188 = vadd.f32 %v3180, 1.0
    %v3189 = vadd.f32 %v3181, 1.0
    %v3190 = vadd.f32 %v3182, 1.0
    %v3191 = vadd.f32 %v3183, 1.0
    %v3192 = vadd.f32 %v3184, 1.0
    %v3193 = vadd.f32 %v3185, 1.0
    %v3194 = vadd.f32 %v3186, 1.0
    %v3195 = vmul.f32 %v3163, %v3187
    %v3196 = vmul.f32 %v3164, %v3188
    %v3197 = vmul.f32 %v3165, %v3189
    %v3198 = vmul.f32 %v3166, %v3190
    %v3199 = vmul.f32 %v3167, %v3191
    %v3200 = vmul.f32 %v3168, %v3192
    %v3201 = vmul.f32 %v3169, %v3193
    %v3202 = vmul.f32 %v3170, %v3194
    %s3203 = scalar_lea.vmem %s11, 16
    %v3204 = vld [vmem:[%s3203] sm:$0xf]
    %v3205 = vld [vmem:[%s3203 + $0x4] sm:$0xf]
    %v3206 = vpack.c.bf16 %v3199, %v3195
    %v3207 = vpack.c.bf16 %v3200, %v3196
    %v3208 = vpack.c.bf16 %v3201, %v3197
    %v3209 = vpack.c.bf16 %v3202, %v3198
    %s3210 = scalar_lea.vmem %s12, 32
    %v3211 = vld [vmem:[%s3210] sm:$0xff]
    %v3212 = vld [vmem:[%s3210 + $0x8] sm:$0xff]
    %3214 = vset.pattern.permute.xlu0 0
    %3215 = vperm.xlu0 %3214, %v3211
    %v3216 = vpop.permute.xlu0 %3215
    %3219 = vset.pattern.permute.xlu0 0
    %3220 = vperm.xlu0 %3219, %v3212
    %v3221 = vpop.permute.xlu0 %3220
    %v3225 = vunpack.c.l.b16 %v3204
    %v3226 = vunpack.c.l.b16 %v3205
    %v3227 = vpack.c.b16 %v3226, %v3225
    %v3229 = vsel %vm1171, %v3227, 0
    %3231 = vmatprep.subr.bf16.mxu0 %v3207
    %3232 = vmatpush1.bf16.msra.mxu0 %v3206
    %3233 = vmatprep.subr.bf16.mxu0 0
    %3234 = vmatpush1.bf16.msra.mxu0 0
    %3235 = vmatprep.subr.bf16.mxu0 0
    %3236 = vmatpush1.bf16.msra.mxu0 0
    %3237 = vmatprep.subr.bf16.mxu0 0
    %3238 = vmatpush1.bf16.msra.mxu0 0
    %3239 = vmatprep.subr.bf16.mxu0 0
    %3240 = vmatpush1.bf16.msra.mxu0 0
    %3241 = vmatprep.subr.bf16.mxu0 0
    %3242 = vmatpush1.bf16.msra.mxu0 0
    %3243 = vmatprep.subr.bf16.mxu0 0
    %3244 = vmatpush1.bf16.msra.mxu0 0
    %3245 = vmatprep.subr.bf16.mxu0 0
    %3246 = vmatpush1.bf16.msra.mxu0 0
    %3247 = vmatprep.subr.bf16.mxu0 0
    %3248 = vmatpush1.bf16.msra.mxu0 0
    %3249 = vmatprep.subr.bf16.mxu0 0
    %3250 = vmatpush1.bf16.msra.mxu0 0
    %3251 = vmatprep.subr.bf16.mxu0 0
    %3252 = vmatpush1.bf16.msra.mxu0 0
    %3253 = vmatprep.subr.bf16.mxu0 0
    %3254 = vmatpush1.bf16.msra.mxu0 0
    %3255 = vmatprep.subr.bf16.mxu0 0
    %3256 = vmatpush1.bf16.msra.mxu0 0
    %3257 = vmatprep.subr.bf16.mxu0 0
    %3258 = vmatpush1.bf16.msra.mxu0 0
    %3259 = vmatprep.subr.bf16.mxu0 0
    %3260 = vmatpush1.bf16.msra.mxu0 0
    %3261 = vmatprep.subr.bf16.mxu0 0
    %3262 = vmatpush1.bf16.msra.mxu0 0
    %3263 = vmatprep.mubr.bf16.mxu0 0
    %3264 = vmatmul.mubr.bf16.gmra.mrb[0].mxu0 %v3229
    %v3265 = vpop.f32.mrb[0].mxu0
    %v3266 = vadd.f32 %v3216, %v3265
    %v3267 = vpop.f32.mrb[0].mxu0
    %v3268 = vadd.f32 %v3216, %v3267
    %v3269 = vpop.f32.mrb[0].mxu0
    %v3270 = vadd.f32 %v3221, %v3269
    %v3271 = vpop.f32.mrb[0].mxu0
    %v3272 = vadd.f32 %v3221, %v3271
    %3273 = vdwg.mxu0
    %3274 = vmatprep.subr.bf16.mxu0 %v3209
    %3275 = vmatpush1.bf16.msra.mxu0 %v3208
    %3276 = vmatprep.subr.bf16.mxu0 0
    %3277 = vmatpush1.bf16.msra.mxu0 0
    %3278 = vmatprep.subr.bf16.mxu0 0
    %3279 = vmatpush1.bf16.msra.mxu0 0
    %3280 = vmatprep.subr.bf16.mxu0 0
    %3281 = vmatpush1.bf16.msra.mxu0 0
    %3282 = vmatprep.subr.bf16.mxu0 0
    %3283 = vmatpush1.bf16.msra.mxu0 0
    %3284 = vmatprep.subr.bf16.mxu0 0
    %3285 = vmatpush1.bf16.msra.mxu0 0
    %3286 = vmatprep.subr.bf16.mxu0 0
    %3287 = vmatpush1.bf16.msra.mxu0 0
    %3288 = vmatprep.subr.bf16.mxu0 0
    %3289 = vmatpush1.bf16.msra.mxu0 0
    %3290 = vmatprep.subr.bf16.mxu0 0
    %3291 = vmatpush1.bf16.msra.mxu0 0
    %3292 = vmatprep.subr.bf16.mxu0 0
    %3293 = vmatpush1.bf16.msra.mxu0 0
    %3294 = vmatprep.subr.bf16.mxu0 0
    %3295 = vmatpush1.bf16.msra.mxu0 0
    %3296 = vmatprep.subr.bf16.mxu0 0
    %3297 = vmatpush1.bf16.msra.mxu0 0
    %3298 = vmatprep.subr.bf16.mxu0 0
    %3299 = vmatpush1.bf16.msra.mxu0 0
    %3300 = vmatprep.subr.bf16.mxu0 0
    %3301 = vmatpush1.bf16.msra.mxu0 0
    %3302 = vmatprep.subr.bf16.mxu0 0
    %3303 = vmatpush1.bf16.msra.mxu0 0
    %3304 = vmatprep.subr.bf16.mxu0 0
    %3305 = vmatpush1.bf16.msra.mxu0 0
    %3306 = vmatprep.mubr.bf16.mxu0 0
    %3307 = vmatmul.mubr.bf16.gmra.mrb[0].mxu0 %v3229
    %v3308 = vpop.f32.mrb[0].mxu0
    %v3309 = vadd.f32 %v3216, %v3308
    %v3310 = vpop.f32.mrb[0].mxu0
    %v3311 = vadd.f32 %v3216, %v3310
    %v3312 = vpop.f32.mrb[0].mxu0
    %v3313 = vadd.f32 %v3221, %v3312
    %v3314 = vpop.f32.mrb[0].mxu0
    %v3315 = vadd.f32 %v3221, %v3314
    %3316 = vdwg.mxu0
    %v3317 = vadd.f32 %v2998, %v3266
    %v3318 = vadd.f32 %v3000, %v3268
    %v3319 = vadd.f32 %v3041, %v3309
    %v3320 = vadd.f32 %v3043, %v3311
    %v3321 = vadd.f32 %v3002, %v3270
    %v3322 = vadd.f32 %v3004, %v3272
    %v3323 = vadd.f32 %v3045, %v3313
    %v3324 = vadd.f32 %v3047, %v3315
    %s3325 = scalar_lea.vmem %s5, 72
    %v3326 = vld [vmem:[%s3325] sm:$0xf]
    %v3327 = vld [vmem:[%s3325 + $0x4] sm:$0xf]
    %v3328 = vld [vmem:[%s3325 + $0x8] sm:$0xf]
    %v3329 = vld [vmem:[%s3325 + $0xc] sm:$0xf]
    %v3330 = vld [vmem:[%s3325 + $0x10] sm:$0xf]
    %v3331 = vld [vmem:[%s3325 + $0x14] sm:$0xf]
    %v3332 = vpack.c.bf16 %v3321, %v3317
    %v3333 = vpack.c.bf16 %v3322, %v3318
    %v3334 = vpack.c.bf16 %v3323, %v3319
    %v3335 = vpack.c.bf16 %v3324, %v3320
    %s3336 = scalar_lea.vmem %s6, 144
    %v3337 = vld [vmem:[%s3336] sm:$0xff]
    %v3338 = vld [vmem:[%s3336 + $0x8] sm:$0xff]
    %v3339 = vld [vmem:[%s3336 + $0x10] sm:$0xff]
    %v3340 = vld [vmem:[%s3336 + $0x18] sm:$0xff]
    %v3341 = vld [vmem:[%s3336 + $0x20] sm:$0xff]
    %v3342 = vld [vmem:[%s3336 + $0x28] sm:$0xff]
    %3344 = vset.pattern.permute.xlu0 0
    %3345 = vperm.xlu0 %3344, %v3337
    %v3346 = vpop.permute.xlu0 %3345
    %3349 = vset.pattern.permute.xlu0 0
    %3350 = vperm.xlu0 %3349, %v3338
    %v3351 = vpop.permute.xlu0 %3350
    %3354 = vset.pattern.permute.xlu0 0
    %3355 = vperm.xlu0 %3354, %v3339
    %v3356 = vpop.permute.xlu0 %3355
    %3359 = vset.pattern.permute.xlu0 0
    %3360 = vperm.xlu0 %3359, %v3340
    %v3361 = vpop.permute.xlu0 %3360
    %3364 = vset.pattern.permute.xlu0 0
    %3365 = vperm.xlu0 %3364, %v3341
    %v3366 = vpop.permute.xlu0 %3365
    %3369 = vset.pattern.permute.xlu0 0
    %3370 = vperm.xlu0 %3369, %v3342
    %v3371 = vpop.permute.xlu0 %3370
    %v3379 = vunpack.c.l.b16 %v3326
    %v3380 = vunpack.c.l.b16 %v3327
    %v3381 = vunpack.c.l.b16 %v3328
    %v3382 = vunpack.c.l.b16 %v3329
    %v3383 = vunpack.c.l.b16 %v3330
    %v3384 = vunpack.c.l.b16 %v3331
    %v3385 = vpack.c.b16 %v3380, %v3379
    %v3386 = vpack.c.b16 %v3382, %v3381
    %v3387 = vpack.c.b16 %v3384, %v3383
    %v3389 = vsel %vm1171, %v3385, 0
    %v3392 = vsel %vm1171, %v3386, 0
    %v3395 = vsel %vm1171, %v3387, 0
    %3397 = vmatprep.subr.bf16.mxu0 %v3333
    %3398 = vmatpush1.bf16.msra.mxu0 %v3332
    %3399 = vmatprep.subr.bf16.mxu0 0
    %3400 = vmatpush1.bf16.msra.mxu0 0
    %3401 = vmatprep.subr.bf16.mxu0 0
    %3402 = vmatpush1.bf16.msra.mxu0 0
    %3403 = vmatprep.subr.bf16.mxu0 0
    %3404 = vmatpush1.bf16.msra.mxu0 0
    %3405 = vmatprep.subr.bf16.mxu0 0
    %3406 = vmatpush1.bf16.msra.mxu0 0
    %3407 = vmatprep.subr.bf16.mxu0 0
    %3408 = vmatpush1.bf16.msra.mxu0 0
    %3409 = vmatprep.subr.bf16.mxu0 0
    %3410 = vmatpush1.bf16.msra.mxu0 0
    %3411 = vmatprep.subr.bf16.mxu0 0
    %3412 = vmatpush1.bf16.msra.mxu0 0
    %3413 = vmatprep.subr.bf16.mxu0 0
    %3414 = vmatpush1.bf16.msra.mxu0 0
    %3415 = vmatprep.subr.bf16.mxu0 0
    %3416 = vmatpush1.bf16.msra.mxu0 0
    %3417 = vmatprep.subr.bf16.mxu0 0
    %3418 = vmatpush1.bf16.msra.mxu0 0
    %3419 = vmatprep.subr.bf16.mxu0 0
    %3420 = vmatpush1.bf16.msra.mxu0 0
    %3421 = vmatprep.subr.bf16.mxu0 0
    %3422 = vmatpush1.bf16.msra.mxu0 0
    %3423 = vmatprep.subr.bf16.mxu0 0
    %3424 = vmatpush1.bf16.msra.mxu0 0
    %3425 = vmatprep.subr.bf16.mxu0 0
    %3426 = vmatpush1.bf16.msra.mxu0 0
    %3427 = vmatprep.subr.bf16.mxu0 0
    %3428 = vmatpush1.bf16.msra.mxu0 0
    %3429 = vmatprep.mubr.bf16.mxu0 0
    %3430 = vmatmul.mubr.bf16.gmra.mrb[0].mxu0 %v3389
    %v3431 = vpop.f32.mrb[0].mxu0
    %v3432 = vadd.f32 %v3346, %v3431
    %v3433 = vpop.f32.mrb[0].mxu0
    %v3434 = vadd.f32 %v3346, %v3433
    %v3435 = vpop.f32.mrb[0].mxu0
    %v3436 = vadd.f32 %v3351, %v3435
    %v3437 = vpop.f32.mrb[0].mxu0
    %v3438 = vadd.f32 %v3351, %v3437
    %3439 = vmatprep.mubr.bf16.mxu0 0
    %3440 = vmatmul.mubr.bf16.gmra.mrb[0].mxu0 %v3392
    %v3441 = vpop.f32.mrb[0].mxu0
    %v3442 = vadd.f32 %v3356, %v3441
    %v3443 = vpop.f32.mrb[0].mxu0
    %v3444 = vadd.f32 %v3356, %v3443
    %v3445 = vpop.f32.mrb[0].mxu0
    %v3446 = vadd.f32 %v3361, %v3445
    %v3447 = vpop.f32.mrb[0].mxu0
    %v3448 = vadd.f32 %v3361, %v3447
    %3449 = vmatprep.mubr.bf16.mxu0 0
    %3450 = vmatmul.mubr.bf16.gmra.mrb[0].mxu0 %v3395
    %v3451 = vpop.f32.mrb[0].mxu0
    %v3452 = vadd.f32 %v3366, %v3451
    %v3453 = vpop.f32.mrb[0].mxu0
    %v3454 = vadd.f32 %v3366, %v3453
    %v3455 = vpop.f32.mrb[0].mxu0
    %v3456 = vadd.f32 %v3371, %v3455
    %v3457 = vpop.f32.mrb[0].mxu0
    %v3458 = vadd.f32 %v3371, %v3457
    %3459 = vdwg.mxu0
    %3460 = vmatprep.subr.bf16.mxu0 %v3335
    %3461 = vmatpush1.bf16.msra.mxu0 %v3334
    %3462 = vmatprep.subr.bf16.mxu0 0
    %3463 = vmatpush1.bf16.msra.mxu0 0
    %3464 = vmatprep.subr.bf16.mxu0 0
    %3465 = vmatpush1.bf16.msra.mxu0 0
    %3466 = vmatprep.subr.bf16.mxu0 0
    %3467 = vmatpush1.bf16.msra.mxu0 0
    %3468 = vmatprep.subr.bf16.mxu0 0
    %3469 = vmatpush1.bf16.msra.mxu0 0
    %3470 = vmatprep.subr.bf16.mxu0 0
    %3471 = vmatpush1.bf16.msra.mxu0 0
    %3472 = vmatprep.subr.bf16.mxu0 0
    %3473 = vmatpush1.bf16.msra.mxu0 0
    %3474 = vmatprep.subr.bf16.mxu0 0
    %3475 = vmatpush1.bf16.msra.mxu0 0
    %3476 = vmatprep.subr.bf16.mxu0 0
    %3477 = vmatpush1.bf16.msra.mxu0 0
    %3478 = vmatprep.subr.bf16.mxu0 0
    %3479 = vmatpush1.bf16.msra.mxu0 0
    %3480 = vmatprep.subr.bf16.mxu0 0
    %3481 = vmatpush1.bf16.msra.mxu0 0
    %3482 = vmatprep.subr.bf16.mxu0 0
    %3483 = vmatpush1.bf16.msra.mxu0 0
    %3484 = vmatprep.subr.bf16.mxu0 0
    %3485 = vmatpush1.bf16.msra.mxu0 0
    %3486 = vmatprep.subr.bf16.mxu0 0
    %3487 = vmatpush1.bf16.msra.mxu0 0
    %3488 = vmatprep.subr.bf16.mxu0 0
    %3489 = vmatpush1.bf16.msra.mxu0 0
    %3490 = vmatprep.subr.bf16.mxu0 0
    %3491 = vmatpush1.bf16.msra.mxu0 0
    %3492 = vmatprep.mubr.bf16.mxu0 0
    %3493 = vmatmul.mubr.bf16.gmra.mrb[0].mxu0 %v3389
    %v3494 = vpop.f32.mrb[0].mxu0
    %v3495 = vadd.f32 %v3346, %v3494
    %v3496 = vpop.f32.mrb[0].mxu0
    %v3497 = vadd.f32 %v3346, %v3496
    %v3498 = vpop.f32.mrb[0].mxu0
    %v3499 = vadd.f32 %v3351, %v3498
    %v3500 = vpop.f32.mrb[0].mxu0
    %v3501 = vadd.f32 %v3351, %v3500
    %3502 = vmatprep.mubr.bf16.mxu0 0
    %3503 = vmatmul.mubr.bf16.gmra.mrb[0].mxu0 %v3392
    %v3504 = vpop.f32.mrb[0].mxu0
    %v3505 = vadd.f32 %v3356, %v3504
    %v3506 = vpop.f32.mrb[0].mxu0
    %v3507 = vadd.f32 %v3356, %v3506
    %v3508 = vpop.f32.mrb[0].mxu0
    %v3509 = vadd.f32 %v3361, %v3508
    %v3510 = vpop.f32.mrb[0].mxu0
    %v3511 = vadd.f32 %v3361, %v3510
    %3512 = vmatprep.mubr.bf16.mxu0 0
    %3513 = vmatmul.mubr.bf16.gmra.mrb[0].mxu0 %v3395
    %v3514 = vpop.f32.mrb[0].mxu0
    %v3515 = vadd.f32 %v3366, %v3514
    %v3516 = vpop.f32.mrb[0].mxu0
    %v3517 = vadd.f32 %v3366, %v3516
    %v3518 = vpop.f32.mrb[0].mxu0
    %v3519 = vadd.f32 %v3371, %v3518
    %v3520 = vpop.f32.mrb[0].mxu0
    %v3521 = vadd.f32 %v3371, %v3520
    %3522 = vdwg.mxu0
    %v3523 = vmul.f32 %v3432, %v3442
    %v3524 = vmul.f32 %v3436, %v3446
    %v3525 = vadd.f32 %v3523, %v3524
    %v3526 = vrot.slane %v3525, 4
    %v3527 = vadd.f32 %v3525, %v3526
    %v3528 = vrot.slane %v3527, 2
    %v3529 = vadd.f32 %v3527, %v3528
    %v3530 = vrot.slane %v3529, 1
    %v3531 = vadd.f32 %v3529, %v3530
    %v3532 = vmul.f32 %v3432, %v3444
    %v3533 = vmul.f32 %v3436, %v3448
    %v3534 = vadd.f32 %v3532, %v3533
    %v3535 = vrot.slane %v3534, 4
    %v3536 = vadd.f32 %v3534, %v3535
    %v3537 = vrot.slane %v3536, 2
    %v3538 = vadd.f32 %v3536, %v3537
    %v3539 = vrot.slane %v3538, 1
    %v3540 = vadd.f32 %v3538, %v3539
    %v3541 = vmul.f32 %v3432, %v3505
    %v3542 = vmul.f32 %v3436, %v3509
    %v3543 = vadd.f32 %v3541, %v3542
    %v3544 = vrot.slane %v3543, 4
    %v3545 = vadd.f32 %v3543, %v3544
    %v3546 = vrot.slane %v3545, 2
    %v3547 = vadd.f32 %v3545, %v3546
    %v3548 = vrot.slane %v3547, 1
    %v3549 = vadd.f32 %v3547, %v3548
    %v3550 = vmul.f32 %v3432, %v3507
    %v3551 = vmul.f32 %v3436, %v3511
    %v3552 = vadd.f32 %v3550, %v3551
    %v3553 = vrot.slane %v3552, 4
    %v3554 = vadd.f32 %v3552, %v3553
    %v3555 = vrot.slane %v3554, 2
    %v3556 = vadd.f32 %v3554, %v3555
    %v3557 = vrot.slane %v3556, 1
    %v3558 = vadd.f32 %v3556, %v3557
    %v3559 = vmax.f32 %v3531, %v3540
    %v3560 = vmax.f32 %v3559, %v3549
    %v3561 = vmax.f32 %v3560, %v3558
    %v3562 = vsub.f32 %v3531, %v3561
    %v3563 = vmul.f32 %v3562, 1.442695
    %v3564 = vpow.pop %v3563
    %v3565 = vsub.f32 %v3540, %v3561
    %v3566 = vmul.f32 %v3565, 1.442695
    %v3567 = vpow.pop %v3566
    %v3568 = vsub.f32 %v3549, %v3561
    %v3569 = vmul.f32 %v3568, 1.442695
    %v3570 = vpow.pop %v3569
    %v3571 = vsub.f32 %v3558, %v3561
    %v3572 = vmul.f32 %v3571, 1.442695
    %v3573 = vpow.pop %v3572
    %v3574 = vadd.f32 %v3564, %v3567
    %v3575 = vadd.f32 %v3574, %v3570
    %v3576 = vadd.f32 %v3575, %v3573
    %v3577 = vrcp.pop %v3576
    %v3578 = vmul.f32 %v3564, %v3577
    %v3579 = vmul.f32 %v3578, %v3452
    %v3580 = vmul.f32 %v3578, %v3456
    %v3581 = vmul.f32 %v3567, %v3577
    %v3582 = vmul.f32 %v3581, %v3454
    %v3583 = vmul.f32 %v3581, %v3458
    %v3584 = vadd.f32 %v3579, %v3582
    %v3585 = vadd.f32 %v3580, %v3583
    %v3586 = vmul.f32 %v3570, %v3577
    %v3587 = vmul.f32 %v3586, %v3515
    %v3588 = vmul.f32 %v3586, %v3519
    %v3589 = vadd.f32 %v3584, %v3587
    %v3590 = vadd.f32 %v3585, %v3588
    %v3591 = vmul.f32 %v3573, %v3577
    %v3592 = vmul.f32 %v3591, %v3517
    %v3593 = vmul.f32 %v3591, %v3521
    %v3594 = vadd.f32 %v3589, %v3592
    %v3595 = vadd.f32 %v3590, %v3593
    %3596 = vst [vmem:[#allocation4] sm:$0xff] %v3594
    %3597 = vst [vmem:[#allocation4 + $0x20] sm:$0xff] %v3595
    %v3598 = vmul.f32 %v3434, %v3442
    %v3599 = vmul.f32 %v3438, %v3446
    %v3600 = vadd.f32 %v3598, %v3599
    %v3601 = vrot.slane %v3600, 4
    %v3602 = vadd.f32 %v3600, %v3601
    %v3603 = vrot.slane %v3602, 2
    %v3604 = vadd.f32 %v3602, %v3603
    %v3605 = vrot.slane %v3604, 1
    %v3606 = vadd.f32 %v3604, %v3605
    %v3607 = vmul.f32 %v3434, %v3444
    %v3608 = vmul.f32 %v3438, %v3448
    %v3609 = vadd.f32 %v3607, %v3608
    %v3610 = vrot.slane %v3609, 4
    %v3611 = vadd.f32 %v3609, %v3610
    %v3612 = vrot.slane %v3611, 2
    %v3613 = vadd.f32 %v3611, %v3612
    %v3614 = vrot.slane %v3613, 1
    %v3615 = vadd.f32 %v3613, %v3614
    %v3616 = vmul.f32 %v3434, %v3505
    %v3617 = vmul.f32 %v3438, %v3509
    %v3618 = vadd.f32 %v3616, %v3617
    %v3619 = vrot.slane %v3618, 4
    %v3620 = vadd.f32 %v3618, %v3619
    %v3621 = vrot.slane %v3620, 2
    %v3622 = vadd.f32 %v3620, %v3621
    %v3623 = vrot.slane %v3622, 1
    %v3624 = vadd.f32 %v3622, %v3623
    %v3625 = vmul.f32 %v3434, %v3507
    %v3626 = vmul.f32 %v3438, %v3511
    %v3627 = vadd.f32 %v3625, %v3626
    %v3628 = vrot.slane %v3627, 4
    %v3629 = vadd.f32 %v3627, %v3628
    %v3630 = vrot.slane %v3629, 2
    %v3631 = vadd.f32 %v3629, %v3630
    %v3632 = vrot.slane %v3631, 1
    %v3633 = vadd.f32 %v3631, %v3632
    %v3634 = vmax.f32 %v3606, %v3615
    %v3635 = vmax.f32 %v3634, %v3624
    %v3636 = vmax.f32 %v3635, %v3633
    %v3637 = vsub.f32 %v3606, %v3636
    %v3638 = vmul.f32 %v3637, 1.442695
    %v3639 = vpow.pop %v3638
    %v3640 = vsub.f32 %v3615, %v3636
    %v3641 = vmul.f32 %v3640, 1.442695
    %v3642 = vpow.pop %v3641
    %v3643 = vsub.f32 %v3624, %v3636
    %v3644 = vmul.f32 %v3643, 1.442695
    %v3645 = vpow.pop %v3644
    %v3646 = vsub.f32 %v3633, %v3636
    %v3647 = vmul.f32 %v3646, 1.442695
    %v3648 = vpow.pop %v3647
    %v3649 = vadd.f32 %v3639, %v3642
    %v3650 = vadd.f32 %v3649, %v3645
    %v3651 = vadd.f32 %v3650, %v3648
    %v3652 = vrcp.pop %v3651
    %v3653 = vmul.f32 %v3639, %v3652
    %v3654 = vmul.f32 %v3653, %v3452
    %v3655 = vmul.f32 %v3653, %v3456
    %v3656 = vmul.f32 %v3642, %v3652
    %v3657 = vmul.f32 %v3656, %v3454
    %v3658 = vmul.f32 %v3656, %v3458
    %v3659 = vadd.f32 %v3654, %v3657
    %v3660 = vadd.f32 %v3655, %v3658
    %v3661 = vmul.f32 %v3645, %v3652
    %v3662 = vmul.f32 %v3661, %v3515
    %v3663 = vmul.f32 %v3661, %v3519
    %v3664 = vadd.f32 %v3659, %v3662
    %v3665 = vadd.f32 %v3660, %v3663
    %v3666 = vmul.f32 %v3648, %v3652
    %v3667 = vmul.f32 %v3666, %v3517
    %v3668 = vmul.f32 %v3666, %v3521
    %v3669 = vadd.f32 %v3664, %v3667
    %v3670 = vadd.f32 %v3665, %v3668
    %3671 = vst [vmem:[#allocation4 + $0x8] sm:$0xff] %v3669
    %3672 = vst [vmem:[#allocation4 + $0x28] sm:$0xff] %v3670
    %v3673 = vmul.f32 %v3495, %v3442
    %v3674 = vmul.f32 %v3499, %v3446
    %v3675 = vadd.f32 %v3673, %v3674
    %v3676 = vrot.slane %v3675, 4
    %v3677 = vadd.f32 %v3675, %v3676
    %v3678 = vrot.slane %v3677, 2
    %v3679 = vadd.f32 %v3677, %v3678
    %v3680 = vrot.slane %v3679, 1
    %v3681 = vadd.f32 %v3679, %v3680
    %v3682 = vmul.f32 %v3495, %v3444
    %v3683 = vmul.f32 %v3499, %v3448
    %v3684 = vadd.f32 %v3682, %v3683
    %v3685 = vrot.slane %v3684, 4
    %v3686 = vadd.f32 %v3684, %v3685
    %v3687 = vrot.slane %v3686, 2
    %v3688 = vadd.f32 %v3686, %v3687
    %v3689 = vrot.slane %v3688, 1
    %v3690 = vadd.f32 %v3688, %v3689
    %v3691 = vmul.f32 %v3495, %v3505
    %v3692 = vmul.f32 %v3499, %v3509
    %v3693 = vadd.f32 %v3691, %v3692
    %v3694 = vrot.slane %v3693, 4
    %v3695 = vadd.f32 %v3693, %v3694
    %v3696 = vrot.slane %v3695, 2
    %v3697 = vadd.f32 %v3695, %v3696
    %v3698 = vrot.slane %v3697, 1
    %v3699 = vadd.f32 %v3697, %v3698
    %v3700 = vmul.f32 %v3495, %v3507
    %v3701 = vmul.f32 %v3499, %v3511
    %v3702 = vadd.f32 %v3700, %v3701
    %v3703 = vrot.slane %v3702, 4
    %v3704 = vadd.f32 %v3702, %v3703
    %v3705 = vrot.slane %v3704, 2
    %v3706 = vadd.f32 %v3704, %v3705
    %v3707 = vrot.slane %v3706, 1
    %v3708 = vadd.f32 %v3706, %v3707
    %v3709 = vmax.f32 %v3681, %v3690
    %v3710 = vmax.f32 %v3709, %v3699
    %v3711 = vmax.f32 %v3710, %v3708
    %v3712 = vsub.f32 %v3681, %v3711
    %v3713 = vmul.f32 %v3712, 1.442695
    %v3714 = vpow.pop %v3713
    %v3715 = vsub.f32 %v3690, %v3711
    %v3716 = vmul.f32 %v3715, 1.442695
    %v3717 = vpow.pop %v3716
    %v3718 = vsub.f32 %v3699, %v3711
    %v3719 = vmul.f32 %v3718, 1.442695
    %v3720 = vpow.pop %v3719
    %v3721 = vsub.f32 %v3708, %v3711
    %v3722 = vmul.f32 %v3721, 1.442695
    %v3723 = vpow.pop %v3722
    %v3724 = vadd.f32 %v3714, %v3717
    %v3725 = vadd.f32 %v3724, %v3720
    %v3726 = vadd.f32 %v3725, %v3723
    %v3727 = vrcp.pop %v3726
    %v3728 = vmul.f32 %v3714, %v3727
    %v3729 = vmul.f32 %v3728, %v3452
    %v3730 = vmul.f32 %v3728, %v3456
    %v3731 = vmul.f32 %v3717, %v3727
    %v3732 = vmul.f32 %v3731, %v3454
    %v3733 = vmul.f32 %v3731, %v3458
    %v3734 = vadd.f32 %v3729, %v3732
    %v3735 = vadd.f32 %v3730, %v3733
    %v3736 = vmul.f32 %v3720, %v3727
    %v3737 = vmul.f32 %v3736, %v3515
    %v3738 = vmul.f32 %v3736, %v3519
    %v3739 = vadd.f32 %v3734, %v3737
    %v3740 = vadd.f32 %v3735, %v3738
    %v3741 = vmul.f32 %v3723, %v3727
    %v3742 = vmul.f32 %v3741, %v3517
    %v3743 = vmul.f32 %v3741, %v3521
    %v3744 = vadd.f32 %v3739, %v3742
    %v3745 = vadd.f32 %v3740, %v3743
    %3746 = vst [vmem:[#allocation4 + $0x10] sm:$0xff] %v3744
    %3747 = vst [vmem:[#allocation4 + $0x30] sm:$0xff] %v3745
    %v3748 = vmul.f32 %v3497, %v3442
    %v3749 = vmul.f32 %v3501, %v3446
    %v3750 = vadd.f32 %v3748, %v3749
    %v3751 = vrot.slane %v3750, 4
    %v3752 = vadd.f32 %v3750, %v3751
    %v3753 = vrot.slane %v3752, 2
    %v3754 = vadd.f32 %v3752, %v3753
    %v3755 = vrot.slane %v3754, 1
    %v3756 = vadd.f32 %v3754, %v3755
    %v3757 = vmul.f32 %v3497, %v3444
    %v3758 = vmul.f32 %v3501, %v3448
    %v3759 = vadd.f32 %v3757, %v3758
    %v3760 = vrot.slane %v3759, 4
    %v3761 = vadd.f32 %v3759, %v3760
    %v3762 = vrot.slane %v3761, 2
    %v3763 = vadd.f32 %v3761, %v3762
    %v3764 = vrot.slane %v3763, 1
    %v3765 = vadd.f32 %v3763, %v3764
    %v3766 = vmul.f32 %v3497, %v3505
    %v3767 = vmul.f32 %v3501, %v3509
    %v3768 = vadd.f32 %v3766, %v3767
    %v3769 = vrot.slane %v3768, 4
    %v3770 = vadd.f32 %v3768, %v3769
    %v3771 = vrot.slane %v3770, 2
    %v3772 = vadd.f32 %v3770, %v3771
    %v3773 = vrot.slane %v3772, 1
    %v3774 = vadd.f32 %v3772, %v3773
    %v3775 = vmul.f32 %v3497, %v3507
    %v3776 = vmul.f32 %v3501, %v3511
    %v3777 = vadd.f32 %v3775, %v3776
    %v3778 = vrot.slane %v3777, 4
    %v3779 = vadd.f32 %v3777, %v3778
    %v3780 = vrot.slane %v3779, 2
    %v3781 = vadd.f32 %v3779, %v3780
    %v3782 = vrot.slane %v3781, 1
    %v3783 = vadd.f32 %v3781, %v3782
    %v3784 = vmax.f32 %v3756, %v3765
    %v3785 = vmax.f32 %v3784, %v3774
    %v3786 = vmax.f32 %v3785, %v3783
    %v3787 = vsub.f32 %v3756, %v3786
    %v3788 = vmul.f32 %v3787, 1.442695
    %v3789 = vpow.pop %v3788
    %v3790 = vsub.f32 %v3765, %v3786
    %v3791 = vmul.f32 %v3790, 1.442695
    %v3792 = vpow.pop %v3791
    %v3793 = vsub.f32 %v3774, %v3786
    %v3794 = vmul.f32 %v3793, 1.442695
    %v3795 = vpow.pop %v3794
    %v3796 = vsub.f32 %v3783, %v3786
    %v3797 = vmul.f32 %v3796, 1.442695
    %v3798 = vpow.pop %v3797
    %v3799 = vadd.f32 %v3789, %v3792
    %v3800 = vadd.f32 %v3799, %v3795
    %v3801 = vadd.f32 %v3800, %v3798
    %v3802 = vrcp.pop %v3801
    %v3803 = vmul.f32 %v3789, %v3802
    %v3804 = vmul.f32 %v3803, %v3452
    %v3805 = vmul.f32 %v3803, %v3456
    %v3806 = vmul.f32 %v3792, %v3802
    %v3807 = vmul.f32 %v3806, %v3454
    %v3808 = vmul.f32 %v3806, %v3458
    %v3809 = vadd.f32 %v3804, %v3807
    %v3810 = vadd.f32 %v3805, %v3808
    %v3811 = vmul.f32 %v3795, %v3802
    %v3812 = vmul.f32 %v3811, %v3515
    %v3813 = vmul.f32 %v3811, %v3519
    %v3814 = vadd.f32 %v3809, %v3812
    %v3815 = vadd.f32 %v3810, %v3813
    %v3816 = vmul.f32 %v3798, %v3802
    %v3817 = vmul.f32 %v3816, %v3517
    %v3818 = vmul.f32 %v3816, %v3521
    %v3819 = vadd.f32 %v3814, %v3817
    %v3820 = vadd.f32 %v3815, %v3818
    %3821 = vst [vmem:[#allocation4 + $0x18] sm:$0xff] %v3819
    %3822 = vst [vmem:[#allocation4 + $0x38] sm:$0xff] %v3820
    %s3823 = scalar_lea.vmem %s7, 24
    %v3824 = vld [vmem:[%s3823] sm:$0xf]
    %v3825 = vld [vmem:[%s3823 + $0x4] sm:$0xf]
    %v3826 = vld [vmem:[#allocation4] sm:$0xff]
    %v3827 = vld [vmem:[#allocation4 + $0x8] sm:$0xff]
    %v3828 = vld [vmem:[#allocation4 + $0x10] sm:$0xff]
    %v3829 = vld [vmem:[#allocation4 + $0x18] sm:$0xff]
    %v3830 = vld [vmem:[#allocation4 + $0x20] sm:$0xff]
    %v3831 = vld [vmem:[#allocation4 + $0x28] sm:$0xff]
    %v3832 = vld [vmem:[#allocation4 + $0x30] sm:$0xff]
    %v3833 = vld [vmem:[#allocation4 + $0x38] sm:$0xff]
    %v3834 = vpack.c.bf16 %v3830, %v3826
    %v3835 = vpack.c.bf16 %v3831, %v3827
    %v3836 = vpack.c.bf16 %v3832, %v3828
    %v3837 = vpack.c.bf16 %v3833, %v3829
    %s3838 = scalar_lea.vmem %s8, 48
    %v3839 = vld [vmem:[%s3838] sm:$0xff]
    %v3840 = vld [vmem:[%s3838 + $0x8] sm:$0xff]
    %3842 = vset.pattern.permute.xlu0 0
    %3843 = vperm.xlu0 %3842, %v3839
    %v3844 = vpop.permute.xlu0 %3843
    %3847 = vset.pattern.permute.xlu0 0
    %3848 = vperm.xlu0 %3847, %v3840
    %v3849 = vpop.permute.xlu0 %3848
    %v3853 = vunpack.c.l.b16 %v3824
    %v3854 = vunpack.c.l.b16 %v3825
    %v3855 = vpack.c.b16 %v3854, %v3853
    %v3857 = vsel %vm1171, %v3855, 0
    %3859 = vmatprep.subr.bf16.mxu0 %v3835
    %3860 = vmatpush1.bf16.msra.mxu0 %v3834
    %3861 = vmatprep.subr.bf16.mxu0 0
    %3862 = vmatpush1.bf16.msra.mxu0 0
    %3863 = vmatprep.subr.bf16.mxu0 0
    %3864 = vmatpush1.bf16.msra.mxu0 0
    %3865 = vmatprep.subr.bf16.mxu0 0
    %3866 = vmatpush1.bf16.msra.mxu0 0
    %3867 = vmatprep.subr.bf16.mxu0 0
    %3868 = vmatpush1.bf16.msra.mxu0 0
    %3869 = vmatprep.subr.bf16.mxu0 0
    %3870 = vmatpush1.bf16.msra.mxu0 0
    %3871 = vmatprep.subr.bf16.mxu0 0
    %3872 = vmatpush1.bf16.msra.mxu0 0
    %3873 = vmatprep.subr.bf16.mxu0 0
    %3874 = vmatpush1.bf16.msra.mxu0 0
    %3875 = vmatprep.subr.bf16.mxu0 0
    %3876 = vmatpush1.bf16.msra.mxu0 0
    %3877 = vmatprep.subr.bf16.mxu0 0
    %3878 = vmatpush1.bf16.msra.mxu0 0
    %3879 = vmatprep.subr.bf16.mxu0 0
    %3880 = vmatpush1.bf16.msra.mxu0 0
    %3881 = vmatprep.subr.bf16.mxu0 0
    %3882 = vmatpush1.bf16.msra.mxu0 0
    %3883 = vmatprep.subr.bf16.mxu0 0
    %3884 = vmatpush1.bf16.msra.mxu0 0
    %3885 = vmatprep.subr.bf16.mxu0 0
    %3886 = vmatpush1.bf16.msra.mxu0 0
    %3887 = vmatprep.subr.bf16.mxu0 0
    %3888 = vmatpush1.bf16.msra.mxu0 0
    %3889 = vmatprep.subr.bf16.mxu0 0
    %3890 = vmatpush1.bf16.msra.mxu0 0
    %3891 = vmatprep.mubr.bf16.mxu0 0
    %3892 = vmatmul.mubr.bf16.gmra.mrb[0].mxu0 %v3857
    %v3893 = vpop.f32.mrb[0].mxu0
    %v3894 = vadd.f32 %v3844, %v3893
    %v3895 = vpop.f32.mrb[0].mxu0
    %v3896 = vadd.f32 %v3844, %v3895
    %v3897 = vpop.f32.mrb[0].mxu0
    %v3898 = vadd.f32 %v3849, %v3897
    %v3899 = vpop.f32.mrb[0].mxu0
    %v3900 = vadd.f32 %v3849, %v3899
    %3901 = vdwg.mxu0
    %3902 = vmatprep.subr.bf16.mxu0 %v3837
    %3903 = vmatpush1.bf16.msra.mxu0 %v3836
    %3904 = vmatprep.subr.bf16.mxu0 0
    %3905 = vmatpush1.bf16.msra.mxu0 0
    %3906 = vmatprep.subr.bf16.mxu0 0
    %3907 = vmatpush1.bf16.msra.mxu0 0
    %3908 = vmatprep.subr.bf16.mxu0 0
    %3909 = vmatpush1.bf16.msra.mxu0 0
    %3910 = vmatprep.subr.bf16.mxu0 0
    %3911 = vmatpush1.bf16.msra.mxu0 0
    %3912 = vmatprep.subr.bf16.mxu0 0
    %3913 = vmatpush1.bf16.msra.mxu0 0
    %3914 = vmatprep.subr.bf16.mxu0 0
    %3915 = vmatpush1.bf16.msra.mxu0 0
    %3916 = vmatprep.subr.bf16.mxu0 0
    %3917 = vmatpush1.bf16.msra.mxu0 0
    %3918 = vmatprep.subr.bf16.mxu0 0
    %3919 = vmatpush1.bf16.msra.mxu0 0
    %3920 = vmatprep.subr.bf16.mxu0 0
    %3921 = vmatpush1.bf16.msra.mxu0 0
    %3922 = vmatprep.subr.bf16.mxu0 0
    %3923 = vmatpush1.bf16.msra.mxu0 0
    %3924 = vmatprep.subr.bf16.mxu0 0
    %3925 = vmatpush1.bf16.msra.mxu0 0
    %3926 = vmatprep.subr.bf16.mxu0 0
    %3927 = vmatpush1.bf16.msra.mxu0 0
    %3928 = vmatprep.subr.bf16.mxu0 0
    %3929 = vmatpush1.bf16.msra.mxu0 0
    %3930 = vmatprep.subr.bf16.mxu0 0
    %3931 = vmatpush1.bf16.msra.mxu0 0
    %3932 = vmatprep.subr.bf16.mxu0 0
    %3933 = vmatpush1.bf16.msra.mxu0 0
    %3934 = vmatprep.mubr.bf16.mxu0 0
    %3935 = vmatmul.mubr.bf16.gmra.mrb[0].mxu0 %v3857
    %v3936 = vpop.f32.mrb[0].mxu0
    %v3937 = vadd.f32 %v3844, %v3936
    %v3938 = vpop.f32.mrb[0].mxu0
    %v3939 = vadd.f32 %v3844, %v3938
    %v3940 = vpop.f32.mrb[0].mxu0
    %v3941 = vadd.f32 %v3849, %v3940
    %v3942 = vpop.f32.mrb[0].mxu0
    %v3943 = vadd.f32 %v3849, %v3942
    %3944 = vdwg.mxu0
    %s3945 = scalar_lea.vmem %s9, 24
    %v3946 = vld [vmem:[%s3945] sm:$0xf]
    %v3947 = vld [vmem:[%s3945 + $0x4] sm:$0xf]
    %v3948 = vpack.c.bf16 %v3898, %v3894
    %v3949 = vpack.c.bf16 %v3900, %v3896
    %v3950 = vpack.c.bf16 %v3941, %v3937
    %v3951 = vpack.c.bf16 %v3943, %v3939
    %s3952 = scalar_lea.vmem %s10, 48
    %v3953 = vld [vmem:[%s3952] sm:$0xff]
    %v3954 = vld [vmem:[%s3952 + $0x8] sm:$0xff]
    %3956 = vset.pattern.permute.xlu0 0
    %3957 = vperm.xlu0 %3956, %v3953
    %v3958 = vpop.permute.xlu0 %3957
    %3961 = vset.pattern.permute.xlu0 0
    %3962 = vperm.xlu0 %3961, %v3954
    %v3963 = vpop.permute.xlu0 %3962
    %v3967 = vunpack.c.l.b16 %v3946
    %v3968 = vunpack.c.l.b16 %v3947
    %v3969 = vpack.c.b16 %v3968, %v3967
    %v3971 = vsel %vm1171, %v3969, 0
    %3973 = vmatprep.subr.bf16.mxu0 %v3949
    %3974 = vmatpush1.bf16.msra.mxu0 %v3948
    %3975 = vmatprep.subr.bf16.mxu0 0
    %3976 = vmatpush1.bf16.msra.mxu0 0
    %3977 = vmatprep.subr.bf16.mxu0 0
    %3978 = vmatpush1.bf16.msra.mxu0 0
    %3979 = vmatprep.subr.bf16.mxu0 0
    %3980 = vmatpush1.bf16.msra.mxu0 0
    %3981 = vmatprep.subr.bf16.mxu0 0
    %3982 = vmatpush1.bf16.msra.mxu0 0
    %3983 = vmatprep.subr.bf16.mxu0 0
    %3984 = vmatpush1.bf16.msra.mxu0 0
    %3985 = vmatprep.subr.bf16.mxu0 0
    %3986 = vmatpush1.bf16.msra.mxu0 0
    %3987 = vmatprep.subr.bf16.mxu0 0
    %3988 = vmatpush1.bf16.msra.mxu0 0
    %3989 = vmatprep.subr.bf16.mxu0 0
    %3990 = vmatpush1.bf16.msra.mxu0 0
    %3991 = vmatprep.subr.bf16.mxu0 0
    %3992 = vmatpush1.bf16.msra.mxu0 0
    %3993 = vmatprep.subr.bf16.mxu0 0
    %3994 = vmatpush1.bf16.msra.mxu0 0
    %3995 = vmatprep.subr.bf16.mxu0 0
    %3996 = vmatpush1.bf16.msra.mxu0 0
    %3997 = vmatprep.subr.bf16.mxu0 0
    %3998 = vmatpush1.bf16.msra.mxu0 0
    %3999 = vmatprep.subr.bf16.mxu0 0
    %4000 = vmatpush1.bf16.msra.mxu0 0
    %4001 = vmatprep.subr.bf16.mxu0 0
    %4002 = vmatpush1.bf16.msra.mxu0 0
    %4003 = vmatprep.subr.bf16.mxu0 0
    %4004 = vmatpush1.bf16.msra.mxu0 0
    %4005 = vmatprep.mubr.bf16.mxu0 0
    %4006 = vmatmul.mubr.bf16.gmra.mrb[0].mxu0 %v3971
    %v4007 = vpop.f32.mrb[0].mxu0
    %v4008 = vadd.f32 %v3958, %v4007
    %v4009 = vpop.f32.mrb[0].mxu0
    %v4010 = vadd.f32 %v3958, %v4009
    %v4011 = vpop.f32.mrb[0].mxu0
    %v4012 = vadd.f32 %v3963, %v4011
    %v4013 = vpop.f32.mrb[0].mxu0
    %v4014 = vadd.f32 %v3963, %v4013
    %4015 = vdwg.mxu0
    %4016 = vmatprep.subr.bf16.mxu0 %v3951
    %4017 = vmatpush1.bf16.msra.mxu0 %v3950
    %4018 = vmatprep.subr.bf16.mxu0 0
    %4019 = vmatpush1.bf16.msra.mxu0 0
    %4020 = vmatprep.subr.bf16.mxu0 0
    %4021 = vmatpush1.bf16.msra.mxu0 0
    %4022 = vmatprep.subr.bf16.mxu0 0
    %4023 = vmatpush1.bf16.msra.mxu0 0
    %4024 = vmatprep.subr.bf16.mxu0 0
    %4025 = vmatpush1.bf16.msra.mxu0 0
    %4026 = vmatprep.subr.bf16.mxu0 0
    %4027 = vmatpush1.bf16.msra.mxu0 0
    %4028 = vmatprep.subr.bf16.mxu0 0
    %4029 = vmatpush1.bf16.msra.mxu0 0
    %4030 = vmatprep.subr.bf16.mxu0 0
    %4031 = vmatpush1.bf16.msra.mxu0 0
    %4032 = vmatprep.subr.bf16.mxu0 0
    %4033 = vmatpush1.bf16.msra.mxu0 0
    %4034 = vmatprep.subr.bf16.mxu0 0
    %4035 = vmatpush1.bf16.msra.mxu0 0
    %4036 = vmatprep.subr.bf16.mxu0 0
    %4037 = vmatpush1.bf16.msra.mxu0 0
    %4038 = vmatprep.subr.bf16.mxu0 0
    %4039 = vmatpush1.bf16.msra.mxu0 0
    %4040 = vmatprep.subr.bf16.mxu0 0
    %4041 = vmatpush1.bf16.msra.mxu0 0
    %4042 = vmatprep.subr.bf16.mxu0 0
    %4043 = vmatpush1.bf16.msra.mxu0 0
    %4044 = vmatprep.subr.bf16.mxu0 0
    %4045 = vmatpush1.bf16.msra.mxu0 0
    %4046 = vmatprep.subr.bf16.mxu0 0
    %4047 = vmatpush1.bf16.msra.mxu0 0
    %4048 = vmatprep.mubr.bf16.mxu0 0
    %4049 = vmatmul.mubr.bf16.gmra.mrb[0].mxu0 %v3971
    %v4050 = vpop.f32.mrb[0].mxu0
    %v4051 = vadd.f32 %v3958, %v4050
    %v4052 = vpop.f32.mrb[0].mxu0
    %v4053 = vadd.f32 %v3958, %v4052
    %v4054 = vpop.f32.mrb[0].mxu0
    %v4055 = vadd.f32 %v3963, %v4054
    %v4056 = vpop.f32.mrb[0].mxu0
    %v4057 = vadd.f32 %v3963, %v4056
    %4058 = vdwg.mxu0
    %v4059 = vmul.f32 %v4008, 0.5
    %v4060 = vmul.f32 %v4010, 0.5
    %v4061 = vmul.f32 %v4051, 0.5
    %v4062 = vmul.f32 %v4053, 0.5
    %v4063 = vmul.f32 %v4012, 0.5
    %v4064 = vmul.f32 %v4014, 0.5
    %v4065 = vmul.f32 %v4055, 0.5
    %v4066 = vmul.f32 %v4057, 0.5
    %v4067 = vmul.f32 %v4008, 0.70710677
    %v4068 = vmul.f32 %v4010, 0.70710677
    %v4069 = vmul.f32 %v4051, 0.70710677
    %v4070 = vmul.f32 %v4053, 0.70710677
    %v4071 = vmul.f32 %v4012, 0.70710677
    %v4072 = vmul.f32 %v4014, 0.70710677
    %v4073 = vmul.f32 %v4055, 0.70710677
    %v4074 = vmul.f32 %v4057, 0.70710677
    %v4075 = verf.f32.pop %v4067
    %v4076 = verf.f32.pop %v4068
    %v4077 = verf.f32.pop %v4069
    %v4078 = verf.f32.pop %v4070
    %v4079 = verf.f32.pop %v4071
    %v4080 = verf.f32.pop %v4072
    %v4081 = verf.f32.pop %v4073
    %v4082 = verf.f32.pop %v4074
    %v4083 = vadd.f32 %v4075, 1.0
    %v4084 = vadd.f32 %v4076, 1.0
    %v4085 = vadd.f32 %v4077, 1.0
    %v4086 = vadd.f32 %v4078, 1.0
    %v4087 = vadd.f32 %v4079, 1.0
    %v4088 = vadd.f32 %v4080, 1.0
    %v4089 = vadd.f32 %v4081, 1.0
    %v4090 = vadd.f32 %v4082, 1.0
    %v4091 = vmul.f32 %v4059, %v4083
    %v4092 = vmul.f32 %v4060, %v4084
    %v4093 = vmul.f32 %v4061, %v4085
    %v4094 = vmul.f32 %v4062, %v4086
    %v4095 = vmul.f32 %v4063, %v4087
    %v4096 = vmul.f32 %v4064, %v4088
    %v4097 = vmul.f32 %v4065, %v4089
    %v4098 = vmul.f32 %v4066, %v4090
    %s4099 = scalar_lea.vmem %s11, 24
    %v4100 = vld [vmem:[%s4099] sm:$0xf]
    %v4101 = vld [vmem:[%s4099 + $0x4] sm:$0xf]
    %v4102 = vpack.c.bf16 %v4095, %v4091
    %v4103 = vpack.c.bf16 %v4096, %v4092
    %v4104 = vpack.c.bf16 %v4097, %v4093
    %v4105 = vpack.c.bf16 %v4098, %v4094
    %s4106 = scalar_lea.vmem %s12, 48
    %v4107 = vld [vmem:[%s4106] sm:$0xff]
    %v4108 = vld [vmem:[%s4106 + $0x8] sm:$0xff]
    %4110 = vset.pattern.permute.xlu0 0
    %4111 = vperm.xlu0 %4110, %v4107
    %v4112 = vpop.permute.xlu0 %4111
    %4115 = vset.pattern.permute.xlu0 0
    %4116 = vperm.xlu0 %4115, %v4108
    %v4117 = vpop.permute.xlu0 %4116
    %v4121 = vunpack.c.l.b16 %v4100
    %v4122 = vunpack.c.l.b16 %v4101
    %v4123 = vpack.c.b16 %v4122, %v4121
    %v4125 = vsel %vm1171, %v4123, 0
    %4127 = vmatprep.subr.bf16.mxu0 %v4103
    %4128 = vmatpush1.bf16.msra.mxu0 %v4102
    %4129 = vmatprep.subr.bf16.mxu0 0
    %4130 = vmatpush1.bf16.msra.mxu0 0
    %4131 = vmatprep.subr.bf16.mxu0 0
    %4132 = vmatpush1.bf16.msra.mxu0 0
    %4133 = vmatprep.subr.bf16.mxu0 0
    %4134 = vmatpush1.bf16.msra.mxu0 0
    %4135 = vmatprep.subr.bf16.mxu0 0
    %4136 = vmatpush1.bf16.msra.mxu0 0
    %4137 = vmatprep.subr.bf16.mxu0 0
    %4138 = vmatpush1.bf16.msra.mxu0 0
    %4139 = vmatprep.subr.bf16.mxu0 0
    %4140 = vmatpush1.bf16.msra.mxu0 0
    %4141 = vmatprep.subr.bf16.mxu0 0
    %4142 = vmatpush1.bf16.msra.mxu0 0
    %4143 = vmatprep.subr.bf16.mxu0 0
    %4144 = vmatpush1.bf16.msra.mxu0 0
    %4145 = vmatprep.subr.bf16.mxu0 0
    %4146 = vmatpush1.bf16.msra.mxu0 0
    %4147 = vmatprep.subr.bf16.mxu0 0
    %4148 = vmatpush1.bf16.msra.mxu0 0
    %4149 = vmatprep.subr.bf16.mxu0 0
    %4150 = vmatpush1.bf16.msra.mxu0 0
    %4151 = vmatprep.subr.bf16.mxu0 0
    %4152 = vmatpush1.bf16.msra.mxu0 0
    %4153 = vmatprep.subr.bf16.mxu0 0
    %4154 = vmatpush1.bf16.msra.mxu0 0
    %4155 = vmatprep.subr.bf16.mxu0 0
    %4156 = vmatpush1.bf16.msra.mxu0 0
    %4157 = vmatprep.subr.bf16.mxu0 0
    %4158 = vmatpush1.bf16.msra.mxu0 0
    %4159 = vmatprep.mubr.bf16.mxu0 0
    %4160 = vmatmul.mubr.bf16.gmra.mrb[0].mxu0 %v4125
    %v4161 = vpop.f32.mrb[0].mxu0
    %v4162 = vadd.f32 %v4112, %v4161
    %v4163 = vpop.f32.mrb[0].mxu0
    %v4164 = vadd.f32 %v4112, %v4163
    %v4165 = vpop.f32.mrb[0].mxu0
    %v4166 = vadd.f32 %v4117, %v4165
    %v4167 = vpop.f32.mrb[0].mxu0
    %v4168 = vadd.f32 %v4117, %v4167
    %4169 = vdwg.mxu0
    %4170 = vmatprep.subr.bf16.mxu0 %v4105
    %4171 = vmatpush1.bf16.msra.mxu0 %v4104
    %4172 = vmatprep.subr.bf16.mxu0 0
    %4173 = vmatpush1.bf16.msra.mxu0 0
    %4174 = vmatprep.subr.bf16.mxu0 0
    %4175 = vmatpush1.bf16.msra.mxu0 0
    %4176 = vmatprep.subr.bf16.mxu0 0
    %4177 = vmatpush1.bf16.msra.mxu0 0
    %4178 = vmatprep.subr.bf16.mxu0 0
    %4179 = vmatpush1.bf16.msra.mxu0 0
    %4180 = vmatprep.subr.bf16.mxu0 0
    %4181 = vmatpush1.bf16.msra.mxu0 0
    %4182 = vmatprep.subr.bf16.mxu0 0
    %4183 = vmatpush1.bf16.msra.mxu0 0
    %4184 = vmatprep.subr.bf16.mxu0 0
    %4185 = vmatpush1.bf16.msra.mxu0 0
    %4186 = vmatprep.subr.bf16.mxu0 0
    %4187 = vmatpush1.bf16.msra.mxu0 0
    %4188 = vmatprep.subr.bf16.mxu0 0
    %4189 = vmatpush1.bf16.msra.mxu0 0
    %4190 = vmatprep.subr.bf16.mxu0 0
    %4191 = vmatpush1.bf16.msra.mxu0 0
    %4192 = vmatprep.subr.bf16.mxu0 0
    %4193 = vmatpush1.bf16.msra.mxu0 0
    %4194 = vmatprep.subr.bf16.mxu0 0
    %4195 = vmatpush1.bf16.msra.mxu0 0
    %4196 = vmatprep.subr.bf16.mxu0 0
    %4197 = vmatpush1.bf16.msra.mxu0 0
    %4198 = vmatprep.subr.bf16.mxu0 0
    %4199 = vmatpush1.bf16.msra.mxu0 0
    %4200 = vmatprep.subr.bf16.mxu0 0
    %4201 = vmatpush1.bf16.msra.mxu0 0
    %4202 = vmatprep.mubr.bf16.mxu0 0
    %4203 = vmatmul.mubr.bf16.gmra.mrb[0].mxu0 %v4125
    %v4204 = vpop.f32.mrb[0].mxu0
    %v4205 = vadd.f32 %v4112, %v4204
    %v4206 = vpop.f32.mrb[0].mxu0
    %v4207 = vadd.f32 %v4112, %v4206
    %v4208 = vpop.f32.mrb[0].mxu0
    %v4209 = vadd.f32 %v4117, %v4208
    %v4210 = vpop.f32.mrb[0].mxu0
    %v4211 = vadd.f32 %v4117, %v4210
    %4212 = vdwg.mxu0
    %v4213 = vadd.f32 %v3894, %v4162
    %v4214 = vadd.f32 %v3896, %v4164
    %v4215 = vadd.f32 %v3937, %v4205
    %v4216 = vadd.f32 %v3939, %v4207
    %v4217 = vadd.f32 %v3898, %v4166
    %v4218 = vadd.f32 %v3900, %v4168
    %v4219 = vadd.f32 %v3941, %v4209
    %v4220 = vadd.f32 %v3943, %v4211
    %v4221 = vpack.c.bf16 %v4217, %v4213
    %v4223 = vunpack.c.l.b16 %v4221
    %v4224 = vunpack.c.h.b16 %v4221
    %v4225 = vpack.c.b16 %v4223, %v4223
    %v4226 = vpack.c.b16 %v4224, %v4224
    %4229 = vst [vmem:[#allocation5] sm:$0xf] %v4225
    %4230 = vst [vmem:[#allocation5 + $0x4] sm:$0xf] %v4226
    %v4231 = vpack.c.bf16 %v4218, %v4214
    %v4233 = vunpack.c.l.b16 %v4231
    %v4234 = vunpack.c.h.b16 %v4231
    %v4235 = vpack.c.b16 %v4233, %v4233
    %v4236 = vpack.c.b16 %v4234, %v4234
    %s4239 = scalar_lea.vmem [#allocation5], 8
    %4240 = vst [vmem:[%s4239] sm:$0xf] %v4235
    %4241 = vst [vmem:[%s4239 + $0x4] sm:$0xf] %v4236
    %v4242 = vpack.c.bf16 %v4219, %v4215
    %v4244 = vunpack.c.l.b16 %v4242
    %v4245 = vunpack.c.h.b16 %v4242
    %v4246 = vpack.c.b16 %v4244, %v4244
    %v4247 = vpack.c.b16 %v4245, %v4245
    %s4250 = scalar_lea.vmem [#allocation5], 16
    %4251 = vst [vmem:[%s4250] sm:$0xf] %v4246
    %4252 = vst [vmem:[%s4250 + $0x4] sm:$0xf] %v4247
    %v4253 = vpack.c.bf16 %v4220, %v4216
    %v4255 = vunpack.c.l.b16 %v4253
    %v4256 = vunpack.c.h.b16 %v4253
    %v4257 = vpack.c.b16 %v4255, %v4255
    %v4258 = vpack.c.b16 %v4256, %v4256
    %s4261 = scalar_lea.vmem [#allocation5], 24
    %4262 = vst [vmem:[%s4261] sm:$0xf] %v4257
    %4263 = vst [vmem:[%s4261 + $0x4] sm:$0xf] %v4258
    // Predicated region
    $region54: #{tpu_custom_call.1} parent=1 // pred_check
      _
    $region55: #{tpu_custom_call.1} parent=1 // pred_check_branch
      %4265 = sbr.rel (0) target = $region57
    $region56: #{tpu_custom_call.1} parent=1 // pred_region
      %s4267 = ssub.s32 512, 512
      %4268 = vsyncadd [#allocation6], %s4267
      %s4269 = sshll.u32 [#allocation5], 4
      %s4270 = int_to_ptr.vmem [resolvable:$true] %s4269
      %4275 = dma.vmem_to_hbm [thread:$0]  %s4270, 512, %s13, [#allocation6], 64, 64, 4
    $region57: #{tpu_custom_call.1} parent=1 // pred_fallthru
      _
    // Predicated region
    $region58: #{tpu_custom_call.1} parent=1 // pred_check
      _
    $region59: #{tpu_custom_call.1} parent=1 // pred_check_branch
      %4277 = sbr.rel (0) target = $region61
    $region60: #{tpu_custom_call.1} parent=1 // pred_region
      %4278 = dma.done [#allocation6], 512
    $region61: #{tpu_custom_call.1} parent=1 // pred_fallthru
      _
    %4279 = vsyncpa [#allocation6], 1

</llo_original>
